<compile_context>
chip_gen: v7x
topology: tpu7x:2x2x1
jax: 0.10.0
libtpu: 0.0.40
codegen_flags: <defaults>
</compile_context>

<pallas_src>
import jax
import jax.numpy as jnp
from jax import lax
from jax.experimental import pallas as pl
from jax.experimental.pallas import tpu as pltpu

_EPS = 1e-8                       # torch.nn.functional.cosine_similarity default
_SMALL_INPUT_BYTES = 256 * 1024   # below this, pallas_call overhead dominates
_LANES = 128                      # vreg lane width


# ----------------------------------------------------------------------------
# GnnEmbedder.forward  ->  identity pass-through.  No kernel on purpose.
# ----------------------------------------------------------------------------
def gnn_embedder_forward(emb_as, emb_bs):
    """Exact semantics of GnnEmbedder.forward: returns (emb_as, emb_bs)."""
    return emb_as, emb_bs


# ----------------------------------------------------------------------------
# Pure-JAX reference / small-input fallback for the predict head.
# ----------------------------------------------------------------------------
def _predict_reference(emb_as, emb_bs):
    a = emb_as.astype(jnp.float32)
    b = emb_bs.astype(jnp.float32)
    dot = jnp.sum(a * b, axis=1)
    na = jnp.maximum(jnp.sqrt(jnp.sum(a * a, axis=1)), _EPS)
    nb = jnp.maximum(jnp.sqrt(jnp.sum(b * b, axis=1)), _EPS)
    return 1.0 - dot / (na * nb)


# ----------------------------------------------------------------------------
# Kernel A (general): one logical row per lane-row; XLU lane reduce over H.
#   ged[i] = 1 - <a_i, b_i> / (max(||a_i||,eps) * max(||b_i||,eps))
# ----------------------------------------------------------------------------
def _predict_kernel_rows(a_ref, b_ref, out_ref):
    a = a_ref[...].astype(jnp.float32)            # [TILE_N, H]
    b = b_ref[...].astype(jnp.float32)
    dot = jnp.sum(a * b, axis=-1, keepdims=True)  # [TILE_N, 1]
    saa = jnp.sum(a * a, axis=-1, keepdims=True)
    sbb = jnp.sum(b * b, axis=-1, keepdims=True)
    # 1 / max(sqrt(s), eps) == rsqrt(max(s, eps^2)); rsqrt issues on the EUP
    # slot, which is otherwise idle here.
    eps2 = jnp.float32(_EPS * _EPS)
    inv_na = lax.rsqrt(jnp.maximum(saa, eps2))
    inv_nb = lax.rsqrt(jnp.maximum(sbb, eps2))
    out_ref[...] = 1.0 - dot * inv_na * inv_nb


# ----------------------------------------------------------------------------
# Kernel B (packed): g = 128 // H logical rows packed per 128-lane row.
# Per-row reductions become (tile,128) @ (128,g) matmuls against a 0/1
# block-diagonal selector -> MXU does the segmented sums, no XLU reduce.
# ----------------------------------------------------------------------------
def _predict_kernel_packed(a_ref, b_ref, s_ref, out_ref):
    a = a_ref[...].astype(jnp.float32)            # [TILE, 128]
    b = b_ref[...].astype(jnp.float32)
    s = s_ref[...]                                # [128, g] block-diag selector
    hi = jax.lax.Precision.HIGHEST                # keep f32 accuracy on the MXU
    dot = jnp.dot(a * b, s, precision=hi, preferred_element_type=jnp.float32)
    saa = jnp.dot(a * a, s, precision=hi, preferred_element_type=jnp.float32)
    sbb = jnp.dot(b * b, s, precision=hi, preferred_element_type=jnp.float32)
    eps2 = jnp.float32(_EPS * _EPS)
    inv_na = lax.rsqrt(jnp.maximum(saa, eps2))    # EUP
    inv_nb = lax.rsqrt(jnp.maximum(sbb, eps2))
    out_ref[...] = 1.0 - dot * inv_na * inv_nb    # [TILE, g]


# ----------------------------------------------------------------------------
# Tiling helpers.
# ----------------------------------------------------------------------------
def _round_up(x, m):
    return ((x + m - 1) // m) * m


def _choose_tile_rows(n_rows, width, itemsize):
    """Largest row tile whose double-buffered inputs + f32 temps fit ~12 MiB."""
    budget = 12 * 1024 * 1024
    # 2 inputs x 2 pipeline buffers of (tile, width) + ~3 f32 elementwise temps.
    bytes_per_row = width * (2 * 2 * itemsize + 3 * 4)
    tile = budget // max(bytes_per_row, 1)
    tile = max(8, min(tile, 2048))        # diminishing returns past 2048
    tile = (tile // 8) * 8                # sublane multiple
    return min(tile, _round_up(n_rows, 8))


_COMPILER_PARAMS = pltpu.CompilerParams(
    # Row tiles are independent: shard grid across both v7x TensorCores.
    dimension_semantics=("parallel",),
    # 32 MiB: default scoped limit on v6e/v7x, safe raise on v5e; the tile
    # heuristic keeps buffered inputs + temps well under it.
    vmem_limit_bytes=32 * 1024 * 1024,
)


# ----------------------------------------------------------------------------
# GnnEmbedder.predict: 1 - cosine_similarity(emb_as, emb_bs), shape [N].
# ----------------------------------------------------------------------------
def gnn_embedder_predict(emb_as, emb_bs, *, tile_n=None, force_pallas=False):
    """`tile_n` is a row tile over *packed* rows when the packed path is taken."""
    n, h = emb_as.shape
    itemsize = jnp.dtype(emb_as.dtype).itemsize

    # Tiny inputs: fixed pallas_call launch/DMA overhead dwarfs the work.
    if not force_pallas and n * h * itemsize < _SMALL_INPUT_BYTES:
        return _predict_reference(emb_as, emb_bs)

    g = _LANES // h if (h > 0 and _LANES % h == 0) else 0

    if g > 1 and n % g == 0:
        # ---- Packed path: (N, H) -> (N/g, 128) is a free row-major reshape.
        n_rows = n // g
        width = g * h                                        # == 128
        a_p = emb_as.reshape(n_rows, width)
        b_p = emb_bs.reshape(n_rows, width)
        # 0/1 block-diagonal selector: column c sums lanes [c*H, (c+1)*H).
        sel = (jnp.arange(width, dtype=jnp.int32)[:, None] // h
               == jnp.arange(g, dtype=jnp.int32)[None, :]).astype(jnp.float32)

        tile = tile_n if tile_n is not None else _choose_tile_rows(
            n_rows, width, itemsize)
        grid = (pl.cdiv(n_rows, tile),)

        ged = pl.pallas_call(
            _predict_kernel_packed,
            out_shape=jax.ShapeDtypeStruct((n_rows, g), jnp.float32),
            grid=grid,
            in_specs=[
                pl.BlockSpec((tile, width), lambda i: (i, 0)),
                pl.BlockSpec((tile, width), lambda i: (i, 0)),
                # Same block every step -> stays resident in VMEM.
                pl.BlockSpec((width, g), lambda i: (0, 0)),
            ],
            out_specs=pl.BlockSpec((tile, g), lambda i: (i, 0)),
            compiler_params=_COMPILER_PARAMS,
        )(a_p, b_p, sel)
        return ged.reshape(n)   # free reshape back to [N]

    # ---- General path: one logical row per lane-row, XLU lane reduce over H.
    tile = tile_n if tile_n is not None else _choose_tile_rows(n, h, itemsize)
    grid = (pl.cdiv(n, tile),)

    ged = pl.pallas_call(
        _predict_kernel_rows,
        out_shape=jax.ShapeDtypeStruct((n, 1), jnp.float32),
        grid=grid,
        in_specs=[
            pl.BlockSpec((tile, h), lambda i: (i, 0)),
            pl.BlockSpec((tile, h), lambda i: (i, 0)),
        ],
        out_specs=pl.BlockSpec((tile, 1), lambda i: (i, 0)),
        compiler_params=_COMPILER_PARAMS,
    )(emb_as, emb_bs)
    return ged[:, 0]   # match torch's [N] output of F.cosine_similarity


# ----------------------------------------------------------------------------
# GnnEmbedder.criterion: L1(1 - cos_sim, labels), reusing the predict kernel.
# ----------------------------------------------------------------------------
def gnn_embedder_criterion(pred, intersect_embs, labels):
    emb_as, emb_bs = pred
    ged = gnn_embedder_predict(emb_as, emb_bs)
    return jnp.mean(jnp.abs(ged - labels))


# ----------------------------------------------------------------------------
if __name__ == "__main__":
    key = jax.random.PRNGKey(0)
    k_a, k_b = jax.random.split(key)

    # hidden_dim = 32 (SkipLastGNN output dim); small N of graph pairs.
    N, H = 512, 32
    emb_as = jax.random.normal(k_a, (N, H), dtype=jnp.float32)
    emb_bs = jax.random.normal(k_b, (N, H), dtype=jnp.float32)

    # --- forward: identity pass-through (no kernel, no HBM round trip) ---
    out_a, out_b = gnn_embedder_forward(emb_as, emb_bs)
    assert out_a is emb_as and out_b is emb_bs

    # --- packed-path predict kernel (H | 128): multi-step grid via tile_n ---
    ged = gnn_embedder_predict(out_a, out_b, tile_n=64, force_pallas=True)
    jax.block_until_ready(ged)
    ref = _predict_reference(emb_as, emb_bs)
    assert ged.shape == (N,)
    assert jnp.allclose(ged, ref, atol=2e-5, rtol=2e-5)

    # --- general-path predict kernel (ragged N, masked boundary block) ---
    N2 = 253   # not a multiple of g=4 -> row-wise kernel
    ged2 = gnn_embedder_predict(emb_as[:N2], emb_bs[:N2],
                                tile_n=64, force_pallas=True)
    jax.block_until_ready(ged2)
    assert ged2.shape == (N2,)
    assert jnp.allclose(ged2, _predict_reference(emb_as[:N2], emb_bs[:N2]),
                        atol=2e-5, rtol=2e-5)

    # --- tiny-shape policy path: plain jnp (XLA fuses), no pallas_call ---
    ged_small = gnn_embedder_predict(emb_as[:8], emb_bs[:8])
    jax.block_until_ready(ged_small)
    assert jnp.allclose(ged_small, _predict_reference(emb_as[:8], emb_bs[:8]),
                        atol=2e-5, rtol=2e-5)

    # --- criterion head (L1 on predicted ged) ---
    labels = jnp.zeros((N,), dtype=jnp.float32)
    loss = gnn_embedder_criterion((emb_as, emb_bs), None, labels)
    jax.block_until_ready(loss)
    assert jnp.allclose(loss, jnp.mean(jnp.abs(ref - labels)), atol=2e-5)

    print("KERNEL_OK")
</pallas_src>

<mosaic_0001>
module attributes {stable_mosaic.version = 11 : i64} {
  func.func @_predict_kernel_packed(%arg0: i32, %arg1: memref<64x128xf32, #tpu.memory_space<vmem>>, %arg2: memref<64x128xf32, #tpu.memory_space<vmem>>, %arg3: memref<128x4xf32, #tpu.memory_space<vmem>>, %arg4: memref<64x4xf32, #tpu.memory_space<vmem>>) attributes {dimension_semantics = [#tpu.dimension_semantics<parallel>], iteration_bounds = array<i64: 2>, scalar_prefetch = 0 : i64, scratch_operands = 0 : i64, tpu.core_type = #tpu.core_type<tc>, window_params = [{transform_indices = @transform_0, window_bounds = array<i64: 64, 128>}, {transform_indices = @transform_1, window_bounds = array<i64: 64, 128>}, {pipeline_mode = #tpu.pipeline_mode<synchronous>, transform_indices = @transform_2, window_bounds = array<i64: 128, 4>}, {transform_indices = @transform_3, window_bounds = array<i64: 64, 4>}]} {
    %c0 = arith.constant 0 : index
    %c0_0 = arith.constant 0 : index
    %0 = vector.load %arg1[%c0, %c0_0] : memref<64x128xf32, #tpu.memory_space<vmem>>, vector<64x128xf32>
    %c0_1 = arith.constant 0 : index
    %c0_2 = arith.constant 0 : index
    %1 = vector.load %arg2[%c0_1, %c0_2] : memref<64x128xf32, #tpu.memory_space<vmem>>, vector<64x128xf32>
    %c0_3 = arith.constant 0 : index
    %c0_4 = arith.constant 0 : index
    %2 = vector.load %arg3[%c0_3, %c0_4] : memref<128x4xf32, #tpu.memory_space<vmem>>, vector<128x4xf32>
    %3 = arith.mulf %0, %1 : vector<64x128xf32>
    %cst = arith.constant dense<0.000000e+00> : vector<64x4xf32>
    %4 = tpu.matmul %3, %2, %cst {dimension_numbers = #tpu.dot_dimension_numbers<[1], [0], [0], [1], [0, 0, 1, 1], [], []>, precision = #tpu.contract_precision<fp32>} : vector<64x128xf32>, vector<128x4xf32>, vector<64x4xf32> -> vector<64x4xf32>
    %5 = arith.mulf %0, %0 : vector<64x128xf32>
    %cst_5 = arith.constant dense<0.000000e+00> : vector<64x4xf32>
    %6 = tpu.matmul %5, %2, %cst_5 {dimension_numbers = #tpu.dot_dimension_numbers<[1], [0], [0], [1], [0, 0, 1, 1], [], []>, precision = #tpu.contract_precision<fp32>} : vector<64x128xf32>, vector<128x4xf32>, vector<64x4xf32> -> vector<64x4xf32>
    %7 = arith.mulf %1, %1 : vector<64x128xf32>
    %cst_6 = arith.constant dense<0.000000e+00> : vector<64x4xf32>
    %8 = tpu.matmul %7, %2, %cst_6 {dimension_numbers = #tpu.dot_dimension_numbers<[1], [0], [0], [1], [0, 0, 1, 1], [], []>, precision = #tpu.contract_precision<fp32>} : vector<64x128xf32>, vector<128x4xf32>, vector<64x4xf32> -> vector<64x4xf32>
    %cst_7 = arith.constant 1.000000e-16 : f32
    %9 = vector.broadcast %cst_7 : f32 to vector<64x4xf32>
    %10 = arith.maximumf %6, %9 : vector<64x4xf32>
    %11 = math.rsqrt %10 : vector<64x4xf32>
    %cst_8 = arith.constant 1.000000e-16 : f32
    %12 = vector.broadcast %cst_8 : f32 to vector<64x4xf32>
    %13 = arith.maximumf %8, %12 : vector<64x4xf32>
    %14 = math.rsqrt %13 : vector<64x4xf32>
    %15 = arith.mulf %4, %11 : vector<64x4xf32>
    %16 = arith.mulf %15, %14 : vector<64x4xf32>
    %cst_9 = arith.constant 1.000000e+00 : f32
    %17 = vector.broadcast %cst_9 : f32 to vector<64x4xf32>
    %18 = arith.subf %17, %16 : vector<64x4xf32>
    %c0_10 = arith.constant 0 : index
    %c0_11 = arith.constant 0 : index
    %19 = vector.load %arg4[%c0_10, %c0_11] : memref<64x4xf32, #tpu.memory_space<vmem>>, vector<64x4xf32>
    tpu.vector_store %arg4[%c0_10, %c0_11], %18 {strides = array<i32>} : memref<64x4xf32, #tpu.memory_space<vmem>>, vector<64x4xf32>,
    return
  }
  func.func @transform_0(%arg0: i32) -> (i32, i32) {
    %c0_i32 = arith.constant 0 : i32
    %c0_i32_0 = arith.constant 0 : i32
    return %arg0, %c0_i32 : i32, i32
  }
  func.func @transform_1(%arg0: i32) -> (i32, i32) {
    %c0_i32 = arith.constant 0 : i32
    %c0_i32_0 = arith.constant 0 : i32
    return %arg0, %c0_i32 : i32, i32
  }
  func.func @transform_2(%arg0: i32) -> (i32, i32) {
    %c0_i32 = arith.constant 0 : i32
    %c0_i32_0 = arith.constant 0 : i32
    %c0_i32_1 = arith.constant 0 : i32
    return %c0_i32, %c0_i32_0 : i32, i32
  }
  func.func @transform_3(%arg0: i32) -> (i32, i32) {
    %c0_i32 = arith.constant 0 : i32
    %c0_i32_0 = arith.constant 0 : i32
    return %arg0, %c0_i32 : i32, i32
  }
}

</mosaic_0001>

<llo_original>
// kernel: tpu_custom_call.1
$region0: #{tpu_custom_call.1}
  #allocation0 [shape = 'u32[]', space=smem, size = 0x4, offset = 0x4, fixed_abs, tag = 'smem constant byte address 0x4 - core index']
  #allocation1 [shape = 'u32[144,128]{1,0:T(1,128)}', space=vmem, size = 0x12000, scoped, tag = 'internal scratch']
  %s0 = inlined_call_operand.vmem [shape: f32[128,128], index: 0, kind: input, shape index: {}]
  %s1 = inlined_call_operand.hbm [shape: f32[128,128], index: 1, kind: input, shape index: {}]
  %s2 = inlined_call_operand.vmem [shape: f32[128,4], index: 2, kind: input, shape index: {}]
  %s3 = inlined_call_operand.vmem [shape: f32[128,4], index: 3, kind: output, shape index: {}]
  %s4 = sld [smem:[#allocation0]]
  $region49: #{tpu_custom_call.1} parent=0
    _
  %s6 = ssub.s32 1, %s4
  %s7 = scalar_select 0, %s6, %s4
  $region1: #{tpu_custom_call.1} parent=0
    #allocation2 [shape = 'u8[65536]{0}', space=vmem, size = 0x10000, scoped, tag = 'input window, operand 1']
    #allocation3 [shape = 's32[2]{0}', space=sflag, size = 0x8, scoped, tag = 'scoped memory for tpu_custom_call.1']
    %8 = vsyncpa [#allocation3], 0
    %s9 = scalar_lea.sflag [#allocation3], 1
    %10 = vsyncpa %s9, 0
    loop: start=0, step=1, limit=4
    $region2: #{tpu_custom_call.1} parent=1 // loop_pre_header
      _
    $region3: #{tpu_custom_call.1} parent=1 // loop_header
      %s12 = sphi 0, %s16
      %p13 = scmp.ge.s32.totalorder %s12, 4
      %s22 = sphi 0, %s24
      %s25 = sphi 0, %s22
      %s26 = sphi 0, %s25
      %s42 = sphi 0, %s26
      %s48 = sphi 0, %s50
      %s51 = sphi 0, %s48
      %s52 = sphi 0, %s51
      %s68 = sphi 0, %s52
      %s72 = sphi 0, %s72
      %s74 = sphi 0, %s72
      %s75 = sphi 0, %s74
      %s89 = sphi 0, %s75
      %s95 = sphi 0, %s97
      %s98 = sphi 0, %s95
      %s99 = sphi 0, %s98
      %s115 = sphi 0, %s99
    $region4: #{tpu_custom_call.1} parent=1 // loop_header_branch
      %15 = sbr.rel (%p13) target = $region8
    $region5: #{tpu_custom_call.1} parent=1 // loop_body
      %s17 = ssub.s32 %s12, 1
      %s18 = ssub.s32 %s12, 2
      %s19 = sadd.s32 %s12, 1
      %s20 = ssub.s32 %s12, %s19
      %p21 = scmp.eq.s32.totalorder %s20, 0
      %s23 = sadd.s32 %s22, 1
      %s24 = scalar_select %p21, %s22, %s23
      %p27 = pneg %p21
      %p28 = scmp.eq.s32.totalorder %s12, 1
      %p29 = por %p27, %p28
      %p30 = scmp.ne.s32.totalorder %s22, %s25
      %p31 = scmp.eq.s32.totalorder %s12, 0
      %p32 = por %p30, %p31
      %p33 = scmp.ne.s32.totalorder %s22, %s25
      %p34 = scmp.eq.s32.totalorder %s17, 1
      %p35 = por %p33, %p34
      %p36 = scmp.ne.s32.totalorder %s25, %s26
      %p37 = scmp.eq.s32.totalorder %s17, 0
      %p38 = por %p36, %p37
      %p39 = scmp.ne.s32.totalorder %s25, %s26
      %p40 = scmp.eq.s32.totalorder %s18, 1
      %p41 = por %p39, %p40
      %p43 = scmp.ne.s32.totalorder %s26, %s42
      %p44 = scmp.eq.s32.totalorder %s18, 0
      %p45 = por %p43, %p44
      %s46 = ssub.s32 %s12, %s19
      %p47 = scmp.eq.s32.totalorder %s46, 0
      %s49 = sadd.s32 %s48, 1
      %s50 = scalar_select %p47, %s48, %s49
      %p53 = pneg %p47
      %p54 = scmp.eq.s32.totalorder %s12, 1
      %p55 = por %p53, %p54
      %p56 = scmp.ne.s32.totalorder %s48, %s51
      %p57 = scmp.eq.s32.totalorder %s12, 0
      %p58 = por %p56, %p57
      %p59 = scmp.ne.s32.totalorder %s48, %s51
      %p60 = scmp.eq.s32.totalorder %s17, 1
      %p61 = por %p59, %p60
      %p62 = scmp.ne.s32.totalorder %s51, %s52
      %p63 = scmp.eq.s32.totalorder %s17, 0
      %p64 = por %p62, %p63
      %p65 = scmp.ne.s32.totalorder %s51, %s52
      %p66 = scmp.eq.s32.totalorder %s18, 1
      %p67 = por %p65, %p66
      %p69 = scmp.ne.s32.totalorder %s52, %s68
      %p70 = scmp.eq.s32.totalorder %s18, 0
      %p71 = por %p69, %p70
      %s73 = sadd.s32 %s72, 1
      %p76 = scmp.eq.s32.totalorder %s12, 1
      %p77 = scmp.ne.s32.totalorder %s72, %s74
      %p78 = scmp.eq.s32.totalorder %s12, 0
      %p79 = por %p77, %p78
      %p80 = scmp.ne.s32.totalorder %s72, %s74
      %p81 = scmp.eq.s32.totalorder %s17, 1
      %p82 = por %p80, %p81
      %p83 = scmp.ne.s32.totalorder %s74, %s75
      %p84 = scmp.eq.s32.totalorder %s17, 0
      %p85 = por %p83, %p84
      %p86 = scmp.ne.s32.totalorder %s74, %s75
      %p87 = scmp.eq.s32.totalorder %s18, 1
      %p88 = por %p86, %p87
      %p90 = scmp.ne.s32.totalorder %s75, %s89
      %p91 = scmp.eq.s32.totalorder %s18, 0
      %p92 = por %p90, %p91
      %s93 = ssub.s32 %s12, %s19
      %p94 = scmp.eq.s32.totalorder %s93, 0
      %s96 = sadd.s32 %s95, 1
      %s97 = scalar_select %p94, %s95, %s96
      %p100 = pneg %p94
      %p101 = scmp.eq.s32.totalorder %s12, 1
      %p102 = por %p100, %p101
      %p103 = scmp.ne.s32.totalorder %s95, %s98
      %p104 = scmp.eq.s32.totalorder %s12, 0
      %p105 = por %p103, %p104
      %p106 = scmp.ne.s32.totalorder %s95, %s98
      %p107 = scmp.eq.s32.totalorder %s17, 1
      %p108 = por %p106, %p107
      %p109 = scmp.ne.s32.totalorder %s98, %s99
      %p110 = scmp.eq.s32.totalorder %s17, 0
      %p111 = por %p109, %p110
      %p112 = scmp.ne.s32.totalorder %s98, %s99
      %p113 = scmp.eq.s32.totalorder %s18, 1
      %p114 = por %p112, %p113
      %p116 = scmp.ne.s32.totalorder %s99, %s115
      %p117 = scmp.eq.s32.totalorder %s18, 0
      %p118 = por %p116, %p117
      %p119 = scmp.le.s32.totalorder 1, %s12
      %p120 = scmp.lt.s32.totalorder %s12, 3
      %p121 = pnand %p119, %p120
      %p122 = pneg %p121
      // Predicated region
      $region9: #{tpu_custom_call.1} parent=5 // pred_check
        _
      $region10: #{tpu_custom_call.1} parent=5 // pred_check_branch
        %124 = sbr.rel (%p121) target = $region12
      $region11: #{tpu_custom_call.1} parent=5 // pred_region
        %s125 = ssub.s32 %s12, 1
        // Predicated region
        $region13: #{tpu_custom_call.1} parent=11 // pred_check
          %p126 = pneg %p85
        $region14: #{tpu_custom_call.1} parent=11 // pred_check_branch
          %128 = sbr.rel (%p126) target = $region16
        $region15: #{tpu_custom_call.1} parent=11 // pred_region
          _
        $region16: #{tpu_custom_call.1} parent=11 // pred_fallthru
          _
      $region12: #{tpu_custom_call.1} parent=5 // pred_fallthru
        _
      %p129 = scmp.lt.s32.totalorder %s12, 2
      // Predicated region
      $region17: #{tpu_custom_call.1} parent=5 // pred_check
        %p130 = pneg %p129
      $region18: #{tpu_custom_call.1} parent=5 // pred_check_branch
        %132 = sbr.rel (%p130) target = $region20
      $region19: #{tpu_custom_call.1} parent=5 // pred_region
        // Predicated region
        $region21: #{tpu_custom_call.1} parent=19 // pred_check
          %p133 = pneg %p32
        $region22: #{tpu_custom_call.1} parent=19 // pred_check_branch
          %135 = sbr.rel (%p133) target = $region24
        $region23: #{tpu_custom_call.1} parent=19 // pred_region
          %s136 = smul.u32 8, %s12
          %p137 = scmp.lt.s32.totalorder %s136, 15
          %s138 = scalar_select %p137, %s136, 15
          %s139 = smul.addr %s138, 8
          %s140 = scalar_lea.vmem %s0, %s139
          %s141 = smul.u32 8, %s12
        $region24: #{tpu_custom_call.1} parent=19 // pred_fallthru
          _
        // Predicated region
        $region25: #{tpu_custom_call.1} parent=19 // pred_check
          %p142 = pneg %p58
        $region26: #{tpu_custom_call.1} parent=19 // pred_check_branch
          %144 = sbr.rel (%p142) target = $region28
        $region27: #{tpu_custom_call.1} parent=19 // pred_region
          %s145 = sand.u32 %s48, 1
          %s146 = scalar_lea.sflag [#allocation3], %s145
          %s147 = sand.u32 %s48, 1
          %s148 = smul.addr %s147, 64
          %s149 = scalar_lea.vmem [#allocation2], %s148
          %s150 = smul.u32 8, %s12
          %s152 = ssub.s32 1024, 1024
          %153 = vsyncadd %s146, %s152
          %s154 = smul.addr %s150, 128
          %s155 = scalar_lea.hbm %s1, %s154
          %s156 = sshll.u32 %s149, 4
          %s157 = int_to_ptr.vmem [resolvable:$true] %s156
          %162 = dma.hbm_to_vmem [thread:$0]  %s155, 1024, %s157, %s146, 128, 128, 8
        $region28: #{tpu_custom_call.1} parent=19 // pred_fallthru
          _
      $region20: #{tpu_custom_call.1} parent=5 // pred_fallthru
        _
      %p163 = scmp.le.s32.totalorder 1, %s12
      %p164 = scmp.lt.s32.totalorder %s12, 3
      %p165 = pnand %p163, %p164
      %p166 = pneg %p165
      // Predicated region
      $region29: #{tpu_custom_call.1} parent=5 // pred_check
        _
      $region30: #{tpu_custom_call.1} parent=5 // pred_check_branch
        %168 = sbr.rel (%p165) target = $region32
      $region31: #{tpu_custom_call.1} parent=5 // pred_region
        %s169 = ssub.s32 %s12, 1
        %s170 = sand.u32 %s51, 1
        %s171 = scalar_lea.sflag [#allocation3], %s170
        %s172 = sand.u32 %s51, 1
        %s173 = smul.addr %s172, 64
        %s174 = scalar_lea.vmem [#allocation2], %s173
        // Predicated region
        $region33: #{tpu_custom_call.1} parent=31 // pred_check
          %p175 = pneg %p64
        $region34: #{tpu_custom_call.1} parent=31 // pred_check_branch
          %177 = sbr.rel (%p175) target = $region36
        $region35: #{tpu_custom_call.1} parent=31 // pred_region
          %178 = dma.done %s171, 1024
        $region36: #{tpu_custom_call.1} parent=31 // pred_fallthru
          _
        %s179 = smul.u32 8, %s17
        %p180 = scmp.lt.s32.totalorder %s179, 15
        %s181 = scalar_select %p180, %s179, 15
        %s182 = smul.addr %s181, 8
        %s183 = scalar_lea.vmem %s0, %s182
        %p184 = pneg %p38
        %p185 = pneg %p35
        %s186 = sand.u32 %s51, 1
        %s187 = scalar_lea.sflag [#allocation3], %s186
        %s188 = sand.u32 %s51, 1
        %s189 = smul.addr %s188, 64
        %s190 = scalar_lea.vmem [#allocation2], %s189
        %p191 = pneg %p64
        %p192 = pneg %p61
        %p193 = pneg %p85
        %p194 = pneg %p82
        %p195 = pneg %p111
        %p196 = pneg %p108
        %s197 = smul.u32 8, %s17
        %p198 = scmp.lt.s32.totalorder %s197, 15
        %s199 = scalar_select %p198, %s197, 15
        %s200 = smul.addr %s199, 8
        %s201 = scalar_lea.vmem %s3, %s200
        %s202 = smul.u32 8, %s17
        %p203 = scmp.lt.s32.totalorder %s202, 15
        %s204 = scalar_select %p203, %s202, 15
        %s205 = smul.addr %s204, 8
        %s206 = scalar_lea.vmem %s0, %s205
        %s207 = smul.u32 8, %s17
        %s208 = smul.u32 8, %s17
        %s209 = smul.u32 8, %s17
        %p210 = scmp.lt.s32.totalorder %s209, 15
        %s211 = scalar_select %p210, %s209, 15
        %s212 = smul.addr %s211, 8
        %s213 = scalar_lea.vmem %s3, %s212
        %s214 = smul.u32 8, %s17
        %v215 = vld [vmem:[%s206] sm:$0xff]
        %v216 = vld [vmem:[%s206 + $0x8] sm:$0xff]
        %v217 = vld [vmem:[%s206 + $0x10] sm:$0xff]
        %v218 = vld [vmem:[%s206 + $0x18] sm:$0xff]
        %v219 = vld [vmem:[%s206 + $0x20] sm:$0xff]
        %v220 = vld [vmem:[%s206 + $0x28] sm:$0xff]
        %v221 = vld [vmem:[%s206 + $0x30] sm:$0xff]
        %v222 = vld [vmem:[%s206 + $0x38] sm:$0xff]
        %v223 = vld [vmem:[%s174] sm:$0xff]
        %v224 = vld [vmem:[%s174 + $0x8] sm:$0xff]
        %v225 = vld [vmem:[%s174 + $0x10] sm:$0xff]
        %v226 = vld [vmem:[%s174 + $0x18] sm:$0xff]
        %v227 = vld [vmem:[%s174 + $0x20] sm:$0xff]
        %v228 = vld [vmem:[%s174 + $0x28] sm:$0xff]
        %v229 = vld [vmem:[%s174 + $0x30] sm:$0xff]
        %v230 = vld [vmem:[%s174 + $0x38] sm:$0xff]
        %v231 = vld [vmem:[%s2] sm:$0xff]
        %v232 = vld [vmem:[%s2 + $0x8] sm:$0xff]
        %v233 = vld [vmem:[%s2 + $0x10] sm:$0xff]
        %v234 = vld [vmem:[%s2 + $0x18] sm:$0xff]
        %v235 = vld [vmem:[%s2 + $0x20] sm:$0xff]
        %v236 = vld [vmem:[%s2 + $0x28] sm:$0xff]
        %v237 = vld [vmem:[%s2 + $0x30] sm:$0xff]
        %v238 = vld [vmem:[%s2 + $0x38] sm:$0xff]
        %v239 = vld [vmem:[%s2 + $0x40] sm:$0xff]
        %v240 = vld [vmem:[%s2 + $0x48] sm:$0xff]
        %v241 = vld [vmem:[%s2 + $0x50] sm:$0xff]
        %v242 = vld [vmem:[%s2 + $0x58] sm:$0xff]
        %v243 = vld [vmem:[%s2 + $0x60] sm:$0xff]
        %v244 = vld [vmem:[%s2 + $0x68] sm:$0xff]
        %v245 = vld [vmem:[%s2 + $0x70] sm:$0xff]
        %v246 = vld [vmem:[%s2 + $0x78] sm:$0xff]
        %v247 = vmul.f32 %v215, %v223
        %v248 = vmul.f32 %v216, %v224
        %v249 = vmul.f32 %v217, %v225
        %v250 = vmul.f32 %v218, %v226
        %v251 = vmul.f32 %v219, %v227
        %v252 = vmul.f32 %v220, %v228
        %v253 = vmul.f32 %v221, %v229
        %v254 = vmul.f32 %v222, %v230
        %255 = vmatprep.subr.mxu0 0.0
        %v256 = vand.u32 %v231, 4294901760
        %257 = vmatpush1.msra.mxu0 %v256
        %258 = vmatprep.subr.mxu0 0.0
        %v259 = vand.u32 %v232, 4294901760
        %260 = vmatpush1.msra.mxu0 %v259
        %261 = vmatprep.subr.mxu0 0.0
        %v262 = vand.u32 %v233, 4294901760
        %263 = vmatpush1.msra.mxu0 %v262
        %264 = vmatprep.subr.mxu0 0.0
        %v265 = vand.u32 %v234, 4294901760
        %266 = vmatpush1.msra.mxu0 %v265
        %267 = vmatprep.subr.mxu0 0.0
        %v268 = vand.u32 %v235, 4294901760
        %269 = vmatpush1.msra.mxu0 %v268
        %270 = vmatprep.subr.mxu0 0.0
        %v271 = vand.u32 %v236, 4294901760
        %272 = vmatpush1.msra.mxu0 %v271
        %273 = vmatprep.subr.mxu0 0.0
        %v274 = vand.u32 %v237, 4294901760
        %275 = vmatpush1.msra.mxu0 %v274
        %276 = vmatprep.subr.mxu0 0.0
        %v277 = vand.u32 %v238, 4294901760
        %278 = vmatpush1.msra.mxu0 %v277
        %279 = vmatprep.subr.mxu0 0.0
        %v280 = vand.u32 %v239, 4294901760
        %281 = vmatpush1.msra.mxu0 %v280
        %282 = vmatprep.subr.mxu0 0.0
        %v283 = vand.u32 %v240, 4294901760
        %284 = vmatpush1.msra.mxu0 %v283
        %285 = vmatprep.subr.mxu0 0.0
        %v286 = vand.u32 %v241, 4294901760
        %287 = vmatpush1.msra.mxu0 %v286
        %288 = vmatprep.subr.mxu0 0.0
        %v289 = vand.u32 %v242, 4294901760
        %290 = vmatpush1.msra.mxu0 %v289
        %291 = vmatprep.subr.mxu0 0.0
        %v292 = vand.u32 %v243, 4294901760
        %293 = vmatpush1.msra.mxu0 %v292
        %294 = vmatprep.subr.mxu0 0.0
        %v295 = vand.u32 %v244, 4294901760
        %296 = vmatpush1.msra.mxu0 %v295
        %297 = vmatprep.subr.mxu0 0.0
        %v298 = vand.u32 %v245, 4294901760
        %299 = vmatpush1.msra.mxu0 %v298
        %300 = vmatprep.subr.mxu0 0.0
        %v301 = vand.u32 %v246, 4294901760
        %302 = vmatpush1.msra.mxu0 %v301
        %303 = vmatprep.subr.mxu0 0.0
        %304 = vmatpush1.msra.mxu0 0.0
        %305 = vmatprep.subr.mxu0 0.0
        %306 = vmatpush1.msra.mxu0 0.0
        %307 = vmatprep.subr.mxu0 0.0
        %308 = vmatpush1.msra.mxu0 0.0
        %309 = vmatprep.subr.mxu0 0.0
        %310 = vmatpush1.msra.mxu0 0.0
        %311 = vmatprep.subr.mxu0 0.0
        %312 = vmatpush1.msra.mxu0 0.0
        %313 = vmatprep.subr.mxu0 0.0
        %314 = vmatpush1.msra.mxu0 0.0
        %315 = vmatprep.subr.mxu0 0.0
        %316 = vmatpush1.msra.mxu0 0.0
        %317 = vmatprep.subr.mxu0 0.0
        %318 = vmatpush1.msra.mxu0 0.0
        %319 = vmatprep.subr.mxu0 0.0
        %320 = vmatpush1.msra.mxu0 0.0
        %321 = vmatprep.subr.mxu0 0.0
        %322 = vmatpush1.msra.mxu0 0.0
        %323 = vmatprep.subr.mxu0 0.0
        %324 = vmatpush1.msra.mxu0 0.0
        %325 = vmatprep.subr.mxu0 0.0
        %326 = vmatpush1.msra.mxu0 0.0
        %327 = vmatprep.subr.mxu0 0.0
        %328 = vmatpush1.msra.mxu0 0.0
        %329 = vmatprep.subr.mxu0 0.0
        %330 = vmatpush1.msra.mxu0 0.0
        %331 = vmatprep.subr.mxu0 0.0
        %332 = vmatpush1.msra.mxu0 0.0
        %333 = vmatprep.subr.mxu0 0.0
        %334 = vmatpush1.msra.mxu0 0.0
        %335 = vmatprep.mubr.f32.mxu0 0.0
        %v336 = vand.u32 %v247, 4294901760
        %v337 = vsub.f32 %v247, %v336
        %v338 = vand.u32 %v337, 4294901760
        %v339 = vsub.f32 %v337, %v338
        %v340 = vand.u32 %v339, 4294901760
        %341 = vmatmul.mubr.f32.gmra.mrb[0].mxu0 %v340
        %v342 = vpop.f32.mrb[0].mxu0
        %v343 = vadd.f32 0.0, %v342
        %v344 = vpop.f32.mrb[0].mxu0
        %345 = vmatprep.mubr.f32.mxu0 0.0
        %v346 = vand.u32 %v248, 4294901760
        %v347 = vsub.f32 %v248, %v346
        %v348 = vand.u32 %v347, 4294901760
        %v349 = vsub.f32 %v347, %v348
        %v350 = vand.u32 %v349, 4294901760
        %351 = vmatmul.mubr.f32.gmra.mrb[0].mxu0 %v350
        %v352 = vpop.f32.mrb[0].mxu0
        %v353 = vadd.f32 0.0, %v352
        %v354 = vpop.f32.mrb[0].mxu0
        %355 = vmatprep.mubr.f32.mxu0 0.0
        %v356 = vand.u32 %v249, 4294901760
        %v357 = vsub.f32 %v249, %v356
        %v358 = vand.u32 %v357, 4294901760
        %v359 = vsub.f32 %v357, %v358
        %v360 = vand.u32 %v359, 4294901760
        %361 = vmatmul.mubr.f32.gmra.mrb[0].mxu0 %v360
        %v362 = vpop.f32.mrb[0].mxu0
        %v363 = vadd.f32 0.0, %v362
        %v364 = vpop.f32.mrb[0].mxu0
        %365 = vmatprep.mubr.f32.mxu0 0.0
        %v366 = vand.u32 %v250, 4294901760
        %v367 = vsub.f32 %v250, %v366
        %v368 = vand.u32 %v367, 4294901760
        %v369 = vsub.f32 %v367, %v368
        %v370 = vand.u32 %v369, 4294901760
        %371 = vmatmul.mubr.f32.gmra.mrb[0].mxu0 %v370
        %v372 = vpop.f32.mrb[0].mxu0
        %v373 = vadd.f32 0.0, %v372
        %v374 = vpop.f32.mrb[0].mxu0
        %375 = vmatprep.mubr.f32.mxu0 0.0
        %v376 = vand.u32 %v251, 4294901760
        %v377 = vsub.f32 %v251, %v376
        %v378 = vand.u32 %v377, 4294901760
        %v379 = vsub.f32 %v377, %v378
        %v380 = vand.u32 %v379, 4294901760
        %381 = vmatmul.mubr.f32.gmra.mrb[0].mxu0 %v380
        %v382 = vpop.f32.mrb[0].mxu0
        %v383 = vadd.f32 0.0, %v382
        %v384 = vpop.f32.mrb[0].mxu0
        %385 = vmatprep.mubr.f32.mxu0 0.0
        %v386 = vand.u32 %v252, 4294901760
        %v387 = vsub.f32 %v252, %v386
        %v388 = vand.u32 %v387, 4294901760
        %v389 = vsub.f32 %v387, %v388
        %v390 = vand.u32 %v389, 4294901760
        %391 = vmatmul.mubr.f32.gmra.mrb[0].mxu0 %v390
        %v392 = vpop.f32.mrb[0].mxu0
        %v393 = vadd.f32 0.0, %v392
        %v394 = vpop.f32.mrb[0].mxu0
        %395 = vmatprep.mubr.f32.mxu0 0.0
        %v396 = vand.u32 %v253, 4294901760
        %v397 = vsub.f32 %v253, %v396
        %v398 = vand.u32 %v397, 4294901760
        %v399 = vsub.f32 %v397, %v398
        %v400 = vand.u32 %v399, 4294901760
        %401 = vmatmul.mubr.f32.gmra.mrb[0].mxu0 %v400
        %v402 = vpop.f32.mrb[0].mxu0
        %v403 = vadd.f32 0.0, %v402
        %v404 = vpop.f32.mrb[0].mxu0
        %405 = vmatprep.mubr.f32.mxu0 0.0
        %v406 = vand.u32 %v254, 4294901760
        %v407 = vsub.f32 %v254, %v406
        %v408 = vand.u32 %v407, 4294901760
        %v409 = vsub.f32 %v407, %v408
        %v410 = vand.u32 %v409, 4294901760
        %411 = vmatmul.mubr.f32.gmra.mrb[0].mxu0 %v410
        %v412 = vpop.f32.mrb[0].mxu0
        %v413 = vadd.f32 0.0, %v412
        %v414 = vpop.f32.mrb[0].mxu0
        %415 = vdwg.mxu0
        %416 = vmatprep.subr.mxu0 0.0
        %v417 = vand.u32 %v231, 4294901760
        %v418 = vsub.f32 %v231, %v417
        %v419 = vand.u32 %v418, 4294901760
        %v420 = vsub.f32 %v418, %v419
        %v421 = vand.u32 %v420, 4294901760
        %422 = vmatpush1.msra.mxu0 %v421
        %423 = vmatprep.subr.mxu0 0.0
        %v424 = vand.u32 %v232, 4294901760
        %v425 = vsub.f32 %v232, %v424
        %v426 = vand.u32 %v425, 4294901760
        %v427 = vsub.f32 %v425, %v426
        %v428 = vand.u32 %v427, 4294901760
        %429 = vmatpush1.msra.mxu0 %v428
        %430 = vmatprep.subr.mxu0 0.0
        %v431 = vand.u32 %v233, 4294901760
        %v432 = vsub.f32 %v233, %v431
        %v433 = vand.u32 %v432, 4294901760
        %v434 = vsub.f32 %v432, %v433
        %v435 = vand.u32 %v434, 4294901760
        %436 = vmatpush1.msra.mxu0 %v435
        %437 = vmatprep.subr.mxu0 0.0
        %v438 = vand.u32 %v234, 4294901760
        %v439 = vsub.f32 %v234, %v438
        %v440 = vand.u32 %v439, 4294901760
        %v441 = vsub.f32 %v439, %v440
        %v442 = vand.u32 %v441, 4294901760
        %443 = vmatpush1.msra.mxu0 %v442
        %444 = vmatprep.subr.mxu0 0.0
        %v445 = vand.u32 %v235, 4294901760
        %v446 = vsub.f32 %v235, %v445
        %v447 = vand.u32 %v446, 4294901760
        %v448 = vsub.f32 %v446, %v447
        %v449 = vand.u32 %v448, 4294901760
        %450 = vmatpush1.msra.mxu0 %v449
        %451 = vmatprep.subr.mxu0 0.0
        %v452 = vand.u32 %v236, 4294901760
        %v453 = vsub.f32 %v236, %v452
        %v454 = vand.u32 %v453, 4294901760
        %v455 = vsub.f32 %v453, %v454
        %v456 = vand.u32 %v455, 4294901760
        %457 = vmatpush1.msra.mxu0 %v456
        %458 = vmatprep.subr.mxu0 0.0
        %v459 = vand.u32 %v237, 4294901760
        %v460 = vsub.f32 %v237, %v459
        %v461 = vand.u32 %v460, 4294901760
        %v462 = vsub.f32 %v460, %v461
        %v463 = vand.u32 %v462, 4294901760
        %464 = vmatpush1.msra.mxu0 %v463
        %465 = vmatprep.subr.mxu0 0.0
        %v466 = vand.u32 %v238, 4294901760
        %v467 = vsub.f32 %v238, %v466
        %v468 = vand.u32 %v467, 4294901760
        %v469 = vsub.f32 %v467, %v468
        %v470 = vand.u32 %v469, 4294901760
        %471 = vmatpush1.msra.mxu0 %v470
        %472 = vmatprep.subr.mxu0 0.0
        %v473 = vand.u32 %v239, 4294901760
        %v474 = vsub.f32 %v239, %v473
        %v475 = vand.u32 %v474, 4294901760
        %v476 = vsub.f32 %v474, %v475
        %v477 = vand.u32 %v476, 4294901760
        %478 = vmatpush1.msra.mxu0 %v477
        %479 = vmatprep.subr.mxu0 0.0
        %v480 = vand.u32 %v240, 4294901760
        %v481 = vsub.f32 %v240, %v480
        %v482 = vand.u32 %v481, 4294901760
        %v483 = vsub.f32 %v481, %v482
        %v484 = vand.u32 %v483, 4294901760
        %485 = vmatpush1.msra.mxu0 %v484
        %486 = vmatprep.subr.mxu0 0.0
        %v487 = vand.u32 %v241, 4294901760
        %v488 = vsub.f32 %v241, %v487
        %v489 = vand.u32 %v488, 4294901760
        %v490 = vsub.f32 %v488, %v489
        %v491 = vand.u32 %v490, 4294901760
        %492 = vmatpush1.msra.mxu0 %v491
        %493 = vmatprep.subr.mxu0 0.0
        %v494 = vand.u32 %v242, 4294901760
        %v495 = vsub.f32 %v242, %v494
        %v496 = vand.u32 %v495, 4294901760
        %v497 = vsub.f32 %v495, %v496
        %v498 = vand.u32 %v497, 4294901760
        %499 = vmatpush1.msra.mxu0 %v498
        %500 = vmatprep.subr.mxu0 0.0
        %v501 = vand.u32 %v243, 4294901760
        %v502 = vsub.f32 %v243, %v501
        %v503 = vand.u32 %v502, 4294901760
        %v504 = vsub.f32 %v502, %v503
        %v505 = vand.u32 %v504, 4294901760
        %506 = vmatpush1.msra.mxu0 %v505
        %507 = vmatprep.subr.mxu0 0.0
        %v508 = vand.u32 %v244, 4294901760
        %v509 = vsub.f32 %v244, %v508
        %v510 = vand.u32 %v509, 4294901760
        %v511 = vsub.f32 %v509, %v510
        %v512 = vand.u32 %v511, 4294901760
        %513 = vmatpush1.msra.mxu0 %v512
        %514 = vmatprep.subr.mxu0 0.0
        %v515 = vand.u32 %v245, 4294901760
        %v516 = vsub.f32 %v245, %v515
        %v517 = vand.u32 %v516, 4294901760
        %v518 = vsub.f32 %v516, %v517
        %v519 = vand.u32 %v518, 4294901760
        %520 = vmatpush1.msra.mxu0 %v519
        %521 = vmatprep.subr.mxu0 0.0
        %v522 = vand.u32 %v246, 4294901760
        %v523 = vsub.f32 %v246, %v522
        %v524 = vand.u32 %v523, 4294901760
        %v525 = vsub.f32 %v523, %v524
        %v526 = vand.u32 %v525, 4294901760
        %527 = vmatpush1.msra.mxu0 %v526
        %528 = vmatprep.subr.mxu0 0.0
        %529 = vmatpush1.msra.mxu0 0.0
        %530 = vmatprep.subr.mxu0 0.0
        %531 = vmatpush1.msra.mxu0 0.0
        %532 = vmatprep.subr.mxu0 0.0
        %533 = vmatpush1.msra.mxu0 0.0
        %534 = vmatprep.subr.mxu0 0.0
        %535 = vmatpush1.msra.mxu0 0.0
        %536 = vmatprep.subr.mxu0 0.0
        %537 = vmatpush1.msra.mxu0 0.0
        %538 = vmatprep.subr.mxu0 0.0
        %539 = vmatpush1.msra.mxu0 0.0
        %540 = vmatprep.subr.mxu0 0.0
        %541 = vmatpush1.msra.mxu0 0.0
        %542 = vmatprep.subr.mxu0 0.0
        %543 = vmatpush1.msra.mxu0 0.0
        %544 = vmatprep.subr.mxu0 0.0
        %545 = vmatpush1.msra.mxu0 0.0
        %546 = vmatprep.subr.mxu0 0.0
        %547 = vmatpush1.msra.mxu0 0.0
        %548 = vmatprep.subr.mxu0 0.0
        %549 = vmatpush1.msra.mxu0 0.0
        %550 = vmatprep.subr.mxu0 0.0
        %551 = vmatpush1.msra.mxu0 0.0
        %552 = vmatprep.subr.mxu0 0.0
        %553 = vmatpush1.msra.mxu0 0.0
        %554 = vmatprep.subr.mxu0 0.0
        %555 = vmatpush1.msra.mxu0 0.0
        %556 = vmatprep.subr.mxu0 0.0
        %557 = vmatpush1.msra.mxu0 0.0
        %558 = vmatprep.subr.mxu0 0.0
        %559 = vmatpush1.msra.mxu0 0.0
        %560 = vmatprep.mubr.f32.mxu0 0.0
        %v561 = vand.u32 %v247, 4294901760
        %562 = vmatmul.mubr.f32.gmra.mrb[0].mxu0 %v561
        %v563 = vpop.f32.mrb[0].mxu0
        %v564 = vadd.f32 %v343, %v563
        %v565 = vpop.f32.mrb[0].mxu0
        %566 = vmatprep.mubr.f32.mxu0 0.0
        %v567 = vand.u32 %v248, 4294901760
        %568 = vmatmul.mubr.f32.gmra.mrb[0].mxu0 %v567
        %v569 = vpop.f32.mrb[0].mxu0
        %v570 = vadd.f32 %v353, %v569
        %v571 = vpop.f32.mrb[0].mxu0
        %572 = vmatprep.mubr.f32.mxu0 0.0
        %v573 = vand.u32 %v249, 4294901760
        %574 = vmatmul.mubr.f32.gmra.mrb[0].mxu0 %v573
        %v575 = vpop.f32.mrb[0].mxu0
        %v576 = vadd.f32 %v363, %v575
        %v577 = vpop.f32.mrb[0].mxu0
        %578 = vmatprep.mubr.f32.mxu0 0.0
        %v579 = vand.u32 %v250, 4294901760
        %580 = vmatmul.mubr.f32.gmra.mrb[0].mxu0 %v579
        %v581 = vpop.f32.mrb[0].mxu0
        %v582 = vadd.f32 %v373, %v581
        %v583 = vpop.f32.mrb[0].mxu0
        %584 = vmatprep.mubr.f32.mxu0 0.0
        %v585 = vand.u32 %v251, 4294901760
        %586 = vmatmul.mubr.f32.gmra.mrb[0].mxu0 %v585
        %v587 = vpop.f32.mrb[0].mxu0
        %v588 = vadd.f32 %v383, %v587
        %v589 = vpop.f32.mrb[0].mxu0
        %590 = vmatprep.mubr.f32.mxu0 0.0
        %v591 = vand.u32 %v252, 4294901760
        %592 = vmatmul.mubr.f32.gmra.mrb[0].mxu0 %v591
        %v593 = vpop.f32.mrb[0].mxu0
        %v594 = vadd.f32 %v393, %v593
        %v595 = vpop.f32.mrb[0].mxu0
        %596 = vmatprep.mubr.f32.mxu0 0.0
        %v597 = vand.u32 %v253, 4294901760
        %598 = vmatmul.mubr.f32.gmra.mrb[0].mxu0 %v597
        %v599 = vpop.f32.mrb[0].mxu0
        %v600 = vadd.f32 %v403, %v599
        %v601 = vpop.f32.mrb[0].mxu0
        %602 = vmatprep.mubr.f32.mxu0 0.0
        %v603 = vand.u32 %v254, 4294901760
        %604 = vmatmul.mubr.f32.gmra.mrb[0].mxu0 %v603
        %v605 = vpop.f32.mrb[0].mxu0
        %v606 = vadd.f32 %v413, %v605
        %v607 = vpop.f32.mrb[0].mxu0
        %608 = vdwg.mxu0
        %609 = vmatprep.subr.mxu0 0.0
        %v610 = vand.u32 %v231, 4294901760
        %v611 = vsub.f32 %v231, %v610
        %612 = vmatpush1.msra.mxu0 %v611
        %613 = vmatprep.subr.mxu0 0.0
        %v614 = vand.u32 %v232, 4294901760
        %v615 = vsub.f32 %v232, %v614
        %616 = vmatpush1.msra.mxu0 %v615
        %617 = vmatprep.subr.mxu0 0.0
        %v618 = vand.u32 %v233, 4294901760
        %v619 = vsub.f32 %v233, %v618
        %620 = vmatpush1.msra.mxu0 %v619
        %621 = vmatprep.subr.mxu0 0.0
        %v622 = vand.u32 %v234, 4294901760
        %v623 = vsub.f32 %v234, %v622
        %624 = vmatpush1.msra.mxu0 %v623
        %625 = vmatprep.subr.mxu0 0.0
        %v626 = vand.u32 %v235, 4294901760
        %v627 = vsub.f32 %v235, %v626
        %628 = vmatpush1.msra.mxu0 %v627
        %629 = vmatprep.subr.mxu0 0.0
        %v630 = vand.u32 %v236, 4294901760
        %v631 = vsub.f32 %v236, %v630
        %632 = vmatpush1.msra.mxu0 %v631
        %633 = vmatprep.subr.mxu0 0.0
        %v634 = vand.u32 %v237, 4294901760
        %v635 = vsub.f32 %v237, %v634
        %636 = vmatpush1.msra.mxu0 %v635
        %637 = vmatprep.subr.mxu0 0.0
        %v638 = vand.u32 %v238, 4294901760
        %v639 = vsub.f32 %v238, %v638
        %640 = vmatpush1.msra.mxu0 %v639
        %641 = vmatprep.subr.mxu0 0.0
        %v642 = vand.u32 %v239, 4294901760
        %v643 = vsub.f32 %v239, %v642
        %644 = vmatpush1.msra.mxu0 %v643
        %645 = vmatprep.subr.mxu0 0.0
        %v646 = vand.u32 %v240, 4294901760
        %v647 = vsub.f32 %v240, %v646
        %648 = vmatpush1.msra.mxu0 %v647
        %649 = vmatprep.subr.mxu0 0.0
        %v650 = vand.u32 %v241, 4294901760
        %v651 = vsub.f32 %v241, %v650
        %652 = vmatpush1.msra.mxu0 %v651
        %653 = vmatprep.subr.mxu0 0.0
        %v654 = vand.u32 %v242, 4294901760
        %v655 = vsub.f32 %v242, %v654
        %656 = vmatpush1.msra.mxu0 %v655
        %657 = vmatprep.subr.mxu0 0.0
        %v658 = vand.u32 %v243, 4294901760
        %v659 = vsub.f32 %v243, %v658
        %660 = vmatpush1.msra.mxu0 %v659
        %661 = vmatprep.subr.mxu0 0.0
        %v662 = vand.u32 %v244, 4294901760
        %v663 = vsub.f32 %v244, %v662
        %664 = vmatpush1.msra.mxu0 %v663
        %665 = vmatprep.subr.mxu0 0.0
        %v666 = vand.u32 %v245, 4294901760
        %v667 = vsub.f32 %v245, %v666
        %668 = vmatpush1.msra.mxu0 %v667
        %669 = vmatprep.subr.mxu0 0.0
        %v670 = vand.u32 %v246, 4294901760
        %v671 = vsub.f32 %v246, %v670
        %672 = vmatpush1.msra.mxu0 %v671
        %673 = vmatprep.subr.mxu0 0.0
        %674 = vmatpush1.msra.mxu0 0.0
        %675 = vmatprep.subr.mxu0 0.0
        %676 = vmatpush1.msra.mxu0 0.0
        %677 = vmatprep.subr.mxu0 0.0
        %678 = vmatpush1.msra.mxu0 0.0
        %679 = vmatprep.subr.mxu0 0.0
        %680 = vmatpush1.msra.mxu0 0.0
        %681 = vmatprep.subr.mxu0 0.0
        %682 = vmatpush1.msra.mxu0 0.0
        %683 = vmatprep.subr.mxu0 0.0
        %684 = vmatpush1.msra.mxu0 0.0
        %685 = vmatprep.subr.mxu0 0.0
        %686 = vmatpush1.msra.mxu0 0.0
        %687 = vmatprep.subr.mxu0 0.0
        %688 = vmatpush1.msra.mxu0 0.0
        %689 = vmatprep.subr.mxu0 0.0
        %690 = vmatpush1.msra.mxu0 0.0
        %691 = vmatprep.subr.mxu0 0.0
        %692 = vmatpush1.msra.mxu0 0.0
        %693 = vmatprep.subr.mxu0 0.0
        %694 = vmatpush1.msra.mxu0 0.0
        %695 = vmatprep.subr.mxu0 0.0
        %696 = vmatpush1.msra.mxu0 0.0
        %697 = vmatprep.subr.mxu0 0.0
        %698 = vmatpush1.msra.mxu0 0.0
        %699 = vmatprep.subr.mxu0 0.0
        %700 = vmatpush1.msra.mxu0 0.0
        %701 = vmatprep.subr.mxu0 0.0
        %702 = vmatpush1.msra.mxu0 0.0
        %703 = vmatprep.subr.mxu0 0.0
        %704 = vmatpush1.msra.mxu0 0.0
        %705 = vmatprep.mubr.f32.mxu0 0.0
        %v706 = vand.u32 %v247, 4294901760
        %v707 = vsub.f32 %v247, %v706
        %708 = vmatmul.mubr.f32.gmra.mrb[0].mxu0 %v707
        %v709 = vpop.f32.mrb[0].mxu0
        %v710 = vadd.f32 %v564, %v709
        %v711 = vpop.f32.mrb[0].mxu0
        %712 = vmatprep.mubr.f32.mxu0 0.0
        %v713 = vand.u32 %v248, 4294901760
        %v714 = vsub.f32 %v248, %v713
        %715 = vmatmul.mubr.f32.gmra.mrb[0].mxu0 %v714
        %v716 = vpop.f32.mrb[0].mxu0
        %v717 = vadd.f32 %v570, %v716
        %v718 = vpop.f32.mrb[0].mxu0
        %719 = vmatprep.mubr.f32.mxu0 0.0
        %v720 = vand.u32 %v249, 4294901760
        %v721 = vsub.f32 %v249, %v720
        %722 = vmatmul.mubr.f32.gmra.mrb[0].mxu0 %v721
        %v723 = vpop.f32.mrb[0].mxu0
        %v724 = vadd.f32 %v576, %v723
        %v725 = vpop.f32.mrb[0].mxu0
        %726 = vmatprep.mubr.f32.mxu0 0.0
        %v727 = vand.u32 %v250, 4294901760
        %v728 = vsub.f32 %v250, %v727
        %729 = vmatmul.mubr.f32.gmra.mrb[0].mxu0 %v728
        %v730 = vpop.f32.mrb[0].mxu0
        %v731 = vadd.f32 %v582, %v730
        %v732 = vpop.f32.mrb[0].mxu0
        %733 = vmatprep.mubr.f32.mxu0 0.0
        %v734 = vand.u32 %v251, 4294901760
        %v735 = vsub.f32 %v251, %v734
        %736 = vmatmul.mubr.f32.gmra.mrb[0].mxu0 %v735
        %v737 = vpop.f32.mrb[0].mxu0
        %v738 = vadd.f32 %v588, %v737
        %v739 = vpop.f32.mrb[0].mxu0
        %740 = vmatprep.mubr.f32.mxu0 0.0
        %v741 = vand.u32 %v252, 4294901760
        %v742 = vsub.f32 %v252, %v741
        %743 = vmatmul.mubr.f32.gmra.mrb[0].mxu0 %v742
        %v744 = vpop.f32.mrb[0].mxu0
        %v745 = vadd.f32 %v594, %v744
        %v746 = vpop.f32.mrb[0].mxu0
        %747 = vmatprep.mubr.f32.mxu0 0.0
        %v748 = vand.u32 %v253, 4294901760
        %v749 = vsub.f32 %v253, %v748
        %750 = vmatmul.mubr.f32.gmra.mrb[0].mxu0 %v749
        %v751 = vpop.f32.mrb[0].mxu0
        %v752 = vadd.f32 %v600, %v751
        %v753 = vpop.f32.mrb[0].mxu0
        %754 = vmatprep.mubr.f32.mxu0 0.0
        %v755 = vand.u32 %v254, 4294901760
        %v756 = vsub.f32 %v254, %v755
        %757 = vmatmul.mubr.f32.gmra.mrb[0].mxu0 %v756
        %v758 = vpop.f32.mrb[0].mxu0
        %v759 = vadd.f32 %v606, %v758
        %v760 = vpop.f32.mrb[0].mxu0
        %761 = vdwg.mxu0
        %762 = vmatprep.subr.mxu0 0.0
        %v763 = vand.u32 %v231, 4294901760
        %764 = vmatpush1.msra.mxu0 %v763
        %765 = vmatprep.subr.mxu0 0.0
        %v766 = vand.u32 %v232, 4294901760
        %767 = vmatpush1.msra.mxu0 %v766
        %768 = vmatprep.subr.mxu0 0.0
        %v769 = vand.u32 %v233, 4294901760
        %770 = vmatpush1.msra.mxu0 %v769
        %771 = vmatprep.subr.mxu0 0.0
        %v772 = vand.u32 %v234, 4294901760
        %773 = vmatpush1.msra.mxu0 %v772
        %774 = vmatprep.subr.mxu0 0.0
        %v775 = vand.u32 %v235, 4294901760
        %776 = vmatpush1.msra.mxu0 %v775
        %777 = vmatprep.subr.mxu0 0.0
        %v778 = vand.u32 %v236, 4294901760
        %779 = vmatpush1.msra.mxu0 %v778
        %780 = vmatprep.subr.mxu0 0.0
        %v781 = vand.u32 %v237, 4294901760
        %782 = vmatpush1.msra.mxu0 %v781
        %783 = vmatprep.subr.mxu0 0.0
        %v784 = vand.u32 %v238, 4294901760
        %785 = vmatpush1.msra.mxu0 %v784
        %786 = vmatprep.subr.mxu0 0.0
        %v787 = vand.u32 %v239, 4294901760
        %788 = vmatpush1.msra.mxu0 %v787
        %789 = vmatprep.subr.mxu0 0.0
        %v790 = vand.u32 %v240, 4294901760
        %791 = vmatpush1.msra.mxu0 %v790
        %792 = vmatprep.subr.mxu0 0.0
        %v793 = vand.u32 %v241, 4294901760
        %794 = vmatpush1.msra.mxu0 %v793
        %795 = vmatprep.subr.mxu0 0.0
        %v796 = vand.u32 %v242, 4294901760
        %797 = vmatpush1.msra.mxu0 %v796
        %798 = vmatprep.subr.mxu0 0.0
        %v799 = vand.u32 %v243, 4294901760
        %800 = vmatpush1.msra.mxu0 %v799
        %801 = vmatprep.subr.mxu0 0.0
        %v802 = vand.u32 %v244, 4294901760
        %803 = vmatpush1.msra.mxu0 %v802
        %804 = vmatprep.subr.mxu0 0.0
        %v805 = vand.u32 %v245, 4294901760
        %806 = vmatpush1.msra.mxu0 %v805
        %807 = vmatprep.subr.mxu0 0.0
        %v808 = vand.u32 %v246, 4294901760
        %809 = vmatpush1.msra.mxu0 %v808
        %810 = vmatprep.subr.mxu0 0.0
        %811 = vmatpush1.msra.mxu0 0.0
        %812 = vmatprep.subr.mxu0 0.0
        %813 = vmatpush1.msra.mxu0 0.0
        %814 = vmatprep.subr.mxu0 0.0
        %815 = vmatpush1.msra.mxu0 0.0
        %816 = vmatprep.subr.mxu0 0.0
        %817 = vmatpush1.msra.mxu0 0.0
        %818 = vmatprep.subr.mxu0 0.0
        %819 = vmatpush1.msra.mxu0 0.0
        %820 = vmatprep.subr.mxu0 0.0
        %821 = vmatpush1.msra.mxu0 0.0
        %822 = vmatprep.subr.mxu0 0.0
        %823 = vmatpush1.msra.mxu0 0.0
        %824 = vmatprep.subr.mxu0 0.0
        %825 = vmatpush1.msra.mxu0 0.0
        %826 = vmatprep.subr.mxu0 0.0
        %827 = vmatpush1.msra.mxu0 0.0
        %828 = vmatprep.subr.mxu0 0.0
        %829 = vmatpush1.msra.mxu0 0.0
        %830 = vmatprep.subr.mxu0 0.0
        %831 = vmatpush1.msra.mxu0 0.0
        %832 = vmatprep.subr.mxu0 0.0
        %833 = vmatpush1.msra.mxu0 0.0
        %834 = vmatprep.subr.mxu0 0.0
        %835 = vmatpush1.msra.mxu0 0.0
        %836 = vmatprep.subr.mxu0 0.0
        %837 = vmatpush1.msra.mxu0 0.0
        %838 = vmatprep.subr.mxu0 0.0
        %839 = vmatpush1.msra.mxu0 0.0
        %840 = vmatprep.subr.mxu0 0.0
        %841 = vmatpush1.msra.mxu0 0.0
        %842 = vmatprep.mubr.f32.mxu0 0.0
        %v843 = vand.u32 %v247, 4294901760
        %v844 = vsub.f32 %v247, %v843
        %v845 = vand.u32 %v844, 4294901760
        %846 = vmatmul.mubr.f32.gmra.mrb[0].mxu0 %v845
        %v847 = vpop.f32.mrb[0].mxu0
        %v848 = vadd.f32 %v710, %v847
        %v849 = vpop.f32.mrb[0].mxu0
        %850 = vmatprep.mubr.f32.mxu0 0.0
        %v851 = vand.u32 %v248, 4294901760
        %v852 = vsub.f32 %v248, %v851
        %v853 = vand.u32 %v852, 4294901760
        %854 = vmatmul.mubr.f32.gmra.mrb[0].mxu0 %v853
        %v855 = vpop.f32.mrb[0].mxu0
        %v856 = vadd.f32 %v717, %v855
        %v857 = vpop.f32.mrb[0].mxu0
        %858 = vmatprep.mubr.f32.mxu0 0.0
        %v859 = vand.u32 %v249, 4294901760
        %v860 = vsub.f32 %v249, %v859
        %v861 = vand.u32 %v860, 4294901760
        %862 = vmatmul.mubr.f32.gmra.mrb[0].mxu0 %v861
        %v863 = vpop.f32.mrb[0].mxu0
        %v864 = vadd.f32 %v724, %v863
        %v865 = vpop.f32.mrb[0].mxu0
        %866 = vmatprep.mubr.f32.mxu0 0.0
        %v867 = vand.u32 %v250, 4294901760
        %v868 = vsub.f32 %v250, %v867
        %v869 = vand.u32 %v868, 4294901760
        %870 = vmatmul.mubr.f32.gmra.mrb[0].mxu0 %v869
        %v871 = vpop.f32.mrb[0].mxu0
        %v872 = vadd.f32 %v731, %v871
        %v873 = vpop.f32.mrb[0].mxu0
        %874 = vmatprep.mubr.f32.mxu0 0.0
        %v875 = vand.u32 %v251, 4294901760
        %v876 = vsub.f32 %v251, %v875
        %v877 = vand.u32 %v876, 4294901760
        %878 = vmatmul.mubr.f32.gmra.mrb[0].mxu0 %v877
        %v879 = vpop.f32.mrb[0].mxu0
        %v880 = vadd.f32 %v738, %v879
        %v881 = vpop.f32.mrb[0].mxu0
        %882 = vmatprep.mubr.f32.mxu0 0.0
        %v883 = vand.u32 %v252, 4294901760
        %v884 = vsub.f32 %v252, %v883
        %v885 = vand.u32 %v884, 4294901760
        %886 = vmatmul.mubr.f32.gmra.mrb[0].mxu0 %v885
        %v887 = vpop.f32.mrb[0].mxu0
        %v888 = vadd.f32 %v745, %v887
        %v889 = vpop.f32.mrb[0].mxu0
        %890 = vmatprep.mubr.f32.mxu0 0.0
        %v891 = vand.u32 %v253, 4294901760
        %v892 = vsub.f32 %v253, %v891
        %v893 = vand.u32 %v892, 4294901760
        %894 = vmatmul.mubr.f32.gmra.mrb[0].mxu0 %v893
        %v895 = vpop.f32.mrb[0].mxu0
        %v896 = vadd.f32 %v752, %v895
        %v897 = vpop.f32.mrb[0].mxu0
        %898 = vmatprep.mubr.f32.mxu0 0.0
        %v899 = vand.u32 %v254, 4294901760
        %v900 = vsub.f32 %v254, %v899
        %v901 = vand.u32 %v900, 4294901760
        %902 = vmatmul.mubr.f32.gmra.mrb[0].mxu0 %v901
        %v903 = vpop.f32.mrb[0].mxu0
        %v904 = vadd.f32 %v759, %v903
        %v905 = vpop.f32.mrb[0].mxu0
        %906 = vdwg.mxu0
        %907 = vmatprep.subr.mxu0 0.0
        %v908 = vand.u32 %v231, 4294901760
        %v909 = vsub.f32 %v231, %v908
        %v910 = vand.u32 %v909, 4294901760
        %911 = vmatpush1.msra.mxu0 %v910
        %912 = vmatprep.subr.mxu0 0.0
        %v913 = vand.u32 %v232, 4294901760
        %v914 = vsub.f32 %v232, %v913
        %v915 = vand.u32 %v914, 4294901760
        %916 = vmatpush1.msra.mxu0 %v915
        %917 = vmatprep.subr.mxu0 0.0
        %v918 = vand.u32 %v233, 4294901760
        %v919 = vsub.f32 %v233, %v918
        %v920 = vand.u32 %v919, 4294901760
        %921 = vmatpush1.msra.mxu0 %v920
        %922 = vmatprep.subr.mxu0 0.0
        %v923 = vand.u32 %v234, 4294901760
        %v924 = vsub.f32 %v234, %v923
        %v925 = vand.u32 %v924, 4294901760
        %926 = vmatpush1.msra.mxu0 %v925
        %927 = vmatprep.subr.mxu0 0.0
        %v928 = vand.u32 %v235, 4294901760
        %v929 = vsub.f32 %v235, %v928
        %v930 = vand.u32 %v929, 4294901760
        %931 = vmatpush1.msra.mxu0 %v930
        %932 = vmatprep.subr.mxu0 0.0
        %v933 = vand.u32 %v236, 4294901760
        %v934 = vsub.f32 %v236, %v933
        %v935 = vand.u32 %v934, 4294901760
        %936 = vmatpush1.msra.mxu0 %v935
        %937 = vmatprep.subr.mxu0 0.0
        %v938 = vand.u32 %v237, 4294901760
        %v939 = vsub.f32 %v237, %v938
        %v940 = vand.u32 %v939, 4294901760
        %941 = vmatpush1.msra.mxu0 %v940
        %942 = vmatprep.subr.mxu0 0.0
        %v943 = vand.u32 %v238, 4294901760
        %v944 = vsub.f32 %v238, %v943
        %v945 = vand.u32 %v944, 4294901760
        %946 = vmatpush1.msra.mxu0 %v945
        %947 = vmatprep.subr.mxu0 0.0
        %v948 = vand.u32 %v239, 4294901760
        %v949 = vsub.f32 %v239, %v948
        %v950 = vand.u32 %v949, 4294901760
        %951 = vmatpush1.msra.mxu0 %v950
        %952 = vmatprep.subr.mxu0 0.0
        %v953 = vand.u32 %v240, 4294901760
        %v954 = vsub.f32 %v240, %v953
        %v955 = vand.u32 %v954, 4294901760
        %956 = vmatpush1.msra.mxu0 %v955
        %957 = vmatprep.subr.mxu0 0.0
        %v958 = vand.u32 %v241, 4294901760
        %v959 = vsub.f32 %v241, %v958
        %v960 = vand.u32 %v959, 4294901760
        %961 = vmatpush1.msra.mxu0 %v960
        %962 = vmatprep.subr.mxu0 0.0
        %v963 = vand.u32 %v242, 4294901760
        %v964 = vsub.f32 %v242, %v963
        %v965 = vand.u32 %v964, 4294901760
        %966 = vmatpush1.msra.mxu0 %v965
        %967 = vmatprep.subr.mxu0 0.0
        %v968 = vand.u32 %v243, 4294901760
        %v969 = vsub.f32 %v243, %v968
        %v970 = vand.u32 %v969, 4294901760
        %971 = vmatpush1.msra.mxu0 %v970
        %972 = vmatprep.subr.mxu0 0.0
        %v973 = vand.u32 %v244, 4294901760
        %v974 = vsub.f32 %v244, %v973
        %v975 = vand.u32 %v974, 4294901760
        %976 = vmatpush1.msra.mxu0 %v975
        %977 = vmatprep.subr.mxu0 0.0
        %v978 = vand.u32 %v245, 4294901760
        %v979 = vsub.f32 %v245, %v978
        %v980 = vand.u32 %v979, 4294901760
        %981 = vmatpush1.msra.mxu0 %v980
        %982 = vmatprep.subr.mxu0 0.0
        %v983 = vand.u32 %v246, 4294901760
        %v984 = vsub.f32 %v246, %v983
        %v985 = vand.u32 %v984, 4294901760
        %986 = vmatpush1.msra.mxu0 %v985
        %987 = vmatprep.subr.mxu0 0.0
        %988 = vmatpush1.msra.mxu0 0.0
        %989 = vmatprep.subr.mxu0 0.0
        %990 = vmatpush1.msra.mxu0 0.0
        %991 = vmatprep.subr.mxu0 0.0
        %992 = vmatpush1.msra.mxu0 0.0
        %993 = vmatprep.subr.mxu0 0.0
        %994 = vmatpush1.msra.mxu0 0.0
        %995 = vmatprep.subr.mxu0 0.0
        %996 = vmatpush1.msra.mxu0 0.0
        %997 = vmatprep.subr.mxu0 0.0
        %998 = vmatpush1.msra.mxu0 0.0
        %999 = vmatprep.subr.mxu0 0.0
        %1000 = vmatpush1.msra.mxu0 0.0
        %1001 = vmatprep.subr.mxu0 0.0
        %1002 = vmatpush1.msra.mxu0 0.0
        %1003 = vmatprep.subr.mxu0 0.0
        %1004 = vmatpush1.msra.mxu0 0.0
        %1005 = vmatprep.subr.mxu0 0.0
        %1006 = vmatpush1.msra.mxu0 0.0
        %1007 = vmatprep.subr.mxu0 0.0
        %1008 = vmatpush1.msra.mxu0 0.0
        %1009 = vmatprep.subr.mxu0 0.0
        %1010 = vmatpush1.msra.mxu0 0.0
        %1011 = vmatprep.subr.mxu0 0.0
        %1012 = vmatpush1.msra.mxu0 0.0
        %1013 = vmatprep.subr.mxu0 0.0
        %1014 = vmatpush1.msra.mxu0 0.0
        %1015 = vmatprep.subr.mxu0 0.0
        %1016 = vmatpush1.msra.mxu0 0.0
        %1017 = vmatprep.subr.mxu0 0.0
        %1018 = vmatpush1.msra.mxu0 0.0
        %1019 = vmatprep.mubr.f32.mxu0 0.0
        %v1020 = vand.u32 %v247, 4294901760
        %1021 = vmatmul.mubr.f32.gmra.mrb[0].mxu0 %v1020
        %v1022 = vpop.f32.mrb[0].mxu0
        %v1023 = vadd.f32 %v848, %v1022
        %v1024 = vpop.f32.mrb[0].mxu0
        %1025 = vmatprep.mubr.f32.mxu0 0.0
        %v1026 = vand.u32 %v248, 4294901760
        %1027 = vmatmul.mubr.f32.gmra.mrb[0].mxu0 %v1026
        %v1028 = vpop.f32.mrb[0].mxu0
        %v1029 = vadd.f32 %v856, %v1028
        %v1030 = vpop.f32.mrb[0].mxu0
        %1031 = vmatprep.mubr.f32.mxu0 0.0
        %v1032 = vand.u32 %v249, 4294901760
        %1033 = vmatmul.mubr.f32.gmra.mrb[0].mxu0 %v1032
        %v1034 = vpop.f32.mrb[0].mxu0
        %v1035 = vadd.f32 %v864, %v1034
        %v1036 = vpop.f32.mrb[0].mxu0
        %1037 = vmatprep.mubr.f32.mxu0 0.0
        %v1038 = vand.u32 %v250, 4294901760
        %1039 = vmatmul.mubr.f32.gmra.mrb[0].mxu0 %v1038
        %v1040 = vpop.f32.mrb[0].mxu0
        %v1041 = vadd.f32 %v872, %v1040
        %v1042 = vpop.f32.mrb[0].mxu0
        %1043 = vmatprep.mubr.f32.mxu0 0.0
        %v1044 = vand.u32 %v251, 4294901760
        %1045 = vmatmul.mubr.f32.gmra.mrb[0].mxu0 %v1044
        %v1046 = vpop.f32.mrb[0].mxu0
        %v1047 = vadd.f32 %v880, %v1046
        %v1048 = vpop.f32.mrb[0].mxu0
        %1049 = vmatprep.mubr.f32.mxu0 0.0
        %v1050 = vand.u32 %v252, 4294901760
        %1051 = vmatmul.mubr.f32.gmra.mrb[0].mxu0 %v1050
        %v1052 = vpop.f32.mrb[0].mxu0
        %v1053 = vadd.f32 %v888, %v1052
        %v1054 = vpop.f32.mrb[0].mxu0
        %1055 = vmatprep.mubr.f32.mxu0 0.0
        %v1056 = vand.u32 %v253, 4294901760
        %1057 = vmatmul.mubr.f32.gmra.mrb[0].mxu0 %v1056
        %v1058 = vpop.f32.mrb[0].mxu0
        %v1059 = vadd.f32 %v896, %v1058
        %v1060 = vpop.f32.mrb[0].mxu0
        %1061 = vmatprep.mubr.f32.mxu0 0.0
        %v1062 = vand.u32 %v254, 4294901760
        %1063 = vmatmul.mubr.f32.gmra.mrb[0].mxu0 %v1062
        %v1064 = vpop.f32.mrb[0].mxu0
        %v1065 = vadd.f32 %v904, %v1064
        %v1066 = vpop.f32.mrb[0].mxu0
        %1067 = vdwg.mxu0
        %1068 = vmatprep.subr.mxu0 0.0
        %v1069 = vand.u32 %v231, 4294901760
        %1070 = vmatpush1.msra.mxu0 %v1069
        %1071 = vmatprep.subr.mxu0 0.0
        %v1072 = vand.u32 %v232, 4294901760
        %1073 = vmatpush1.msra.mxu0 %v1072
        %1074 = vmatprep.subr.mxu0 0.0
        %v1075 = vand.u32 %v233, 4294901760
        %1076 = vmatpush1.msra.mxu0 %v1075
        %1077 = vmatprep.subr.mxu0 0.0
        %v1078 = vand.u32 %v234, 4294901760
        %1079 = vmatpush1.msra.mxu0 %v1078
        %1080 = vmatprep.subr.mxu0 0.0
        %v1081 = vand.u32 %v235, 4294901760
        %1082 = vmatpush1.msra.mxu0 %v1081
        %1083 = vmatprep.subr.mxu0 0.0
        %v1084 = vand.u32 %v236, 4294901760
        %1085 = vmatpush1.msra.mxu0 %v1084
        %1086 = vmatprep.subr.mxu0 0.0
        %v1087 = vand.u32 %v237, 4294901760
        %1088 = vmatpush1.msra.mxu0 %v1087
        %1089 = vmatprep.subr.mxu0 0.0
        %v1090 = vand.u32 %v238, 4294901760
        %1091 = vmatpush1.msra.mxu0 %v1090
        %1092 = vmatprep.subr.mxu0 0.0
        %v1093 = vand.u32 %v239, 4294901760
        %1094 = vmatpush1.msra.mxu0 %v1093
        %1095 = vmatprep.subr.mxu0 0.0
        %v1096 = vand.u32 %v240, 4294901760
        %1097 = vmatpush1.msra.mxu0 %v1096
        %1098 = vmatprep.subr.mxu0 0.0
        %v1099 = vand.u32 %v241, 4294901760
        %1100 = vmatpush1.msra.mxu0 %v1099
        %1101 = vmatprep.subr.mxu0 0.0
        %v1102 = vand.u32 %v242, 4294901760
        %1103 = vmatpush1.msra.mxu0 %v1102
        %1104 = vmatprep.subr.mxu0 0.0
        %v1105 = vand.u32 %v243, 4294901760
        %1106 = vmatpush1.msra.mxu0 %v1105
        %1107 = vmatprep.subr.mxu0 0.0
        %v1108 = vand.u32 %v244, 4294901760
        %1109 = vmatpush1.msra.mxu0 %v1108
        %1110 = vmatprep.subr.mxu0 0.0
        %v1111 = vand.u32 %v245, 4294901760
        %1112 = vmatpush1.msra.mxu0 %v1111
        %1113 = vmatprep.subr.mxu0 0.0
        %v1114 = vand.u32 %v246, 4294901760
        %1115 = vmatpush1.msra.mxu0 %v1114
        %1116 = vmatprep.subr.mxu0 0.0
        %1117 = vmatpush1.msra.mxu0 0.0
        %1118 = vmatprep.subr.mxu0 0.0
        %1119 = vmatpush1.msra.mxu0 0.0
        %1120 = vmatprep.subr.mxu0 0.0
        %1121 = vmatpush1.msra.mxu0 0.0
        %1122 = vmatprep.subr.mxu0 0.0
        %1123 = vmatpush1.msra.mxu0 0.0
        %1124 = vmatprep.subr.mxu0 0.0
        %1125 = vmatpush1.msra.mxu0 0.0
        %1126 = vmatprep.subr.mxu0 0.0
        %1127 = vmatpush1.msra.mxu0 0.0
        %1128 = vmatprep.subr.mxu0 0.0
        %1129 = vmatpush1.msra.mxu0 0.0
        %1130 = vmatprep.subr.mxu0 0.0
        %1131 = vmatpush1.msra.mxu0 0.0
        %1132 = vmatprep.subr.mxu0 0.0
        %1133 = vmatpush1.msra.mxu0 0.0
        %1134 = vmatprep.subr.mxu0 0.0
        %1135 = vmatpush1.msra.mxu0 0.0
        %1136 = vmatprep.subr.mxu0 0.0
        %1137 = vmatpush1.msra.mxu0 0.0
        %1138 = vmatprep.subr.mxu0 0.0
        %1139 = vmatpush1.msra.mxu0 0.0
        %1140 = vmatprep.subr.mxu0 0.0
        %1141 = vmatpush1.msra.mxu0 0.0
        %1142 = vmatprep.subr.mxu0 0.0
        %1143 = vmatpush1.msra.mxu0 0.0
        %1144 = vmatprep.subr.mxu0 0.0
        %1145 = vmatpush1.msra.mxu0 0.0
        %1146 = vmatprep.subr.mxu0 0.0
        %1147 = vmatpush1.msra.mxu0 0.0
        %1148 = vmatprep.mubr.f32.mxu0 0.0
        %v1149 = vand.u32 %v247, 4294901760
        %1150 = vmatmul.mubr.f32.gmra.mrb[0].mxu0 %v1149
        %v1151 = vpop.f32.mrb[0].mxu0
        %v1152 = vadd.f32 %v1023, %v1151
        %v1153 = vpop.f32.mrb[0].mxu0
        %1154 = vmatprep.mubr.f32.mxu0 0.0
        %v1155 = vand.u32 %v248, 4294901760
        %1156 = vmatmul.mubr.f32.gmra.mrb[0].mxu0 %v1155
        %v1157 = vpop.f32.mrb[0].mxu0
        %v1158 = vadd.f32 %v1029, %v1157
        %v1159 = vpop.f32.mrb[0].mxu0
        %1160 = vmatprep.mubr.f32.mxu0 0.0
        %v1161 = vand.u32 %v249, 4294901760
        %1162 = vmatmul.mubr.f32.gmra.mrb[0].mxu0 %v1161
        %v1163 = vpop.f32.mrb[0].mxu0
        %v1164 = vadd.f32 %v1035, %v1163
        %v1165 = vpop.f32.mrb[0].mxu0
        %1166 = vmatprep.mubr.f32.mxu0 0.0
        %v1167 = vand.u32 %v250, 4294901760
        %1168 = vmatmul.mubr.f32.gmra.mrb[0].mxu0 %v1167
        %v1169 = vpop.f32.mrb[0].mxu0
        %v1170 = vadd.f32 %v1041, %v1169
        %v1171 = vpop.f32.mrb[0].mxu0
        %1172 = vmatprep.mubr.f32.mxu0 0.0
        %v1173 = vand.u32 %v251, 4294901760
        %1174 = vmatmul.mubr.f32.gmra.mrb[0].mxu0 %v1173
        %v1175 = vpop.f32.mrb[0].mxu0
        %v1176 = vadd.f32 %v1047, %v1175
        %v1177 = vpop.f32.mrb[0].mxu0
        %1178 = vmatprep.mubr.f32.mxu0 0.0
        %v1179 = vand.u32 %v252, 4294901760
        %1180 = vmatmul.mubr.f32.gmra.mrb[0].mxu0 %v1179
        %v1181 = vpop.f32.mrb[0].mxu0
        %v1182 = vadd.f32 %v1053, %v1181
        %v1183 = vpop.f32.mrb[0].mxu0
        %1184 = vmatprep.mubr.f32.mxu0 0.0
        %v1185 = vand.u32 %v253, 4294901760
        %1186 = vmatmul.mubr.f32.gmra.mrb[0].mxu0 %v1185
        %v1187 = vpop.f32.mrb[0].mxu0
        %v1188 = vadd.f32 %v1059, %v1187
        %v1189 = vpop.f32.mrb[0].mxu0
        %1190 = vmatprep.mubr.f32.mxu0 0.0
        %v1191 = vand.u32 %v254, 4294901760
        %1192 = vmatmul.mubr.f32.gmra.mrb[0].mxu0 %v1191
        %v1193 = vpop.f32.mrb[0].mxu0
        %v1194 = vadd.f32 %v1065, %v1193
        %v1195 = vpop.f32.mrb[0].mxu0
        %1196 = vdwg.mxu0
        %v1197 = vmul.f32 %v215, %v215
        %v1198 = vmul.f32 %v216, %v216
        %v1199 = vmul.f32 %v217, %v217
        %v1200 = vmul.f32 %v218, %v218
        %v1201 = vmul.f32 %v219, %v219
        %v1202 = vmul.f32 %v220, %v220
        %v1203 = vmul.f32 %v221, %v221
        %v1204 = vmul.f32 %v222, %v222
        %1205 = vmatprep.subr.mxu0 0.0
        %v1206 = vand.u32 %v231, 4294901760
        %1207 = vmatpush1.msra.mxu0 %v1206
        %1208 = vmatprep.subr.mxu0 0.0
        %v1209 = vand.u32 %v232, 4294901760
        %1210 = vmatpush1.msra.mxu0 %v1209
        %1211 = vmatprep.subr.mxu0 0.0
        %v1212 = vand.u32 %v233, 4294901760
        %1213 = vmatpush1.msra.mxu0 %v1212
        %1214 = vmatprep.subr.mxu0 0.0
        %v1215 = vand.u32 %v234, 4294901760
        %1216 = vmatpush1.msra.mxu0 %v1215
        %1217 = vmatprep.subr.mxu0 0.0
        %v1218 = vand.u32 %v235, 4294901760
        %1219 = vmatpush1.msra.mxu0 %v1218
        %1220 = vmatprep.subr.mxu0 0.0
        %v1221 = vand.u32 %v236, 4294901760
        %1222 = vmatpush1.msra.mxu0 %v1221
        %1223 = vmatprep.subr.mxu0 0.0
        %v1224 = vand.u32 %v237, 4294901760
        %1225 = vmatpush1.msra.mxu0 %v1224
        %1226 = vmatprep.subr.mxu0 0.0
        %v1227 = vand.u32 %v238, 4294901760
        %1228 = vmatpush1.msra.mxu0 %v1227
        %1229 = vmatprep.subr.mxu0 0.0
        %v1230 = vand.u32 %v239, 4294901760
        %1231 = vmatpush1.msra.mxu0 %v1230
        %1232 = vmatprep.subr.mxu0 0.0
        %v1233 = vand.u32 %v240, 4294901760
        %1234 = vmatpush1.msra.mxu0 %v1233
        %1235 = vmatprep.subr.mxu0 0.0
        %v1236 = vand.u32 %v241, 4294901760
        %1237 = vmatpush1.msra.mxu0 %v1236
        %1238 = vmatprep.subr.mxu0 0.0
        %v1239 = vand.u32 %v242, 4294901760
        %1240 = vmatpush1.msra.mxu0 %v1239
        %1241 = vmatprep.subr.mxu0 0.0
        %v1242 = vand.u32 %v243, 4294901760
        %1243 = vmatpush1.msra.mxu0 %v1242
        %1244 = vmatprep.subr.mxu0 0.0
        %v1245 = vand.u32 %v244, 4294901760
        %1246 = vmatpush1.msra.mxu0 %v1245
        %1247 = vmatprep.subr.mxu0 0.0
        %v1248 = vand.u32 %v245, 4294901760
        %1249 = vmatpush1.msra.mxu0 %v1248
        %1250 = vmatprep.subr.mxu0 0.0
        %v1251 = vand.u32 %v246, 4294901760
        %1252 = vmatpush1.msra.mxu0 %v1251
        %1253 = vmatprep.subr.mxu0 0.0
        %1254 = vmatpush1.msra.mxu0 0.0
        %1255 = vmatprep.subr.mxu0 0.0
        %1256 = vmatpush1.msra.mxu0 0.0
        %1257 = vmatprep.subr.mxu0 0.0
        %1258 = vmatpush1.msra.mxu0 0.0
        %1259 = vmatprep.subr.mxu0 0.0
        %1260 = vmatpush1.msra.mxu0 0.0
        %1261 = vmatprep.subr.mxu0 0.0
        %1262 = vmatpush1.msra.mxu0 0.0
        %1263 = vmatprep.subr.mxu0 0.0
        %1264 = vmatpush1.msra.mxu0 0.0
        %1265 = vmatprep.subr.mxu0 0.0
        %1266 = vmatpush1.msra.mxu0 0.0
        %1267 = vmatprep.subr.mxu0 0.0
        %1268 = vmatpush1.msra.mxu0 0.0
        %1269 = vmatprep.subr.mxu0 0.0
        %1270 = vmatpush1.msra.mxu0 0.0
        %1271 = vmatprep.subr.mxu0 0.0
        %1272 = vmatpush1.msra.mxu0 0.0
        %1273 = vmatprep.subr.mxu0 0.0
        %1274 = vmatpush1.msra.mxu0 0.0
        %1275 = vmatprep.subr.mxu0 0.0
        %1276 = vmatpush1.msra.mxu0 0.0
        %1277 = vmatprep.subr.mxu0 0.0
        %1278 = vmatpush1.msra.mxu0 0.0
        %1279 = vmatprep.subr.mxu0 0.0
        %1280 = vmatpush1.msra.mxu0 0.0
        %1281 = vmatprep.subr.mxu0 0.0
        %1282 = vmatpush1.msra.mxu0 0.0
        %1283 = vmatprep.subr.mxu0 0.0
        %1284 = vmatpush1.msra.mxu0 0.0
        %1285 = vmatprep.mubr.f32.mxu0 0.0
        %v1286 = vand.u32 %v1197, 4294901760
        %v1287 = vsub.f32 %v1197, %v1286
        %v1288 = vand.u32 %v1287, 4294901760
        %v1289 = vsub.f32 %v1287, %v1288
        %v1290 = vand.u32 %v1289, 4294901760
        %1291 = vmatmul.mubr.f32.gmra.mrb[0].mxu0 %v1290
        %v1292 = vpop.f32.mrb[0].mxu0
        %v1293 = vadd.f32 0.0, %v1292
        %v1294 = vpop.f32.mrb[0].mxu0
        %1295 = vmatprep.mubr.f32.mxu0 0.0
        %v1296 = vand.u32 %v1198, 4294901760
        %v1297 = vsub.f32 %v1198, %v1296
        %v1298 = vand.u32 %v1297, 4294901760
        %v1299 = vsub.f32 %v1297, %v1298
        %v1300 = vand.u32 %v1299, 4294901760
        %1301 = vmatmul.mubr.f32.gmra.mrb[0].mxu0 %v1300
        %v1302 = vpop.f32.mrb[0].mxu0
        %v1303 = vadd.f32 0.0, %v1302
        %v1304 = vpop.f32.mrb[0].mxu0
        %1305 = vmatprep.mubr.f32.mxu0 0.0
        %v1306 = vand.u32 %v1199, 4294901760
        %v1307 = vsub.f32 %v1199, %v1306
        %v1308 = vand.u32 %v1307, 4294901760
        %v1309 = vsub.f32 %v1307, %v1308
        %v1310 = vand.u32 %v1309, 4294901760
        %1311 = vmatmul.mubr.f32.gmra.mrb[0].mxu0 %v1310
        %v1312 = vpop.f32.mrb[0].mxu0
        %v1313 = vadd.f32 0.0, %v1312
        %v1314 = vpop.f32.mrb[0].mxu0
        %1315 = vmatprep.mubr.f32.mxu0 0.0
        %v1316 = vand.u32 %v1200, 4294901760
        %v1317 = vsub.f32 %v1200, %v1316
        %v1318 = vand.u32 %v1317, 4294901760
        %v1319 = vsub.f32 %v1317, %v1318
        %v1320 = vand.u32 %v1319, 4294901760
        %1321 = vmatmul.mubr.f32.gmra.mrb[0].mxu0 %v1320
        %v1322 = vpop.f32.mrb[0].mxu0
        %v1323 = vadd.f32 0.0, %v1322
        %v1324 = vpop.f32.mrb[0].mxu0
        %1325 = vmatprep.mubr.f32.mxu0 0.0
        %v1326 = vand.u32 %v1201, 4294901760
        %v1327 = vsub.f32 %v1201, %v1326
        %v1328 = vand.u32 %v1327, 4294901760
        %v1329 = vsub.f32 %v1327, %v1328
        %v1330 = vand.u32 %v1329, 4294901760
        %1331 = vmatmul.mubr.f32.gmra.mrb[0].mxu0 %v1330
        %v1332 = vpop.f32.mrb[0].mxu0
        %v1333 = vadd.f32 0.0, %v1332
        %v1334 = vpop.f32.mrb[0].mxu0
        %1335 = vmatprep.mubr.f32.mxu0 0.0
        %v1336 = vand.u32 %v1202, 4294901760
        %v1337 = vsub.f32 %v1202, %v1336
        %v1338 = vand.u32 %v1337, 4294901760
        %v1339 = vsub.f32 %v1337, %v1338
        %v1340 = vand.u32 %v1339, 4294901760
        %1341 = vmatmul.mubr.f32.gmra.mrb[0].mxu0 %v1340
        %v1342 = vpop.f32.mrb[0].mxu0
        %v1343 = vadd.f32 0.0, %v1342
        %v1344 = vpop.f32.mrb[0].mxu0
        %1345 = vmatprep.mubr.f32.mxu0 0.0
        %v1346 = vand.u32 %v1203, 4294901760
        %v1347 = vsub.f32 %v1203, %v1346
        %v1348 = vand.u32 %v1347, 4294901760
        %v1349 = vsub.f32 %v1347, %v1348
        %v1350 = vand.u32 %v1349, 4294901760
        %1351 = vmatmul.mubr.f32.gmra.mrb[0].mxu0 %v1350
        %v1352 = vpop.f32.mrb[0].mxu0
        %v1353 = vadd.f32 0.0, %v1352
        %v1354 = vpop.f32.mrb[0].mxu0
        %1355 = vmatprep.mubr.f32.mxu0 0.0
        %v1356 = vand.u32 %v1204, 4294901760
        %v1357 = vsub.f32 %v1204, %v1356
        %v1358 = vand.u32 %v1357, 4294901760
        %v1359 = vsub.f32 %v1357, %v1358
        %v1360 = vand.u32 %v1359, 4294901760
        %1361 = vmatmul.mubr.f32.gmra.mrb[0].mxu0 %v1360
        %v1362 = vpop.f32.mrb[0].mxu0
        %v1363 = vadd.f32 0.0, %v1362
        %v1364 = vpop.f32.mrb[0].mxu0
        %1365 = vdwg.mxu0
        %1366 = vmatprep.subr.mxu0 0.0
        %v1367 = vand.u32 %v231, 4294901760
        %v1368 = vsub.f32 %v231, %v1367
        %v1369 = vand.u32 %v1368, 4294901760
        %v1370 = vsub.f32 %v1368, %v1369
        %v1371 = vand.u32 %v1370, 4294901760
        %1372 = vmatpush1.msra.mxu0 %v1371
        %1373 = vmatprep.subr.mxu0 0.0
        %v1374 = vand.u32 %v232, 4294901760
        %v1375 = vsub.f32 %v232, %v1374
        %v1376 = vand.u32 %v1375, 4294901760
        %v1377 = vsub.f32 %v1375, %v1376
        %v1378 = vand.u32 %v1377, 4294901760
        %1379 = vmatpush1.msra.mxu0 %v1378
        %1380 = vmatprep.subr.mxu0 0.0
        %v1381 = vand.u32 %v233, 4294901760
        %v1382 = vsub.f32 %v233, %v1381
        %v1383 = vand.u32 %v1382, 4294901760
        %v1384 = vsub.f32 %v1382, %v1383
        %v1385 = vand.u32 %v1384, 4294901760
        %1386 = vmatpush1.msra.mxu0 %v1385
        %1387 = vmatprep.subr.mxu0 0.0
        %v1388 = vand.u32 %v234, 4294901760
        %v1389 = vsub.f32 %v234, %v1388
        %v1390 = vand.u32 %v1389, 4294901760
        %v1391 = vsub.f32 %v1389, %v1390
        %v1392 = vand.u32 %v1391, 4294901760
        %1393 = vmatpush1.msra.mxu0 %v1392
        %1394 = vmatprep.subr.mxu0 0.0
        %v1395 = vand.u32 %v235, 4294901760
        %v1396 = vsub.f32 %v235, %v1395
        %v1397 = vand.u32 %v1396, 4294901760
        %v1398 = vsub.f32 %v1396, %v1397
        %v1399 = vand.u32 %v1398, 4294901760
        %1400 = vmatpush1.msra.mxu0 %v1399
        %1401 = vmatprep.subr.mxu0 0.0
        %v1402 = vand.u32 %v236, 4294901760
        %v1403 = vsub.f32 %v236, %v1402
        %v1404 = vand.u32 %v1403, 4294901760
        %v1405 = vsub.f32 %v1403, %v1404
        %v1406 = vand.u32 %v1405, 4294901760
        %1407 = vmatpush1.msra.mxu0 %v1406
        %1408 = vmatprep.subr.mxu0 0.0
        %v1409 = vand.u32 %v237, 4294901760
        %v1410 = vsub.f32 %v237, %v1409
        %v1411 = vand.u32 %v1410, 4294901760
        %v1412 = vsub.f32 %v1410, %v1411
        %v1413 = vand.u32 %v1412, 4294901760
        %1414 = vmatpush1.msra.mxu0 %v1413
        %1415 = vmatprep.subr.mxu0 0.0
        %v1416 = vand.u32 %v238, 4294901760
        %v1417 = vsub.f32 %v238, %v1416
        %v1418 = vand.u32 %v1417, 4294901760
        %v1419 = vsub.f32 %v1417, %v1418
        %v1420 = vand.u32 %v1419, 4294901760
        %1421 = vmatpush1.msra.mxu0 %v1420
        %1422 = vmatprep.subr.mxu0 0.0
        %v1423 = vand.u32 %v239, 4294901760
        %v1424 = vsub.f32 %v239, %v1423
        %v1425 = vand.u32 %v1424, 4294901760
        %v1426 = vsub.f32 %v1424, %v1425
        %v1427 = vand.u32 %v1426, 4294901760
        %1428 = vmatpush1.msra.mxu0 %v1427
        %1429 = vmatprep.subr.mxu0 0.0
        %v1430 = vand.u32 %v240, 4294901760
        %v1431 = vsub.f32 %v240, %v1430
        %v1432 = vand.u32 %v1431, 4294901760
        %v1433 = vsub.f32 %v1431, %v1432
        %v1434 = vand.u32 %v1433, 4294901760
        %1435 = vmatpush1.msra.mxu0 %v1434
        %1436 = vmatprep.subr.mxu0 0.0
        %v1437 = vand.u32 %v241, 4294901760
        %v1438 = vsub.f32 %v241, %v1437
        %v1439 = vand.u32 %v1438, 4294901760
        %v1440 = vsub.f32 %v1438, %v1439
        %v1441 = vand.u32 %v1440, 4294901760
        %1442 = vmatpush1.msra.mxu0 %v1441
        %1443 = vmatprep.subr.mxu0 0.0
        %v1444 = vand.u32 %v242, 4294901760
        %v1445 = vsub.f32 %v242, %v1444
        %v1446 = vand.u32 %v1445, 4294901760
        %v1447 = vsub.f32 %v1445, %v1446
        %v1448 = vand.u32 %v1447, 4294901760
        %1449 = vmatpush1.msra.mxu0 %v1448
        %1450 = vmatprep.subr.mxu0 0.0
        %v1451 = vand.u32 %v243, 4294901760
        %v1452 = vsub.f32 %v243, %v1451
        %v1453 = vand.u32 %v1452, 4294901760
        %v1454 = vsub.f32 %v1452, %v1453
        %v1455 = vand.u32 %v1454, 4294901760
        %1456 = vmatpush1.msra.mxu0 %v1455
        %1457 = vmatprep.subr.mxu0 0.0
        %v1458 = vand.u32 %v244, 4294901760
        %v1459 = vsub.f32 %v244, %v1458
        %v1460 = vand.u32 %v1459, 4294901760
        %v1461 = vsub.f32 %v1459, %v1460
        %v1462 = vand.u32 %v1461, 4294901760
        %1463 = vmatpush1.msra.mxu0 %v1462
        %1464 = vmatprep.subr.mxu0 0.0
        %v1465 = vand.u32 %v245, 4294901760
        %v1466 = vsub.f32 %v245, %v1465
        %v1467 = vand.u32 %v1466, 4294901760
        %v1468 = vsub.f32 %v1466, %v1467
        %v1469 = vand.u32 %v1468, 4294901760
        %1470 = vmatpush1.msra.mxu0 %v1469
        %1471 = vmatprep.subr.mxu0 0.0
        %v1472 = vand.u32 %v246, 4294901760
        %v1473 = vsub.f32 %v246, %v1472
        %v1474 = vand.u32 %v1473, 4294901760
        %v1475 = vsub.f32 %v1473, %v1474
        %v1476 = vand.u32 %v1475, 4294901760
        %1477 = vmatpush1.msra.mxu0 %v1476
        %1478 = vmatprep.subr.mxu0 0.0
        %1479 = vmatpush1.msra.mxu0 0.0
        %1480 = vmatprep.subr.mxu0 0.0
        %1481 = vmatpush1.msra.mxu0 0.0
        %1482 = vmatprep.subr.mxu0 0.0
        %1483 = vmatpush1.msra.mxu0 0.0
        %1484 = vmatprep.subr.mxu0 0.0
        %1485 = vmatpush1.msra.mxu0 0.0
        %1486 = vmatprep.subr.mxu0 0.0
        %1487 = vmatpush1.msra.mxu0 0.0
        %1488 = vmatprep.subr.mxu0 0.0
        %1489 = vmatpush1.msra.mxu0 0.0
        %1490 = vmatprep.subr.mxu0 0.0
        %1491 = vmatpush1.msra.mxu0 0.0
        %1492 = vmatprep.subr.mxu0 0.0
        %1493 = vmatpush1.msra.mxu0 0.0
        %1494 = vmatprep.subr.mxu0 0.0
        %1495 = vmatpush1.msra.mxu0 0.0
        %1496 = vmatprep.subr.mxu0 0.0
        %1497 = vmatpush1.msra.mxu0 0.0
        %1498 = vmatprep.subr.mxu0 0.0
        %1499 = vmatpush1.msra.mxu0 0.0
        %1500 = vmatprep.subr.mxu0 0.0
        %1501 = vmatpush1.msra.mxu0 0.0
        %1502 = vmatprep.subr.mxu0 0.0
        %1503 = vmatpush1.msra.mxu0 0.0
        %1504 = vmatprep.subr.mxu0 0.0
        %1505 = vmatpush1.msra.mxu0 0.0
        %1506 = vmatprep.subr.mxu0 0.0
        %1507 = vmatpush1.msra.mxu0 0.0
        %1508 = vmatprep.subr.mxu0 0.0
        %1509 = vmatpush1.msra.mxu0 0.0
        %1510 = vmatprep.mubr.f32.mxu0 0.0
        %v1511 = vand.u32 %v1197, 4294901760
        %1512 = vmatmul.mubr.f32.gmra.mrb[0].mxu0 %v1511
        %v1513 = vpop.f32.mrb[0].mxu0
        %v1514 = vadd.f32 %v1293, %v1513
        %v1515 = vpop.f32.mrb[0].mxu0
        %1516 = vmatprep.mubr.f32.mxu0 0.0
        %v1517 = vand.u32 %v1198, 4294901760
        %1518 = vmatmul.mubr.f32.gmra.mrb[0].mxu0 %v1517
        %v1519 = vpop.f32.mrb[0].mxu0
        %v1520 = vadd.f32 %v1303, %v1519
        %v1521 = vpop.f32.mrb[0].mxu0
        %1522 = vmatprep.mubr.f32.mxu0 0.0
        %v1523 = vand.u32 %v1199, 4294901760
        %1524 = vmatmul.mubr.f32.gmra.mrb[0].mxu0 %v1523
        %v1525 = vpop.f32.mrb[0].mxu0
        %v1526 = vadd.f32 %v1313, %v1525
        %v1527 = vpop.f32.mrb[0].mxu0
        %1528 = vmatprep.mubr.f32.mxu0 0.0
        %v1529 = vand.u32 %v1200, 4294901760
        %1530 = vmatmul.mubr.f32.gmra.mrb[0].mxu0 %v1529
        %v1531 = vpop.f32.mrb[0].mxu0
        %v1532 = vadd.f32 %v1323, %v1531
        %v1533 = vpop.f32.mrb[0].mxu0
        %1534 = vmatprep.mubr.f32.mxu0 0.0
        %v1535 = vand.u32 %v1201, 4294901760
        %1536 = vmatmul.mubr.f32.gmra.mrb[0].mxu0 %v1535
        %v1537 = vpop.f32.mrb[0].mxu0
        %v1538 = vadd.f32 %v1333, %v1537
        %v1539 = vpop.f32.mrb[0].mxu0
        %1540 = vmatprep.mubr.f32.mxu0 0.0
        %v1541 = vand.u32 %v1202, 4294901760
        %1542 = vmatmul.mubr.f32.gmra.mrb[0].mxu0 %v1541
        %v1543 = vpop.f32.mrb[0].mxu0
        %v1544 = vadd.f32 %v1343, %v1543
        %v1545 = vpop.f32.mrb[0].mxu0
        %1546 = vmatprep.mubr.f32.mxu0 0.0
        %v1547 = vand.u32 %v1203, 4294901760
        %1548 = vmatmul.mubr.f32.gmra.mrb[0].mxu0 %v1547
        %v1549 = vpop.f32.mrb[0].mxu0
        %v1550 = vadd.f32 %v1353, %v1549
        %v1551 = vpop.f32.mrb[0].mxu0
        %1552 = vmatprep.mubr.f32.mxu0 0.0
        %v1553 = vand.u32 %v1204, 4294901760
        %1554 = vmatmul.mubr.f32.gmra.mrb[0].mxu0 %v1553
        %v1555 = vpop.f32.mrb[0].mxu0
        %v1556 = vadd.f32 %v1363, %v1555
        %v1557 = vpop.f32.mrb[0].mxu0
        %1558 = vdwg.mxu0
        %1559 = vmatprep.subr.mxu0 0.0
        %v1560 = vand.u32 %v231, 4294901760
        %v1561 = vsub.f32 %v231, %v1560
        %1562 = vmatpush1.msra.mxu0 %v1561
        %1563 = vmatprep.subr.mxu0 0.0
        %v1564 = vand.u32 %v232, 4294901760
        %v1565 = vsub.f32 %v232, %v1564
        %1566 = vmatpush1.msra.mxu0 %v1565
        %1567 = vmatprep.subr.mxu0 0.0
        %v1568 = vand.u32 %v233, 4294901760
        %v1569 = vsub.f32 %v233, %v1568
        %1570 = vmatpush1.msra.mxu0 %v1569
        %1571 = vmatprep.subr.mxu0 0.0
        %v1572 = vand.u32 %v234, 4294901760
        %v1573 = vsub.f32 %v234, %v1572
        %1574 = vmatpush1.msra.mxu0 %v1573
        %1575 = vmatprep.subr.mxu0 0.0
        %v1576 = vand.u32 %v235, 4294901760
        %v1577 = vsub.f32 %v235, %v1576
        %1578 = vmatpush1.msra.mxu0 %v1577
        %1579 = vmatprep.subr.mxu0 0.0
        %v1580 = vand.u32 %v236, 4294901760
        %v1581 = vsub.f32 %v236, %v1580
        %1582 = vmatpush1.msra.mxu0 %v1581
        %1583 = vmatprep.subr.mxu0 0.0
        %v1584 = vand.u32 %v237, 4294901760
        %v1585 = vsub.f32 %v237, %v1584
        %1586 = vmatpush1.msra.mxu0 %v1585
        %1587 = vmatprep.subr.mxu0 0.0
        %v1588 = vand.u32 %v238, 4294901760
        %v1589 = vsub.f32 %v238, %v1588
        %1590 = vmatpush1.msra.mxu0 %v1589
        %1591 = vmatprep.subr.mxu0 0.0
        %v1592 = vand.u32 %v239, 4294901760
        %v1593 = vsub.f32 %v239, %v1592
        %1594 = vmatpush1.msra.mxu0 %v1593
        %1595 = vmatprep.subr.mxu0 0.0
        %v1596 = vand.u32 %v240, 4294901760
        %v1597 = vsub.f32 %v240, %v1596
        %1598 = vmatpush1.msra.mxu0 %v1597
        %1599 = vmatprep.subr.mxu0 0.0
        %v1600 = vand.u32 %v241, 4294901760
        %v1601 = vsub.f32 %v241, %v1600
        %1602 = vmatpush1.msra.mxu0 %v1601
        %1603 = vmatprep.subr.mxu0 0.0
        %v1604 = vand.u32 %v242, 4294901760
        %v1605 = vsub.f32 %v242, %v1604
        %1606 = vmatpush1.msra.mxu0 %v1605
        %1607 = vmatprep.subr.mxu0 0.0
        %v1608 = vand.u32 %v243, 4294901760
        %v1609 = vsub.f32 %v243, %v1608
        %1610 = vmatpush1.msra.mxu0 %v1609
        %1611 = vmatprep.subr.mxu0 0.0
        %v1612 = vand.u32 %v244, 4294901760
        %v1613 = vsub.f32 %v244, %v1612
        %1614 = vmatpush1.msra.mxu0 %v1613
        %1615 = vmatprep.subr.mxu0 0.0
        %v1616 = vand.u32 %v245, 4294901760
        %v1617 = vsub.f32 %v245, %v1616
        %1618 = vmatpush1.msra.mxu0 %v1617
        %1619 = vmatprep.subr.mxu0 0.0
        %v1620 = vand.u32 %v246, 4294901760
        %v1621 = vsub.f32 %v246, %v1620
        %1622 = vmatpush1.msra.mxu0 %v1621
        %1623 = vmatprep.subr.mxu0 0.0
        %1624 = vmatpush1.msra.mxu0 0.0
        %1625 = vmatprep.subr.mxu0 0.0
        %1626 = vmatpush1.msra.mxu0 0.0
        %1627 = vmatprep.subr.mxu0 0.0
        %1628 = vmatpush1.msra.mxu0 0.0
        %1629 = vmatprep.subr.mxu0 0.0
        %1630 = vmatpush1.msra.mxu0 0.0
        %1631 = vmatprep.subr.mxu0 0.0
        %1632 = vmatpush1.msra.mxu0 0.0
        %1633 = vmatprep.subr.mxu0 0.0
        %1634 = vmatpush1.msra.mxu0 0.0
        %1635 = vmatprep.subr.mxu0 0.0
        %1636 = vmatpush1.msra.mxu0 0.0
        %1637 = vmatprep.subr.mxu0 0.0
        %1638 = vmatpush1.msra.mxu0 0.0
        %1639 = vmatprep.subr.mxu0 0.0
        %1640 = vmatpush1.msra.mxu0 0.0
        %1641 = vmatprep.subr.mxu0 0.0
        %1642 = vmatpush1.msra.mxu0 0.0
        %1643 = vmatprep.subr.mxu0 0.0
        %1644 = vmatpush1.msra.mxu0 0.0
        %1645 = vmatprep.subr.mxu0 0.0
        %1646 = vmatpush1.msra.mxu0 0.0
        %1647 = vmatprep.subr.mxu0 0.0
        %1648 = vmatpush1.msra.mxu0 0.0
        %1649 = vmatprep.subr.mxu0 0.0
        %1650 = vmatpush1.msra.mxu0 0.0
        %1651 = vmatprep.subr.mxu0 0.0
        %1652 = vmatpush1.msra.mxu0 0.0
        %1653 = vmatprep.subr.mxu0 0.0
        %1654 = vmatpush1.msra.mxu0 0.0
        %1655 = vmatprep.mubr.f32.mxu0 0.0
        %v1656 = vand.u32 %v1197, 4294901760
        %v1657 = vsub.f32 %v1197, %v1656
        %1658 = vmatmul.mubr.f32.gmra.mrb[0].mxu0 %v1657
        %v1659 = vpop.f32.mrb[0].mxu0
        %v1660 = vadd.f32 %v1514, %v1659
        %v1661 = vpop.f32.mrb[0].mxu0
        %1662 = vmatprep.mubr.f32.mxu0 0.0
        %v1663 = vand.u32 %v1198, 4294901760
        %v1664 = vsub.f32 %v1198, %v1663
        %1665 = vmatmul.mubr.f32.gmra.mrb[0].mxu0 %v1664
        %v1666 = vpop.f32.mrb[0].mxu0
        %v1667 = vadd.f32 %v1520, %v1666
        %v1668 = vpop.f32.mrb[0].mxu0
        %1669 = vmatprep.mubr.f32.mxu0 0.0
        %v1670 = vand.u32 %v1199, 4294901760
        %v1671 = vsub.f32 %v1199, %v1670
        %1672 = vmatmul.mubr.f32.gmra.mrb[0].mxu0 %v1671
        %v1673 = vpop.f32.mrb[0].mxu0
        %v1674 = vadd.f32 %v1526, %v1673
        %v1675 = vpop.f32.mrb[0].mxu0
        %1676 = vmatprep.mubr.f32.mxu0 0.0
        %v1677 = vand.u32 %v1200, 4294901760
        %v1678 = vsub.f32 %v1200, %v1677
        %1679 = vmatmul.mubr.f32.gmra.mrb[0].mxu0 %v1678
        %v1680 = vpop.f32.mrb[0].mxu0
        %v1681 = vadd.f32 %v1532, %v1680
        %v1682 = vpop.f32.mrb[0].mxu0
        %1683 = vmatprep.mubr.f32.mxu0 0.0
        %v1684 = vand.u32 %v1201, 4294901760
        %v1685 = vsub.f32 %v1201, %v1684
        %1686 = vmatmul.mubr.f32.gmra.mrb[0].mxu0 %v1685
        %v1687 = vpop.f32.mrb[0].mxu0
        %v1688 = vadd.f32 %v1538, %v1687
        %v1689 = vpop.f32.mrb[0].mxu0
        %1690 = vmatprep.mubr.f32.mxu0 0.0
        %v1691 = vand.u32 %v1202, 4294901760
        %v1692 = vsub.f32 %v1202, %v1691
        %1693 = vmatmul.mubr.f32.gmra.mrb[0].mxu0 %v1692
        %v1694 = vpop.f32.mrb[0].mxu0
        %v1695 = vadd.f32 %v1544, %v1694
        %v1696 = vpop.f32.mrb[0].mxu0
        %1697 = vmatprep.mubr.f32.mxu0 0.0
        %v1698 = vand.u32 %v1203, 4294901760
        %v1699 = vsub.f32 %v1203, %v1698
        %1700 = vmatmul.mubr.f32.gmra.mrb[0].mxu0 %v1699
        %v1701 = vpop.f32.mrb[0].mxu0
        %v1702 = vadd.f32 %v1550, %v1701
        %v1703 = vpop.f32.mrb[0].mxu0
        %1704 = vmatprep.mubr.f32.mxu0 0.0
        %v1705 = vand.u32 %v1204, 4294901760
        %v1706 = vsub.f32 %v1204, %v1705
        %1707 = vmatmul.mubr.f32.gmra.mrb[0].mxu0 %v1706
        %v1708 = vpop.f32.mrb[0].mxu0
        %v1709 = vadd.f32 %v1556, %v1708
        %v1710 = vpop.f32.mrb[0].mxu0
        %1711 = vdwg.mxu0
        %1712 = vmatprep.subr.mxu0 0.0
        %v1713 = vand.u32 %v231, 4294901760
        %1714 = vmatpush1.msra.mxu0 %v1713
        %1715 = vmatprep.subr.mxu0 0.0
        %v1716 = vand.u32 %v232, 4294901760
        %1717 = vmatpush1.msra.mxu0 %v1716
        %1718 = vmatprep.subr.mxu0 0.0
        %v1719 = vand.u32 %v233, 4294901760
        %1720 = vmatpush1.msra.mxu0 %v1719
        %1721 = vmatprep.subr.mxu0 0.0
        %v1722 = vand.u32 %v234, 4294901760
        %1723 = vmatpush1.msra.mxu0 %v1722
        %1724 = vmatprep.subr.mxu0 0.0
        %v1725 = vand.u32 %v235, 4294901760
        %1726 = vmatpush1.msra.mxu0 %v1725
        %1727 = vmatprep.subr.mxu0 0.0
        %v1728 = vand.u32 %v236, 4294901760
        %1729 = vmatpush1.msra.mxu0 %v1728
        %1730 = vmatprep.subr.mxu0 0.0
        %v1731 = vand.u32 %v237, 4294901760
        %1732 = vmatpush1.msra.mxu0 %v1731
        %1733 = vmatprep.subr.mxu0 0.0
        %v1734 = vand.u32 %v238, 4294901760
        %1735 = vmatpush1.msra.mxu0 %v1734
        %1736 = vmatprep.subr.mxu0 0.0
        %v1737 = vand.u32 %v239, 4294901760
        %1738 = vmatpush1.msra.mxu0 %v1737
        %1739 = vmatprep.subr.mxu0 0.0
        %v1740 = vand.u32 %v240, 4294901760
        %1741 = vmatpush1.msra.mxu0 %v1740
        %1742 = vmatprep.subr.mxu0 0.0
        %v1743 = vand.u32 %v241, 4294901760
        %1744 = vmatpush1.msra.mxu0 %v1743
        %1745 = vmatprep.subr.mxu0 0.0
        %v1746 = vand.u32 %v242, 4294901760
        %1747 = vmatpush1.msra.mxu0 %v1746
        %1748 = vmatprep.subr.mxu0 0.0
        %v1749 = vand.u32 %v243, 4294901760
        %1750 = vmatpush1.msra.mxu0 %v1749
        %1751 = vmatprep.subr.mxu0 0.0
        %v1752 = vand.u32 %v244, 4294901760
        %1753 = vmatpush1.msra.mxu0 %v1752
        %1754 = vmatprep.subr.mxu0 0.0
        %v1755 = vand.u32 %v245, 4294901760
        %1756 = vmatpush1.msra.mxu0 %v1755
        %1757 = vmatprep.subr.mxu0 0.0
        %v1758 = vand.u32 %v246, 4294901760
        %1759 = vmatpush1.msra.mxu0 %v1758
        %1760 = vmatprep.subr.mxu0 0.0
        %1761 = vmatpush1.msra.mxu0 0.0
        %1762 = vmatprep.subr.mxu0 0.0
        %1763 = vmatpush1.msra.mxu0 0.0
        %1764 = vmatprep.subr.mxu0 0.0
        %1765 = vmatpush1.msra.mxu0 0.0
        %1766 = vmatprep.subr.mxu0 0.0
        %1767 = vmatpush1.msra.mxu0 0.0
        %1768 = vmatprep.subr.mxu0 0.0
        %1769 = vmatpush1.msra.mxu0 0.0
        %1770 = vmatprep.subr.mxu0 0.0
        %1771 = vmatpush1.msra.mxu0 0.0
        %1772 = vmatprep.subr.mxu0 0.0
        %1773 = vmatpush1.msra.mxu0 0.0
        %1774 = vmatprep.subr.mxu0 0.0
        %1775 = vmatpush1.msra.mxu0 0.0
        %1776 = vmatprep.subr.mxu0 0.0
        %1777 = vmatpush1.msra.mxu0 0.0
        %1778 = vmatprep.subr.mxu0 0.0
        %1779 = vmatpush1.msra.mxu0 0.0
        %1780 = vmatprep.subr.mxu0 0.0
        %1781 = vmatpush1.msra.mxu0 0.0
        %1782 = vmatprep.subr.mxu0 0.0
        %1783 = vmatpush1.msra.mxu0 0.0
        %1784 = vmatprep.subr.mxu0 0.0
        %1785 = vmatpush1.msra.mxu0 0.0
        %1786 = vmatprep.subr.mxu0 0.0
        %1787 = vmatpush1.msra.mxu0 0.0
        %1788 = vmatprep.subr.mxu0 0.0
        %1789 = vmatpush1.msra.mxu0 0.0
        %1790 = vmatprep.subr.mxu0 0.0
        %1791 = vmatpush1.msra.mxu0 0.0
        %1792 = vmatprep.mubr.f32.mxu0 0.0
        %v1793 = vand.u32 %v1197, 4294901760
        %v1794 = vsub.f32 %v1197, %v1793
        %v1795 = vand.u32 %v1794, 4294901760
        %1796 = vmatmul.mubr.f32.gmra.mrb[0].mxu0 %v1795
        %v1797 = vpop.f32.mrb[0].mxu0
        %v1798 = vadd.f32 %v1660, %v1797
        %v1799 = vpop.f32.mrb[0].mxu0
        %1800 = vmatprep.mubr.f32.mxu0 0.0
        %v1801 = vand.u32 %v1198, 4294901760
        %v1802 = vsub.f32 %v1198, %v1801
        %v1803 = vand.u32 %v1802, 4294901760
        %1804 = vmatmul.mubr.f32.gmra.mrb[0].mxu0 %v1803
        %v1805 = vpop.f32.mrb[0].mxu0
        %v1806 = vadd.f32 %v1667, %v1805
        %v1807 = vpop.f32.mrb[0].mxu0
        %1808 = vmatprep.mubr.f32.mxu0 0.0
        %v1809 = vand.u32 %v1199, 4294901760
        %v1810 = vsub.f32 %v1199, %v1809
        %v1811 = vand.u32 %v1810, 4294901760
        %1812 = vmatmul.mubr.f32.gmra.mrb[0].mxu0 %v1811
        %v1813 = vpop.f32.mrb[0].mxu0
        %v1814 = vadd.f32 %v1674, %v1813
        %v1815 = vpop.f32.mrb[0].mxu0
        %1816 = vmatprep.mubr.f32.mxu0 0.0
        %v1817 = vand.u32 %v1200, 4294901760
        %v1818 = vsub.f32 %v1200, %v1817
        %v1819 = vand.u32 %v1818, 4294901760
        %1820 = vmatmul.mubr.f32.gmra.mrb[0].mxu0 %v1819
        %v1821 = vpop.f32.mrb[0].mxu0
        %v1822 = vadd.f32 %v1681, %v1821
        %v1823 = vpop.f32.mrb[0].mxu0
        %1824 = vmatprep.mubr.f32.mxu0 0.0
        %v1825 = vand.u32 %v1201, 4294901760
        %v1826 = vsub.f32 %v1201, %v1825
        %v1827 = vand.u32 %v1826, 4294901760
        %1828 = vmatmul.mubr.f32.gmra.mrb[0].mxu0 %v1827
        %v1829 = vpop.f32.mrb[0].mxu0
        %v1830 = vadd.f32 %v1688, %v1829
        %v1831 = vpop.f32.mrb[0].mxu0
        %1832 = vmatprep.mubr.f32.mxu0 0.0
        %v1833 = vand.u32 %v1202, 4294901760
        %v1834 = vsub.f32 %v1202, %v1833
        %v1835 = vand.u32 %v1834, 4294901760
        %1836 = vmatmul.mubr.f32.gmra.mrb[0].mxu0 %v1835
        %v1837 = vpop.f32.mrb[0].mxu0
        %v1838 = vadd.f32 %v1695, %v1837
        %v1839 = vpop.f32.mrb[0].mxu0
        %1840 = vmatprep.mubr.f32.mxu0 0.0
        %v1841 = vand.u32 %v1203, 4294901760
        %v1842 = vsub.f32 %v1203, %v1841
        %v1843 = vand.u32 %v1842, 4294901760
        %1844 = vmatmul.mubr.f32.gmra.mrb[0].mxu0 %v1843
        %v1845 = vpop.f32.mrb[0].mxu0
        %v1846 = vadd.f32 %v1702, %v1845
        %v1847 = vpop.f32.mrb[0].mxu0
        %1848 = vmatprep.mubr.f32.mxu0 0.0
        %v1849 = vand.u32 %v1204, 4294901760
        %v1850 = vsub.f32 %v1204, %v1849
        %v1851 = vand.u32 %v1850, 4294901760
        %1852 = vmatmul.mubr.f32.gmra.mrb[0].mxu0 %v1851
        %v1853 = vpop.f32.mrb[0].mxu0
        %v1854 = vadd.f32 %v1709, %v1853
        %v1855 = vpop.f32.mrb[0].mxu0
        %1856 = vdwg.mxu0
        %1857 = vmatprep.subr.mxu0 0.0
        %v1858 = vand.u32 %v231, 4294901760
        %v1859 = vsub.f32 %v231, %v1858
        %v1860 = vand.u32 %v1859, 4294901760
        %1861 = vmatpush1.msra.mxu0 %v1860
        %1862 = vmatprep.subr.mxu0 0.0
        %v1863 = vand.u32 %v232, 4294901760
        %v1864 = vsub.f32 %v232, %v1863
        %v1865 = vand.u32 %v1864, 4294901760
        %1866 = vmatpush1.msra.mxu0 %v1865
        %1867 = vmatprep.subr.mxu0 0.0
        %v1868 = vand.u32 %v233, 4294901760
        %v1869 = vsub.f32 %v233, %v1868
        %v1870 = vand.u32 %v1869, 4294901760
        %1871 = vmatpush1.msra.mxu0 %v1870
        %1872 = vmatprep.subr.mxu0 0.0
        %v1873 = vand.u32 %v234, 4294901760
        %v1874 = vsub.f32 %v234, %v1873
        %v1875 = vand.u32 %v1874, 4294901760
        %1876 = vmatpush1.msra.mxu0 %v1875
        %1877 = vmatprep.subr.mxu0 0.0
        %v1878 = vand.u32 %v235, 4294901760
        %v1879 = vsub.f32 %v235, %v1878
        %v1880 = vand.u32 %v1879, 4294901760
        %1881 = vmatpush1.msra.mxu0 %v1880
        %1882 = vmatprep.subr.mxu0 0.0
        %v1883 = vand.u32 %v236, 4294901760
        %v1884 = vsub.f32 %v236, %v1883
        %v1885 = vand.u32 %v1884, 4294901760
        %1886 = vmatpush1.msra.mxu0 %v1885
        %1887 = vmatprep.subr.mxu0 0.0
        %v1888 = vand.u32 %v237, 4294901760
        %v1889 = vsub.f32 %v237, %v1888
        %v1890 = vand.u32 %v1889, 4294901760
        %1891 = vmatpush1.msra.mxu0 %v1890
        %1892 = vmatprep.subr.mxu0 0.0
        %v1893 = vand.u32 %v238, 4294901760
        %v1894 = vsub.f32 %v238, %v1893
        %v1895 = vand.u32 %v1894, 4294901760
        %1896 = vmatpush1.msra.mxu0 %v1895
        %1897 = vmatprep.subr.mxu0 0.0
        %v1898 = vand.u32 %v239, 4294901760
        %v1899 = vsub.f32 %v239, %v1898
        %v1900 = vand.u32 %v1899, 4294901760
        %1901 = vmatpush1.msra.mxu0 %v1900
        %1902 = vmatprep.subr.mxu0 0.0
        %v1903 = vand.u32 %v240, 4294901760
        %v1904 = vsub.f32 %v240, %v1903
        %v1905 = vand.u32 %v1904, 4294901760
        %1906 = vmatpush1.msra.mxu0 %v1905
        %1907 = vmatprep.subr.mxu0 0.0
        %v1908 = vand.u32 %v241, 4294901760
        %v1909 = vsub.f32 %v241, %v1908
        %v1910 = vand.u32 %v1909, 4294901760
        %1911 = vmatpush1.msra.mxu0 %v1910
        %1912 = vmatprep.subr.mxu0 0.0
        %v1913 = vand.u32 %v242, 4294901760
        %v1914 = vsub.f32 %v242, %v1913
        %v1915 = vand.u32 %v1914, 4294901760
        %1916 = vmatpush1.msra.mxu0 %v1915
        %1917 = vmatprep.subr.mxu0 0.0
        %v1918 = vand.u32 %v243, 4294901760
        %v1919 = vsub.f32 %v243, %v1918
        %v1920 = vand.u32 %v1919, 4294901760
        %1921 = vmatpush1.msra.mxu0 %v1920
        %1922 = vmatprep.subr.mxu0 0.0
        %v1923 = vand.u32 %v244, 4294901760
        %v1924 = vsub.f32 %v244, %v1923
        %v1925 = vand.u32 %v1924, 4294901760
        %1926 = vmatpush1.msra.mxu0 %v1925
        %1927 = vmatprep.subr.mxu0 0.0
        %v1928 = vand.u32 %v245, 4294901760
        %v1929 = vsub.f32 %v245, %v1928
        %v1930 = vand.u32 %v1929, 4294901760
        %1931 = vmatpush1.msra.mxu0 %v1930
        %1932 = vmatprep.subr.mxu0 0.0
        %v1933 = vand.u32 %v246, 4294901760
        %v1934 = vsub.f32 %v246, %v1933
        %v1935 = vand.u32 %v1934, 4294901760
        %1936 = vmatpush1.msra.mxu0 %v1935
        %1937 = vmatprep.subr.mxu0 0.0
        %1938 = vmatpush1.msra.mxu0 0.0
        %1939 = vmatprep.subr.mxu0 0.0
        %1940 = vmatpush1.msra.mxu0 0.0
        %1941 = vmatprep.subr.mxu0 0.0
        %1942 = vmatpush1.msra.mxu0 0.0
        %1943 = vmatprep.subr.mxu0 0.0
        %1944 = vmatpush1.msra.mxu0 0.0
        %1945 = vmatprep.subr.mxu0 0.0
        %1946 = vmatpush1.msra.mxu0 0.0
        %1947 = vmatprep.subr.mxu0 0.0
        %1948 = vmatpush1.msra.mxu0 0.0
        %1949 = vmatprep.subr.mxu0 0.0
        %1950 = vmatpush1.msra.mxu0 0.0
        %1951 = vmatprep.subr.mxu0 0.0
        %1952 = vmatpush1.msra.mxu0 0.0
        %1953 = vmatprep.subr.mxu0 0.0
        %1954 = vmatpush1.msra.mxu0 0.0
        %1955 = vmatprep.subr.mxu0 0.0
        %1956 = vmatpush1.msra.mxu0 0.0
        %1957 = vmatprep.subr.mxu0 0.0
        %1958 = vmatpush1.msra.mxu0 0.0
        %1959 = vmatprep.subr.mxu0 0.0
        %1960 = vmatpush1.msra.mxu0 0.0
        %1961 = vmatprep.subr.mxu0 0.0
        %1962 = vmatpush1.msra.mxu0 0.0
        %1963 = vmatprep.subr.mxu0 0.0
        %1964 = vmatpush1.msra.mxu0 0.0
        %1965 = vmatprep.subr.mxu0 0.0
        %1966 = vmatpush1.msra.mxu0 0.0
        %1967 = vmatprep.subr.mxu0 0.0
        %1968 = vmatpush1.msra.mxu0 0.0
        %1969 = vmatprep.mubr.f32.mxu0 0.0
        %v1970 = vand.u32 %v1197, 4294901760
        %1971 = vmatmul.mubr.f32.gmra.mrb[0].mxu0 %v1970
        %v1972 = vpop.f32.mrb[0].mxu0
        %v1973 = vadd.f32 %v1798, %v1972
        %v1974 = vpop.f32.mrb[0].mxu0
        %1975 = vmatprep.mubr.f32.mxu0 0.0
        %v1976 = vand.u32 %v1198, 4294901760
        %1977 = vmatmul.mubr.f32.gmra.mrb[0].mxu0 %v1976
        %v1978 = vpop.f32.mrb[0].mxu0
        %v1979 = vadd.f32 %v1806, %v1978
        %v1980 = vpop.f32.mrb[0].mxu0
        %1981 = vmatprep.mubr.f32.mxu0 0.0
        %v1982 = vand.u32 %v1199, 4294901760
        %1983 = vmatmul.mubr.f32.gmra.mrb[0].mxu0 %v1982
        %v1984 = vpop.f32.mrb[0].mxu0
        %v1985 = vadd.f32 %v1814, %v1984
        %v1986 = vpop.f32.mrb[0].mxu0
        %1987 = vmatprep.mubr.f32.mxu0 0.0
        %v1988 = vand.u32 %v1200, 4294901760
        %1989 = vmatmul.mubr.f32.gmra.mrb[0].mxu0 %v1988
        %v1990 = vpop.f32.mrb[0].mxu0
        %v1991 = vadd.f32 %v1822, %v1990
        %v1992 = vpop.f32.mrb[0].mxu0
        %1993 = vmatprep.mubr.f32.mxu0 0.0
        %v1994 = vand.u32 %v1201, 4294901760
        %1995 = vmatmul.mubr.f32.gmra.mrb[0].mxu0 %v1994
        %v1996 = vpop.f32.mrb[0].mxu0
        %v1997 = vadd.f32 %v1830, %v1996
        %v1998 = vpop.f32.mrb[0].mxu0
        %1999 = vmatprep.mubr.f32.mxu0 0.0
        %v2000 = vand.u32 %v1202, 4294901760
        %2001 = vmatmul.mubr.f32.gmra.mrb[0].mxu0 %v2000
        %v2002 = vpop.f32.mrb[0].mxu0
        %v2003 = vadd.f32 %v1838, %v2002
        %v2004 = vpop.f32.mrb[0].mxu0
        %2005 = vmatprep.mubr.f32.mxu0 0.0
        %v2006 = vand.u32 %v1203, 4294901760
        %2007 = vmatmul.mubr.f32.gmra.mrb[0].mxu0 %v2006
        %v2008 = vpop.f32.mrb[0].mxu0
        %v2009 = vadd.f32 %v1846, %v2008
        %v2010 = vpop.f32.mrb[0].mxu0
        %2011 = vmatprep.mubr.f32.mxu0 0.0
        %v2012 = vand.u32 %v1204, 4294901760
        %2013 = vmatmul.mubr.f32.gmra.mrb[0].mxu0 %v2012
        %v2014 = vpop.f32.mrb[0].mxu0
        %v2015 = vadd.f32 %v1854, %v2014
        %v2016 = vpop.f32.mrb[0].mxu0
        %2017 = vdwg.mxu0
        %2018 = vmatprep.subr.mxu0 0.0
        %v2019 = vand.u32 %v231, 4294901760
        %2020 = vmatpush1.msra.mxu0 %v2019
        %2021 = vmatprep.subr.mxu0 0.0
        %v2022 = vand.u32 %v232, 4294901760
        %2023 = vmatpush1.msra.mxu0 %v2022
        %2024 = vmatprep.subr.mxu0 0.0
        %v2025 = vand.u32 %v233, 4294901760
        %2026 = vmatpush1.msra.mxu0 %v2025
        %2027 = vmatprep.subr.mxu0 0.0
        %v2028 = vand.u32 %v234, 4294901760
        %2029 = vmatpush1.msra.mxu0 %v2028
        %2030 = vmatprep.subr.mxu0 0.0
        %v2031 = vand.u32 %v235, 4294901760
        %2032 = vmatpush1.msra.mxu0 %v2031
        %2033 = vmatprep.subr.mxu0 0.0
        %v2034 = vand.u32 %v236, 4294901760
        %2035 = vmatpush1.msra.mxu0 %v2034
        %2036 = vmatprep.subr.mxu0 0.0
        %v2037 = vand.u32 %v237, 4294901760
        %2038 = vmatpush1.msra.mxu0 %v2037
        %2039 = vmatprep.subr.mxu0 0.0
        %v2040 = vand.u32 %v238, 4294901760
        %2041 = vmatpush1.msra.mxu0 %v2040
        %2042 = vmatprep.subr.mxu0 0.0
        %v2043 = vand.u32 %v239, 4294901760
        %2044 = vmatpush1.msra.mxu0 %v2043
        %2045 = vmatprep.subr.mxu0 0.0
        %v2046 = vand.u32 %v240, 4294901760
        %2047 = vmatpush1.msra.mxu0 %v2046
        %2048 = vmatprep.subr.mxu0 0.0
        %v2049 = vand.u32 %v241, 4294901760
        %2050 = vmatpush1.msra.mxu0 %v2049
        %2051 = vmatprep.subr.mxu0 0.0
        %v2052 = vand.u32 %v242, 4294901760
        %2053 = vmatpush1.msra.mxu0 %v2052
        %2054 = vmatprep.subr.mxu0 0.0
        %v2055 = vand.u32 %v243, 4294901760
        %2056 = vmatpush1.msra.mxu0 %v2055
        %2057 = vmatprep.subr.mxu0 0.0
        %v2058 = vand.u32 %v244, 4294901760
        %2059 = vmatpush1.msra.mxu0 %v2058
        %2060 = vmatprep.subr.mxu0 0.0
        %v2061 = vand.u32 %v245, 4294901760
        %2062 = vmatpush1.msra.mxu0 %v2061
        %2063 = vmatprep.subr.mxu0 0.0
        %v2064 = vand.u32 %v246, 4294901760
        %2065 = vmatpush1.msra.mxu0 %v2064
        %2066 = vmatprep.subr.mxu0 0.0
        %2067 = vmatpush1.msra.mxu0 0.0
        %2068 = vmatprep.subr.mxu0 0.0
        %2069 = vmatpush1.msra.mxu0 0.0
        %2070 = vmatprep.subr.mxu0 0.0
        %2071 = vmatpush1.msra.mxu0 0.0
        %2072 = vmatprep.subr.mxu0 0.0
        %2073 = vmatpush1.msra.mxu0 0.0
        %2074 = vmatprep.subr.mxu0 0.0
        %2075 = vmatpush1.msra.mxu0 0.0
        %2076 = vmatprep.subr.mxu0 0.0
        %2077 = vmatpush1.msra.mxu0 0.0
        %2078 = vmatprep.subr.mxu0 0.0
        %2079 = vmatpush1.msra.mxu0 0.0
        %2080 = vmatprep.subr.mxu0 0.0
        %2081 = vmatpush1.msra.mxu0 0.0
        %2082 = vmatprep.subr.mxu0 0.0
        %2083 = vmatpush1.msra.mxu0 0.0
        %2084 = vmatprep.subr.mxu0 0.0
        %2085 = vmatpush1.msra.mxu0 0.0
        %2086 = vmatprep.subr.mxu0 0.0
        %2087 = vmatpush1.msra.mxu0 0.0
        %2088 = vmatprep.subr.mxu0 0.0
        %2089 = vmatpush1.msra.mxu0 0.0
        %2090 = vmatprep.subr.mxu0 0.0
        %2091 = vmatpush1.msra.mxu0 0.0
        %2092 = vmatprep.subr.mxu0 0.0
        %2093 = vmatpush1.msra.mxu0 0.0
        %2094 = vmatprep.subr.mxu0 0.0
        %2095 = vmatpush1.msra.mxu0 0.0
        %2096 = vmatprep.subr.mxu0 0.0
        %2097 = vmatpush1.msra.mxu0 0.0
        %2098 = vmatprep.mubr.f32.mxu0 0.0
        %v2099 = vand.u32 %v1197, 4294901760
        %2100 = vmatmul.mubr.f32.gmra.mrb[0].mxu0 %v2099
        %v2101 = vpop.f32.mrb[0].mxu0
        %v2102 = vadd.f32 %v1973, %v2101
        %v2103 = vpop.f32.mrb[0].mxu0
        %2104 = vmatprep.mubr.f32.mxu0 0.0
        %v2105 = vand.u32 %v1198, 4294901760
        %2106 = vmatmul.mubr.f32.gmra.mrb[0].mxu0 %v2105
        %v2107 = vpop.f32.mrb[0].mxu0
        %v2108 = vadd.f32 %v1979, %v2107
        %v2109 = vpop.f32.mrb[0].mxu0
        %2110 = vmatprep.mubr.f32.mxu0 0.0
        %v2111 = vand.u32 %v1199, 4294901760
        %2112 = vmatmul.mubr.f32.gmra.mrb[0].mxu0 %v2111
        %v2113 = vpop.f32.mrb[0].mxu0
        %v2114 = vadd.f32 %v1985, %v2113
        %v2115 = vpop.f32.mrb[0].mxu0
        %2116 = vmatprep.mubr.f32.mxu0 0.0
        %v2117 = vand.u32 %v1200, 4294901760
        %2118 = vmatmul.mubr.f32.gmra.mrb[0].mxu0 %v2117
        %v2119 = vpop.f32.mrb[0].mxu0
        %v2120 = vadd.f32 %v1991, %v2119
        %v2121 = vpop.f32.mrb[0].mxu0
        %2122 = vmatprep.mubr.f32.mxu0 0.0
        %v2123 = vand.u32 %v1201, 4294901760
        %2124 = vmatmul.mubr.f32.gmra.mrb[0].mxu0 %v2123
        %v2125 = vpop.f32.mrb[0].mxu0
        %v2126 = vadd.f32 %v1997, %v2125
        %v2127 = vpop.f32.mrb[0].mxu0
        %2128 = vmatprep.mubr.f32.mxu0 0.0
        %v2129 = vand.u32 %v1202, 4294901760
        %2130 = vmatmul.mubr.f32.gmra.mrb[0].mxu0 %v2129
        %v2131 = vpop.f32.mrb[0].mxu0
        %v2132 = vadd.f32 %v2003, %v2131
        %v2133 = vpop.f32.mrb[0].mxu0
        %2134 = vmatprep.mubr.f32.mxu0 0.0
        %v2135 = vand.u32 %v1203, 4294901760
        %2136 = vmatmul.mubr.f32.gmra.mrb[0].mxu0 %v2135
        %v2137 = vpop.f32.mrb[0].mxu0
        %v2138 = vadd.f32 %v2009, %v2137
        %v2139 = vpop.f32.mrb[0].mxu0
        %2140 = vmatprep.mubr.f32.mxu0 0.0
        %v2141 = vand.u32 %v1204, 4294901760
        %2142 = vmatmul.mubr.f32.gmra.mrb[0].mxu0 %v2141
        %v2143 = vpop.f32.mrb[0].mxu0
        %v2144 = vadd.f32 %v2015, %v2143
        %v2145 = vpop.f32.mrb[0].mxu0
        %2146 = vdwg.mxu0
        %v2147 = vmul.f32 %v223, %v223
        %v2148 = vmul.f32 %v224, %v224
        %v2149 = vmul.f32 %v225, %v225
        %v2150 = vmul.f32 %v226, %v226
        %v2151 = vmul.f32 %v227, %v227
        %v2152 = vmul.f32 %v228, %v228
        %v2153 = vmul.f32 %v229, %v229
        %v2154 = vmul.f32 %v230, %v230
        %2155 = vmatprep.subr.mxu0 0.0
        %v2156 = vand.u32 %v231, 4294901760
        %2157 = vmatpush1.msra.mxu0 %v2156
        %2158 = vmatprep.subr.mxu0 0.0
        %v2159 = vand.u32 %v232, 4294901760
        %2160 = vmatpush1.msra.mxu0 %v2159
        %2161 = vmatprep.subr.mxu0 0.0
        %v2162 = vand.u32 %v233, 4294901760
        %2163 = vmatpush1.msra.mxu0 %v2162
        %2164 = vmatprep.subr.mxu0 0.0
        %v2165 = vand.u32 %v234, 4294901760
        %2166 = vmatpush1.msra.mxu0 %v2165
        %2167 = vmatprep.subr.mxu0 0.0
        %v2168 = vand.u32 %v235, 4294901760
        %2169 = vmatpush1.msra.mxu0 %v2168
        %2170 = vmatprep.subr.mxu0 0.0
        %v2171 = vand.u32 %v236, 4294901760
        %2172 = vmatpush1.msra.mxu0 %v2171
        %2173 = vmatprep.subr.mxu0 0.0
        %v2174 = vand.u32 %v237, 4294901760
        %2175 = vmatpush1.msra.mxu0 %v2174
        %2176 = vmatprep.subr.mxu0 0.0
        %v2177 = vand.u32 %v238, 4294901760
        %2178 = vmatpush1.msra.mxu0 %v2177
        %2179 = vmatprep.subr.mxu0 0.0
        %v2180 = vand.u32 %v239, 4294901760
        %2181 = vmatpush1.msra.mxu0 %v2180
        %2182 = vmatprep.subr.mxu0 0.0
        %v2183 = vand.u32 %v240, 4294901760
        %2184 = vmatpush1.msra.mxu0 %v2183
        %2185 = vmatprep.subr.mxu0 0.0
        %v2186 = vand.u32 %v241, 4294901760
        %2187 = vmatpush1.msra.mxu0 %v2186
        %2188 = vmatprep.subr.mxu0 0.0
        %v2189 = vand.u32 %v242, 4294901760
        %2190 = vmatpush1.msra.mxu0 %v2189
        %2191 = vmatprep.subr.mxu0 0.0
        %v2192 = vand.u32 %v243, 4294901760
        %2193 = vmatpush1.msra.mxu0 %v2192
        %2194 = vmatprep.subr.mxu0 0.0
        %v2195 = vand.u32 %v244, 4294901760
        %2196 = vmatpush1.msra.mxu0 %v2195
        %2197 = vmatprep.subr.mxu0 0.0
        %v2198 = vand.u32 %v245, 4294901760
        %2199 = vmatpush1.msra.mxu0 %v2198
        %2200 = vmatprep.subr.mxu0 0.0
        %v2201 = vand.u32 %v246, 4294901760
        %2202 = vmatpush1.msra.mxu0 %v2201
        %2203 = vmatprep.subr.mxu0 0.0
        %2204 = vmatpush1.msra.mxu0 0.0
        %2205 = vmatprep.subr.mxu0 0.0
        %2206 = vmatpush1.msra.mxu0 0.0
        %2207 = vmatprep.subr.mxu0 0.0
        %2208 = vmatpush1.msra.mxu0 0.0
        %2209 = vmatprep.subr.mxu0 0.0
        %2210 = vmatpush1.msra.mxu0 0.0
        %2211 = vmatprep.subr.mxu0 0.0
        %2212 = vmatpush1.msra.mxu0 0.0
        %2213 = vmatprep.subr.mxu0 0.0
        %2214 = vmatpush1.msra.mxu0 0.0
        %2215 = vmatprep.subr.mxu0 0.0
        %2216 = vmatpush1.msra.mxu0 0.0
        %2217 = vmatprep.subr.mxu0 0.0
        %2218 = vmatpush1.msra.mxu0 0.0
        %2219 = vmatprep.subr.mxu0 0.0
        %2220 = vmatpush1.msra.mxu0 0.0
        %2221 = vmatprep.subr.mxu0 0.0
        %2222 = vmatpush1.msra.mxu0 0.0
        %2223 = vmatprep.subr.mxu0 0.0
        %2224 = vmatpush1.msra.mxu0 0.0
        %2225 = vmatprep.subr.mxu0 0.0
        %2226 = vmatpush1.msra.mxu0 0.0
        %2227 = vmatprep.subr.mxu0 0.0
        %2228 = vmatpush1.msra.mxu0 0.0
        %2229 = vmatprep.subr.mxu0 0.0
        %2230 = vmatpush1.msra.mxu0 0.0
        %2231 = vmatprep.subr.mxu0 0.0
        %2232 = vmatpush1.msra.mxu0 0.0
        %2233 = vmatprep.subr.mxu0 0.0
        %2234 = vmatpush1.msra.mxu0 0.0
        %2235 = vmatprep.mubr.f32.mxu0 0.0
        %v2236 = vand.u32 %v2147, 4294901760
        %v2237 = vsub.f32 %v2147, %v2236
        %v2238 = vand.u32 %v2237, 4294901760
        %v2239 = vsub.f32 %v2237, %v2238
        %v2240 = vand.u32 %v2239, 4294901760
        %2241 = vmatmul.mubr.f32.gmra.mrb[0].mxu0 %v2240
        %v2242 = vpop.f32.mrb[0].mxu0
        %v2243 = vadd.f32 0.0, %v2242
        %v2244 = vpop.f32.mrb[0].mxu0
        %2245 = vmatprep.mubr.f32.mxu0 0.0
        %v2246 = vand.u32 %v2148, 4294901760
        %v2247 = vsub.f32 %v2148, %v2246
        %v2248 = vand.u32 %v2247, 4294901760
        %v2249 = vsub.f32 %v2247, %v2248
        %v2250 = vand.u32 %v2249, 4294901760
        %2251 = vmatmul.mubr.f32.gmra.mrb[0].mxu0 %v2250
        %v2252 = vpop.f32.mrb[0].mxu0
        %v2253 = vadd.f32 0.0, %v2252
        %v2254 = vpop.f32.mrb[0].mxu0
        %2255 = vmatprep.mubr.f32.mxu0 0.0
        %v2256 = vand.u32 %v2149, 4294901760
        %v2257 = vsub.f32 %v2149, %v2256
        %v2258 = vand.u32 %v2257, 4294901760
        %v2259 = vsub.f32 %v2257, %v2258
        %v2260 = vand.u32 %v2259, 4294901760
        %2261 = vmatmul.mubr.f32.gmra.mrb[0].mxu0 %v2260
        %v2262 = vpop.f32.mrb[0].mxu0
        %v2263 = vadd.f32 0.0, %v2262
        %v2264 = vpop.f32.mrb[0].mxu0
        %2265 = vmatprep.mubr.f32.mxu0 0.0
        %v2266 = vand.u32 %v2150, 4294901760
        %v2267 = vsub.f32 %v2150, %v2266
        %v2268 = vand.u32 %v2267, 4294901760
        %v2269 = vsub.f32 %v2267, %v2268
        %v2270 = vand.u32 %v2269, 4294901760
        %2271 = vmatmul.mubr.f32.gmra.mrb[0].mxu0 %v2270
        %v2272 = vpop.f32.mrb[0].mxu0
        %v2273 = vadd.f32 0.0, %v2272
        %v2274 = vpop.f32.mrb[0].mxu0
        %2275 = vmatprep.mubr.f32.mxu0 0.0
        %v2276 = vand.u32 %v2151, 4294901760
        %v2277 = vsub.f32 %v2151, %v2276
        %v2278 = vand.u32 %v2277, 4294901760
        %v2279 = vsub.f32 %v2277, %v2278
        %v2280 = vand.u32 %v2279, 4294901760
        %2281 = vmatmul.mubr.f32.gmra.mrb[0].mxu0 %v2280
        %v2282 = vpop.f32.mrb[0].mxu0
        %v2283 = vadd.f32 0.0, %v2282
        %v2284 = vpop.f32.mrb[0].mxu0
        %2285 = vmatprep.mubr.f32.mxu0 0.0
        %v2286 = vand.u32 %v2152, 4294901760
        %v2287 = vsub.f32 %v2152, %v2286
        %v2288 = vand.u32 %v2287, 4294901760
        %v2289 = vsub.f32 %v2287, %v2288
        %v2290 = vand.u32 %v2289, 4294901760
        %2291 = vmatmul.mubr.f32.gmra.mrb[0].mxu0 %v2290
        %v2292 = vpop.f32.mrb[0].mxu0
        %v2293 = vadd.f32 0.0, %v2292
        %v2294 = vpop.f32.mrb[0].mxu0
        %2295 = vmatprep.mubr.f32.mxu0 0.0
        %v2296 = vand.u32 %v2153, 4294901760
        %v2297 = vsub.f32 %v2153, %v2296
        %v2298 = vand.u32 %v2297, 4294901760
        %v2299 = vsub.f32 %v2297, %v2298
        %v2300 = vand.u32 %v2299, 4294901760
        %2301 = vmatmul.mubr.f32.gmra.mrb[0].mxu0 %v2300
        %v2302 = vpop.f32.mrb[0].mxu0
        %v2303 = vadd.f32 0.0, %v2302
        %v2304 = vpop.f32.mrb[0].mxu0
        %2305 = vmatprep.mubr.f32.mxu0 0.0
        %v2306 = vand.u32 %v2154, 4294901760
        %v2307 = vsub.f32 %v2154, %v2306
        %v2308 = vand.u32 %v2307, 4294901760
        %v2309 = vsub.f32 %v2307, %v2308
        %v2310 = vand.u32 %v2309, 4294901760
        %2311 = vmatmul.mubr.f32.gmra.mrb[0].mxu0 %v2310
        %v2312 = vpop.f32.mrb[0].mxu0
        %v2313 = vadd.f32 0.0, %v2312
        %v2314 = vpop.f32.mrb[0].mxu0
        %2315 = vdwg.mxu0
        %2316 = vmatprep.subr.mxu0 0.0
        %v2317 = vand.u32 %v231, 4294901760
        %v2318 = vsub.f32 %v231, %v2317
        %v2319 = vand.u32 %v2318, 4294901760
        %v2320 = vsub.f32 %v2318, %v2319
        %v2321 = vand.u32 %v2320, 4294901760
        %2322 = vmatpush1.msra.mxu0 %v2321
        %2323 = vmatprep.subr.mxu0 0.0
        %v2324 = vand.u32 %v232, 4294901760
        %v2325 = vsub.f32 %v232, %v2324
        %v2326 = vand.u32 %v2325, 4294901760
        %v2327 = vsub.f32 %v2325, %v2326
        %v2328 = vand.u32 %v2327, 4294901760
        %2329 = vmatpush1.msra.mxu0 %v2328
        %2330 = vmatprep.subr.mxu0 0.0
        %v2331 = vand.u32 %v233, 4294901760
        %v2332 = vsub.f32 %v233, %v2331
        %v2333 = vand.u32 %v2332, 4294901760
        %v2334 = vsub.f32 %v2332, %v2333
        %v2335 = vand.u32 %v2334, 4294901760
        %2336 = vmatpush1.msra.mxu0 %v2335
        %2337 = vmatprep.subr.mxu0 0.0
        %v2338 = vand.u32 %v234, 4294901760
        %v2339 = vsub.f32 %v234, %v2338
        %v2340 = vand.u32 %v2339, 4294901760
        %v2341 = vsub.f32 %v2339, %v2340
        %v2342 = vand.u32 %v2341, 4294901760
        %2343 = vmatpush1.msra.mxu0 %v2342
        %2344 = vmatprep.subr.mxu0 0.0
        %v2345 = vand.u32 %v235, 4294901760
        %v2346 = vsub.f32 %v235, %v2345
        %v2347 = vand.u32 %v2346, 4294901760
        %v2348 = vsub.f32 %v2346, %v2347
        %v2349 = vand.u32 %v2348, 4294901760
        %2350 = vmatpush1.msra.mxu0 %v2349
        %2351 = vmatprep.subr.mxu0 0.0
        %v2352 = vand.u32 %v236, 4294901760
        %v2353 = vsub.f32 %v236, %v2352
        %v2354 = vand.u32 %v2353, 4294901760
        %v2355 = vsub.f32 %v2353, %v2354
        %v2356 = vand.u32 %v2355, 4294901760
        %2357 = vmatpush1.msra.mxu0 %v2356
        %2358 = vmatprep.subr.mxu0 0.0
        %v2359 = vand.u32 %v237, 4294901760
        %v2360 = vsub.f32 %v237, %v2359
        %v2361 = vand.u32 %v2360, 4294901760
        %v2362 = vsub.f32 %v2360, %v2361
        %v2363 = vand.u32 %v2362, 4294901760
        %2364 = vmatpush1.msra.mxu0 %v2363
        %2365 = vmatprep.subr.mxu0 0.0
        %v2366 = vand.u32 %v238, 4294901760
        %v2367 = vsub.f32 %v238, %v2366
        %v2368 = vand.u32 %v2367, 4294901760
        %v2369 = vsub.f32 %v2367, %v2368
        %v2370 = vand.u32 %v2369, 4294901760
        %2371 = vmatpush1.msra.mxu0 %v2370
        %2372 = vmatprep.subr.mxu0 0.0
        %v2373 = vand.u32 %v239, 4294901760
        %v2374 = vsub.f32 %v239, %v2373
        %v2375 = vand.u32 %v2374, 4294901760
        %v2376 = vsub.f32 %v2374, %v2375
        %v2377 = vand.u32 %v2376, 4294901760
        %2378 = vmatpush1.msra.mxu0 %v2377
        %2379 = vmatprep.subr.mxu0 0.0
        %v2380 = vand.u32 %v240, 4294901760
        %v2381 = vsub.f32 %v240, %v2380
        %v2382 = vand.u32 %v2381, 4294901760
        %v2383 = vsub.f32 %v2381, %v2382
        %v2384 = vand.u32 %v2383, 4294901760
        %2385 = vmatpush1.msra.mxu0 %v2384
        %2386 = vmatprep.subr.mxu0 0.0
        %v2387 = vand.u32 %v241, 4294901760
        %v2388 = vsub.f32 %v241, %v2387
        %v2389 = vand.u32 %v2388, 4294901760
        %v2390 = vsub.f32 %v2388, %v2389
        %v2391 = vand.u32 %v2390, 4294901760
        %2392 = vmatpush1.msra.mxu0 %v2391
        %2393 = vmatprep.subr.mxu0 0.0
        %v2394 = vand.u32 %v242, 4294901760
        %v2395 = vsub.f32 %v242, %v2394
        %v2396 = vand.u32 %v2395, 4294901760
        %v2397 = vsub.f32 %v2395, %v2396
        %v2398 = vand.u32 %v2397, 4294901760
        %2399 = vmatpush1.msra.mxu0 %v2398
        %2400 = vmatprep.subr.mxu0 0.0
        %v2401 = vand.u32 %v243, 4294901760
        %v2402 = vsub.f32 %v243, %v2401
        %v2403 = vand.u32 %v2402, 4294901760
        %v2404 = vsub.f32 %v2402, %v2403
        %v2405 = vand.u32 %v2404, 4294901760
        %2406 = vmatpush1.msra.mxu0 %v2405
        %2407 = vmatprep.subr.mxu0 0.0
        %v2408 = vand.u32 %v244, 4294901760
        %v2409 = vsub.f32 %v244, %v2408
        %v2410 = vand.u32 %v2409, 4294901760
        %v2411 = vsub.f32 %v2409, %v2410
        %v2412 = vand.u32 %v2411, 4294901760
        %2413 = vmatpush1.msra.mxu0 %v2412
        %2414 = vmatprep.subr.mxu0 0.0
        %v2415 = vand.u32 %v245, 4294901760
        %v2416 = vsub.f32 %v245, %v2415
        %v2417 = vand.u32 %v2416, 4294901760
        %v2418 = vsub.f32 %v2416, %v2417
        %v2419 = vand.u32 %v2418, 4294901760
        %2420 = vmatpush1.msra.mxu0 %v2419
        %2421 = vmatprep.subr.mxu0 0.0
        %v2422 = vand.u32 %v246, 4294901760
        %v2423 = vsub.f32 %v246, %v2422
        %v2424 = vand.u32 %v2423, 4294901760
        %v2425 = vsub.f32 %v2423, %v2424
        %v2426 = vand.u32 %v2425, 4294901760
        %2427 = vmatpush1.msra.mxu0 %v2426
        %2428 = vmatprep.subr.mxu0 0.0
        %2429 = vmatpush1.msra.mxu0 0.0
        %2430 = vmatprep.subr.mxu0 0.0
        %2431 = vmatpush1.msra.mxu0 0.0
        %2432 = vmatprep.subr.mxu0 0.0
        %2433 = vmatpush1.msra.mxu0 0.0
        %2434 = vmatprep.subr.mxu0 0.0
        %2435 = vmatpush1.msra.mxu0 0.0
        %2436 = vmatprep.subr.mxu0 0.0
        %2437 = vmatpush1.msra.mxu0 0.0
        %2438 = vmatprep.subr.mxu0 0.0
        %2439 = vmatpush1.msra.mxu0 0.0
        %2440 = vmatprep.subr.mxu0 0.0
        %2441 = vmatpush1.msra.mxu0 0.0
        %2442 = vmatprep.subr.mxu0 0.0
        %2443 = vmatpush1.msra.mxu0 0.0
        %2444 = vmatprep.subr.mxu0 0.0
        %2445 = vmatpush1.msra.mxu0 0.0
        %2446 = vmatprep.subr.mxu0 0.0
        %2447 = vmatpush1.msra.mxu0 0.0
        %2448 = vmatprep.subr.mxu0 0.0
        %2449 = vmatpush1.msra.mxu0 0.0
        %2450 = vmatprep.subr.mxu0 0.0
        %2451 = vmatpush1.msra.mxu0 0.0
        %2452 = vmatprep.subr.mxu0 0.0
        %2453 = vmatpush1.msra.mxu0 0.0
        %2454 = vmatprep.subr.mxu0 0.0
        %2455 = vmatpush1.msra.mxu0 0.0
        %2456 = vmatprep.subr.mxu0 0.0
        %2457 = vmatpush1.msra.mxu0 0.0
        %2458 = vmatprep.subr.mxu0 0.0
        %2459 = vmatpush1.msra.mxu0 0.0
        %2460 = vmatprep.mubr.f32.mxu0 0.0
        %v2461 = vand.u32 %v2147, 4294901760
        %2462 = vmatmul.mubr.f32.gmra.mrb[0].mxu0 %v2461
        %v2463 = vpop.f32.mrb[0].mxu0
        %v2464 = vadd.f32 %v2243, %v2463
        %v2465 = vpop.f32.mrb[0].mxu0
        %2466 = vmatprep.mubr.f32.mxu0 0.0
        %v2467 = vand.u32 %v2148, 4294901760
        %2468 = vmatmul.mubr.f32.gmra.mrb[0].mxu0 %v2467
        %v2469 = vpop.f32.mrb[0].mxu0
        %v2470 = vadd.f32 %v2253, %v2469
        %v2471 = vpop.f32.mrb[0].mxu0
        %2472 = vmatprep.mubr.f32.mxu0 0.0
        %v2473 = vand.u32 %v2149, 4294901760
        %2474 = vmatmul.mubr.f32.gmra.mrb[0].mxu0 %v2473
        %v2475 = vpop.f32.mrb[0].mxu0
        %v2476 = vadd.f32 %v2263, %v2475
        %v2477 = vpop.f32.mrb[0].mxu0
        %2478 = vmatprep.mubr.f32.mxu0 0.0
        %v2479 = vand.u32 %v2150, 4294901760
        %2480 = vmatmul.mubr.f32.gmra.mrb[0].mxu0 %v2479
        %v2481 = vpop.f32.mrb[0].mxu0
        %v2482 = vadd.f32 %v2273, %v2481
        %v2483 = vpop.f32.mrb[0].mxu0
        %2484 = vmatprep.mubr.f32.mxu0 0.0
        %v2485 = vand.u32 %v2151, 4294901760
        %2486 = vmatmul.mubr.f32.gmra.mrb[0].mxu0 %v2485
        %v2487 = vpop.f32.mrb[0].mxu0
        %v2488 = vadd.f32 %v2283, %v2487
        %v2489 = vpop.f32.mrb[0].mxu0
        %2490 = vmatprep.mubr.f32.mxu0 0.0
        %v2491 = vand.u32 %v2152, 4294901760
        %2492 = vmatmul.mubr.f32.gmra.mrb[0].mxu0 %v2491
        %v2493 = vpop.f32.mrb[0].mxu0
        %v2494 = vadd.f32 %v2293, %v2493
        %v2495 = vpop.f32.mrb[0].mxu0
        %2496 = vmatprep.mubr.f32.mxu0 0.0
        %v2497 = vand.u32 %v2153, 4294901760
        %2498 = vmatmul.mubr.f32.gmra.mrb[0].mxu0 %v2497
        %v2499 = vpop.f32.mrb[0].mxu0
        %v2500 = vadd.f32 %v2303, %v2499
        %v2501 = vpop.f32.mrb[0].mxu0
        %2502 = vmatprep.mubr.f32.mxu0 0.0
        %v2503 = vand.u32 %v2154, 4294901760
        %2504 = vmatmul.mubr.f32.gmra.mrb[0].mxu0 %v2503
        %v2505 = vpop.f32.mrb[0].mxu0
        %v2506 = vadd.f32 %v2313, %v2505
        %v2507 = vpop.f32.mrb[0].mxu0
        %2508 = vdwg.mxu0
        %2509 = vmatprep.subr.mxu0 0.0
        %v2510 = vand.u32 %v231, 4294901760
        %v2511 = vsub.f32 %v231, %v2510
        %2512 = vmatpush1.msra.mxu0 %v2511
        %2513 = vmatprep.subr.mxu0 0.0
        %v2514 = vand.u32 %v232, 4294901760
        %v2515 = vsub.f32 %v232, %v2514
        %2516 = vmatpush1.msra.mxu0 %v2515
        %2517 = vmatprep.subr.mxu0 0.0
        %v2518 = vand.u32 %v233, 4294901760
        %v2519 = vsub.f32 %v233, %v2518
        %2520 = vmatpush1.msra.mxu0 %v2519
        %2521 = vmatprep.subr.mxu0 0.0
        %v2522 = vand.u32 %v234, 4294901760
        %v2523 = vsub.f32 %v234, %v2522
        %2524 = vmatpush1.msra.mxu0 %v2523
        %2525 = vmatprep.subr.mxu0 0.0
        %v2526 = vand.u32 %v235, 4294901760
        %v2527 = vsub.f32 %v235, %v2526
        %2528 = vmatpush1.msra.mxu0 %v2527
        %2529 = vmatprep.subr.mxu0 0.0
        %v2530 = vand.u32 %v236, 4294901760
        %v2531 = vsub.f32 %v236, %v2530
        %2532 = vmatpush1.msra.mxu0 %v2531
        %2533 = vmatprep.subr.mxu0 0.0
        %v2534 = vand.u32 %v237, 4294901760
        %v2535 = vsub.f32 %v237, %v2534
        %2536 = vmatpush1.msra.mxu0 %v2535
        %2537 = vmatprep.subr.mxu0 0.0
        %v2538 = vand.u32 %v238, 4294901760
        %v2539 = vsub.f32 %v238, %v2538
        %2540 = vmatpush1.msra.mxu0 %v2539
        %2541 = vmatprep.subr.mxu0 0.0
        %v2542 = vand.u32 %v239, 4294901760
        %v2543 = vsub.f32 %v239, %v2542
        %2544 = vmatpush1.msra.mxu0 %v2543
        %2545 = vmatprep.subr.mxu0 0.0
        %v2546 = vand.u32 %v240, 4294901760
        %v2547 = vsub.f32 %v240, %v2546
        %2548 = vmatpush1.msra.mxu0 %v2547
        %2549 = vmatprep.subr.mxu0 0.0
        %v2550 = vand.u32 %v241, 4294901760
        %v2551 = vsub.f32 %v241, %v2550
        %2552 = vmatpush1.msra.mxu0 %v2551
        %2553 = vmatprep.subr.mxu0 0.0
        %v2554 = vand.u32 %v242, 4294901760
        %v2555 = vsub.f32 %v242, %v2554
        %2556 = vmatpush1.msra.mxu0 %v2555
        %2557 = vmatprep.subr.mxu0 0.0
        %v2558 = vand.u32 %v243, 4294901760
        %v2559 = vsub.f32 %v243, %v2558
        %2560 = vmatpush1.msra.mxu0 %v2559
        %2561 = vmatprep.subr.mxu0 0.0
        %v2562 = vand.u32 %v244, 4294901760
        %v2563 = vsub.f32 %v244, %v2562
        %2564 = vmatpush1.msra.mxu0 %v2563
        %2565 = vmatprep.subr.mxu0 0.0
        %v2566 = vand.u32 %v245, 4294901760
        %v2567 = vsub.f32 %v245, %v2566
        %2568 = vmatpush1.msra.mxu0 %v2567
        %2569 = vmatprep.subr.mxu0 0.0
        %v2570 = vand.u32 %v246, 4294901760
        %v2571 = vsub.f32 %v246, %v2570
        %2572 = vmatpush1.msra.mxu0 %v2571
        %2573 = vmatprep.subr.mxu0 0.0
        %2574 = vmatpush1.msra.mxu0 0.0
        %2575 = vmatprep.subr.mxu0 0.0
        %2576 = vmatpush1.msra.mxu0 0.0
        %2577 = vmatprep.subr.mxu0 0.0
        %2578 = vmatpush1.msra.mxu0 0.0
        %2579 = vmatprep.subr.mxu0 0.0
        %2580 = vmatpush1.msra.mxu0 0.0
        %2581 = vmatprep.subr.mxu0 0.0
        %2582 = vmatpush1.msra.mxu0 0.0
        %2583 = vmatprep.subr.mxu0 0.0
        %2584 = vmatpush1.msra.mxu0 0.0
        %2585 = vmatprep.subr.mxu0 0.0
        %2586 = vmatpush1.msra.mxu0 0.0
        %2587 = vmatprep.subr.mxu0 0.0
        %2588 = vmatpush1.msra.mxu0 0.0
        %2589 = vmatprep.subr.mxu0 0.0
        %2590 = vmatpush1.msra.mxu0 0.0
        %2591 = vmatprep.subr.mxu0 0.0
        %2592 = vmatpush1.msra.mxu0 0.0
        %2593 = vmatprep.subr.mxu0 0.0
        %2594 = vmatpush1.msra.mxu0 0.0
        %2595 = vmatprep.subr.mxu0 0.0
        %2596 = vmatpush1.msra.mxu0 0.0
        %2597 = vmatprep.subr.mxu0 0.0
        %2598 = vmatpush1.msra.mxu0 0.0
        %2599 = vmatprep.subr.mxu0 0.0
        %2600 = vmatpush1.msra.mxu0 0.0
        %2601 = vmatprep.subr.mxu0 0.0
        %2602 = vmatpush1.msra.mxu0 0.0
        %2603 = vmatprep.subr.mxu0 0.0
        %2604 = vmatpush1.msra.mxu0 0.0
        %2605 = vmatprep.mubr.f32.mxu0 0.0
        %v2606 = vand.u32 %v2147, 4294901760
        %v2607 = vsub.f32 %v2147, %v2606
        %2608 = vmatmul.mubr.f32.gmra.mrb[0].mxu0 %v2607
        %v2609 = vpop.f32.mrb[0].mxu0
        %v2610 = vadd.f32 %v2464, %v2609
        %v2611 = vpop.f32.mrb[0].mxu0
        %2612 = vmatprep.mubr.f32.mxu0 0.0
        %v2613 = vand.u32 %v2148, 4294901760
        %v2614 = vsub.f32 %v2148, %v2613
        %2615 = vmatmul.mubr.f32.gmra.mrb[0].mxu0 %v2614
        %v2616 = vpop.f32.mrb[0].mxu0
        %v2617 = vadd.f32 %v2470, %v2616
        %v2618 = vpop.f32.mrb[0].mxu0
        %2619 = vmatprep.mubr.f32.mxu0 0.0
        %v2620 = vand.u32 %v2149, 4294901760
        %v2621 = vsub.f32 %v2149, %v2620
        %2622 = vmatmul.mubr.f32.gmra.mrb[0].mxu0 %v2621
        %v2623 = vpop.f32.mrb[0].mxu0
        %v2624 = vadd.f32 %v2476, %v2623
        %v2625 = vpop.f32.mrb[0].mxu0
        %2626 = vmatprep.mubr.f32.mxu0 0.0
        %v2627 = vand.u32 %v2150, 4294901760
        %v2628 = vsub.f32 %v2150, %v2627
        %2629 = vmatmul.mubr.f32.gmra.mrb[0].mxu0 %v2628
        %v2630 = vpop.f32.mrb[0].mxu0
        %v2631 = vadd.f32 %v2482, %v2630
        %v2632 = vpop.f32.mrb[0].mxu0
        %2633 = vmatprep.mubr.f32.mxu0 0.0
        %v2634 = vand.u32 %v2151, 4294901760
        %v2635 = vsub.f32 %v2151, %v2634
        %2636 = vmatmul.mubr.f32.gmra.mrb[0].mxu0 %v2635
        %v2637 = vpop.f32.mrb[0].mxu0
        %v2638 = vadd.f32 %v2488, %v2637
        %v2639 = vpop.f32.mrb[0].mxu0
        %2640 = vmatprep.mubr.f32.mxu0 0.0
        %v2641 = vand.u32 %v2152, 4294901760
        %v2642 = vsub.f32 %v2152, %v2641
        %2643 = vmatmul.mubr.f32.gmra.mrb[0].mxu0 %v2642
        %v2644 = vpop.f32.mrb[0].mxu0
        %v2645 = vadd.f32 %v2494, %v2644
        %v2646 = vpop.f32.mrb[0].mxu0
        %2647 = vmatprep.mubr.f32.mxu0 0.0
        %v2648 = vand.u32 %v2153, 4294901760
        %v2649 = vsub.f32 %v2153, %v2648
        %2650 = vmatmul.mubr.f32.gmra.mrb[0].mxu0 %v2649
        %v2651 = vpop.f32.mrb[0].mxu0
        %v2652 = vadd.f32 %v2500, %v2651
        %v2653 = vpop.f32.mrb[0].mxu0
        %2654 = vmatprep.mubr.f32.mxu0 0.0
        %v2655 = vand.u32 %v2154, 4294901760
        %v2656 = vsub.f32 %v2154, %v2655
        %2657 = vmatmul.mubr.f32.gmra.mrb[0].mxu0 %v2656
        %v2658 = vpop.f32.mrb[0].mxu0
        %v2659 = vadd.f32 %v2506, %v2658
        %v2660 = vpop.f32.mrb[0].mxu0
        %2661 = vdwg.mxu0
        %2662 = vmatprep.subr.mxu0 0.0
        %v2663 = vand.u32 %v231, 4294901760
        %2664 = vmatpush1.msra.mxu0 %v2663
        %2665 = vmatprep.subr.mxu0 0.0
        %v2666 = vand.u32 %v232, 4294901760
        %2667 = vmatpush1.msra.mxu0 %v2666
        %2668 = vmatprep.subr.mxu0 0.0
        %v2669 = vand.u32 %v233, 4294901760
        %2670 = vmatpush1.msra.mxu0 %v2669
        %2671 = vmatprep.subr.mxu0 0.0
        %v2672 = vand.u32 %v234, 4294901760
        %2673 = vmatpush1.msra.mxu0 %v2672
        %2674 = vmatprep.subr.mxu0 0.0
        %v2675 = vand.u32 %v235, 4294901760
        %2676 = vmatpush1.msra.mxu0 %v2675
        %2677 = vmatprep.subr.mxu0 0.0
        %v2678 = vand.u32 %v236, 4294901760
        %2679 = vmatpush1.msra.mxu0 %v2678
        %2680 = vmatprep.subr.mxu0 0.0
        %v2681 = vand.u32 %v237, 4294901760
        %2682 = vmatpush1.msra.mxu0 %v2681
        %2683 = vmatprep.subr.mxu0 0.0
        %v2684 = vand.u32 %v238, 4294901760
        %2685 = vmatpush1.msra.mxu0 %v2684
        %2686 = vmatprep.subr.mxu0 0.0
        %v2687 = vand.u32 %v239, 4294901760
        %2688 = vmatpush1.msra.mxu0 %v2687
        %2689 = vmatprep.subr.mxu0 0.0
        %v2690 = vand.u32 %v240, 4294901760
        %2691 = vmatpush1.msra.mxu0 %v2690
        %2692 = vmatprep.subr.mxu0 0.0
        %v2693 = vand.u32 %v241, 4294901760
        %2694 = vmatpush1.msra.mxu0 %v2693
        %2695 = vmatprep.subr.mxu0 0.0
        %v2696 = vand.u32 %v242, 4294901760
        %2697 = vmatpush1.msra.mxu0 %v2696
        %2698 = vmatprep.subr.mxu0 0.0
        %v2699 = vand.u32 %v243, 4294901760
        %2700 = vmatpush1.msra.mxu0 %v2699
        %2701 = vmatprep.subr.mxu0 0.0
        %v2702 = vand.u32 %v244, 4294901760
        %2703 = vmatpush1.msra.mxu0 %v2702
        %2704 = vmatprep.subr.mxu0 0.0
        %v2705 = vand.u32 %v245, 4294901760
        %2706 = vmatpush1.msra.mxu0 %v2705
        %2707 = vmatprep.subr.mxu0 0.0
        %v2708 = vand.u32 %v246, 4294901760
        %2709 = vmatpush1.msra.mxu0 %v2708
        %2710 = vmatprep.subr.mxu0 0.0
        %2711 = vmatpush1.msra.mxu0 0.0
        %2712 = vmatprep.subr.mxu0 0.0
        %2713 = vmatpush1.msra.mxu0 0.0
        %2714 = vmatprep.subr.mxu0 0.0
        %2715 = vmatpush1.msra.mxu0 0.0
        %2716 = vmatprep.subr.mxu0 0.0
        %2717 = vmatpush1.msra.mxu0 0.0
        %2718 = vmatprep.subr.mxu0 0.0
        %2719 = vmatpush1.msra.mxu0 0.0
        %2720 = vmatprep.subr.mxu0 0.0
        %2721 = vmatpush1.msra.mxu0 0.0
        %2722 = vmatprep.subr.mxu0 0.0
        %2723 = vmatpush1.msra.mxu0 0.0
        %2724 = vmatprep.subr.mxu0 0.0
        %2725 = vmatpush1.msra.mxu0 0.0
        %2726 = vmatprep.subr.mxu0 0.0
        %2727 = vmatpush1.msra.mxu0 0.0
        %2728 = vmatprep.subr.mxu0 0.0
        %2729 = vmatpush1.msra.mxu0 0.0
        %2730 = vmatprep.subr.mxu0 0.0
        %2731 = vmatpush1.msra.mxu0 0.0
        %2732 = vmatprep.subr.mxu0 0.0
        %2733 = vmatpush1.msra.mxu0 0.0
        %2734 = vmatprep.subr.mxu0 0.0
        %2735 = vmatpush1.msra.mxu0 0.0
        %2736 = vmatprep.subr.mxu0 0.0
        %2737 = vmatpush1.msra.mxu0 0.0
        %2738 = vmatprep.subr.mxu0 0.0
        %2739 = vmatpush1.msra.mxu0 0.0
        %2740 = vmatprep.subr.mxu0 0.0
        %2741 = vmatpush1.msra.mxu0 0.0
        %2742 = vmatprep.mubr.f32.mxu0 0.0
        %v2743 = vand.u32 %v2147, 4294901760
        %v2744 = vsub.f32 %v2147, %v2743
        %v2745 = vand.u32 %v2744, 4294901760
        %2746 = vmatmul.mubr.f32.gmra.mrb[0].mxu0 %v2745
        %v2747 = vpop.f32.mrb[0].mxu0
        %v2748 = vadd.f32 %v2610, %v2747
        %v2749 = vpop.f32.mrb[0].mxu0
        %2750 = vmatprep.mubr.f32.mxu0 0.0
        %v2751 = vand.u32 %v2148, 4294901760
        %v2752 = vsub.f32 %v2148, %v2751
        %v2753 = vand.u32 %v2752, 4294901760
        %2754 = vmatmul.mubr.f32.gmra.mrb[0].mxu0 %v2753
        %v2755 = vpop.f32.mrb[0].mxu0
        %v2756 = vadd.f32 %v2617, %v2755
        %v2757 = vpop.f32.mrb[0].mxu0
        %2758 = vmatprep.mubr.f32.mxu0 0.0
        %v2759 = vand.u32 %v2149, 4294901760
        %v2760 = vsub.f32 %v2149, %v2759
        %v2761 = vand.u32 %v2760, 4294901760
        %2762 = vmatmul.mubr.f32.gmra.mrb[0].mxu0 %v2761
        %v2763 = vpop.f32.mrb[0].mxu0
        %v2764 = vadd.f32 %v2624, %v2763
        %v2765 = vpop.f32.mrb[0].mxu0
        %2766 = vmatprep.mubr.f32.mxu0 0.0
        %v2767 = vand.u32 %v2150, 4294901760
        %v2768 = vsub.f32 %v2150, %v2767
        %v2769 = vand.u32 %v2768, 4294901760
        %2770 = vmatmul.mubr.f32.gmra.mrb[0].mxu0 %v2769
        %v2771 = vpop.f32.mrb[0].mxu0
        %v2772 = vadd.f32 %v2631, %v2771
        %v2773 = vpop.f32.mrb[0].mxu0
        %2774 = vmatprep.mubr.f32.mxu0 0.0
        %v2775 = vand.u32 %v2151, 4294901760
        %v2776 = vsub.f32 %v2151, %v2775
        %v2777 = vand.u32 %v2776, 4294901760
        %2778 = vmatmul.mubr.f32.gmra.mrb[0].mxu0 %v2777
        %v2779 = vpop.f32.mrb[0].mxu0
        %v2780 = vadd.f32 %v2638, %v2779
        %v2781 = vpop.f32.mrb[0].mxu0
        %2782 = vmatprep.mubr.f32.mxu0 0.0
        %v2783 = vand.u32 %v2152, 4294901760
        %v2784 = vsub.f32 %v2152, %v2783
        %v2785 = vand.u32 %v2784, 4294901760
        %2786 = vmatmul.mubr.f32.gmra.mrb[0].mxu0 %v2785
        %v2787 = vpop.f32.mrb[0].mxu0
        %v2788 = vadd.f32 %v2645, %v2787
        %v2789 = vpop.f32.mrb[0].mxu0
        %2790 = vmatprep.mubr.f32.mxu0 0.0
        %v2791 = vand.u32 %v2153, 4294901760
        %v2792 = vsub.f32 %v2153, %v2791
        %v2793 = vand.u32 %v2792, 4294901760
        %2794 = vmatmul.mubr.f32.gmra.mrb[0].mxu0 %v2793
        %v2795 = vpop.f32.mrb[0].mxu0
        %v2796 = vadd.f32 %v2652, %v2795
        %v2797 = vpop.f32.mrb[0].mxu0
        %2798 = vmatprep.mubr.f32.mxu0 0.0
        %v2799 = vand.u32 %v2154, 4294901760
        %v2800 = vsub.f32 %v2154, %v2799
        %v2801 = vand.u32 %v2800, 4294901760
        %2802 = vmatmul.mubr.f32.gmra.mrb[0].mxu0 %v2801
        %v2803 = vpop.f32.mrb[0].mxu0
        %v2804 = vadd.f32 %v2659, %v2803
        %v2805 = vpop.f32.mrb[0].mxu0
        %2806 = vdwg.mxu0
        %2807 = vmatprep.subr.mxu0 0.0
        %v2808 = vand.u32 %v231, 4294901760
        %v2809 = vsub.f32 %v231, %v2808
        %v2810 = vand.u32 %v2809, 4294901760
        %2811 = vmatpush1.msra.mxu0 %v2810
        %2812 = vmatprep.subr.mxu0 0.0
        %v2813 = vand.u32 %v232, 4294901760
        %v2814 = vsub.f32 %v232, %v2813
        %v2815 = vand.u32 %v2814, 4294901760
        %2816 = vmatpush1.msra.mxu0 %v2815
        %2817 = vmatprep.subr.mxu0 0.0
        %v2818 = vand.u32 %v233, 4294901760
        %v2819 = vsub.f32 %v233, %v2818
        %v2820 = vand.u32 %v2819, 4294901760
        %2821 = vmatpush1.msra.mxu0 %v2820
        %2822 = vmatprep.subr.mxu0 0.0
        %v2823 = vand.u32 %v234, 4294901760
        %v2824 = vsub.f32 %v234, %v2823
        %v2825 = vand.u32 %v2824, 4294901760
        %2826 = vmatpush1.msra.mxu0 %v2825
        %2827 = vmatprep.subr.mxu0 0.0
        %v2828 = vand.u32 %v235, 4294901760
        %v2829 = vsub.f32 %v235, %v2828
        %v2830 = vand.u32 %v2829, 4294901760
        %2831 = vmatpush1.msra.mxu0 %v2830
        %2832 = vmatprep.subr.mxu0 0.0
        %v2833 = vand.u32 %v236, 4294901760
        %v2834 = vsub.f32 %v236, %v2833
        %v2835 = vand.u32 %v2834, 4294901760
        %2836 = vmatpush1.msra.mxu0 %v2835
        %2837 = vmatprep.subr.mxu0 0.0
        %v2838 = vand.u32 %v237, 4294901760
        %v2839 = vsub.f32 %v237, %v2838
        %v2840 = vand.u32 %v2839, 4294901760
        %2841 = vmatpush1.msra.mxu0 %v2840
        %2842 = vmatprep.subr.mxu0 0.0
        %v2843 = vand.u32 %v238, 4294901760
        %v2844 = vsub.f32 %v238, %v2843
        %v2845 = vand.u32 %v2844, 4294901760
        %2846 = vmatpush1.msra.mxu0 %v2845
        %2847 = vmatprep.subr.mxu0 0.0
        %v2848 = vand.u32 %v239, 4294901760
        %v2849 = vsub.f32 %v239, %v2848
        %v2850 = vand.u32 %v2849, 4294901760
        %2851 = vmatpush1.msra.mxu0 %v2850
        %2852 = vmatprep.subr.mxu0 0.0
        %v2853 = vand.u32 %v240, 4294901760
        %v2854 = vsub.f32 %v240, %v2853
        %v2855 = vand.u32 %v2854, 4294901760
        %2856 = vmatpush1.msra.mxu0 %v2855
        %2857 = vmatprep.subr.mxu0 0.0
        %v2858 = vand.u32 %v241, 4294901760
        %v2859 = vsub.f32 %v241, %v2858
        %v2860 = vand.u32 %v2859, 4294901760
        %2861 = vmatpush1.msra.mxu0 %v2860
        %2862 = vmatprep.subr.mxu0 0.0
        %v2863 = vand.u32 %v242, 4294901760
        %v2864 = vsub.f32 %v242, %v2863
        %v2865 = vand.u32 %v2864, 4294901760
        %2866 = vmatpush1.msra.mxu0 %v2865
        %2867 = vmatprep.subr.mxu0 0.0
        %v2868 = vand.u32 %v243, 4294901760
        %v2869 = vsub.f32 %v243, %v2868
        %v2870 = vand.u32 %v2869, 4294901760
        %2871 = vmatpush1.msra.mxu0 %v2870
        %2872 = vmatprep.subr.mxu0 0.0
        %v2873 = vand.u32 %v244, 4294901760
        %v2874 = vsub.f32 %v244, %v2873
        %v2875 = vand.u32 %v2874, 4294901760
        %2876 = vmatpush1.msra.mxu0 %v2875
        %2877 = vmatprep.subr.mxu0 0.0
        %v2878 = vand.u32 %v245, 4294901760
        %v2879 = vsub.f32 %v245, %v2878
        %v2880 = vand.u32 %v2879, 4294901760
        %2881 = vmatpush1.msra.mxu0 %v2880
        %2882 = vmatprep.subr.mxu0 0.0
        %v2883 = vand.u32 %v246, 4294901760
        %v2884 = vsub.f32 %v246, %v2883
        %v2885 = vand.u32 %v2884, 4294901760
        %2886 = vmatpush1.msra.mxu0 %v2885
        %2887 = vmatprep.subr.mxu0 0.0
        %2888 = vmatpush1.msra.mxu0 0.0
        %2889 = vmatprep.subr.mxu0 0.0
        %2890 = vmatpush1.msra.mxu0 0.0
        %2891 = vmatprep.subr.mxu0 0.0
        %2892 = vmatpush1.msra.mxu0 0.0
        %2893 = vmatprep.subr.mxu0 0.0
        %2894 = vmatpush1.msra.mxu0 0.0
        %2895 = vmatprep.subr.mxu0 0.0
        %2896 = vmatpush1.msra.mxu0 0.0
        %2897 = vmatprep.subr.mxu0 0.0
        %2898 = vmatpush1.msra.mxu0 0.0
        %2899 = vmatprep.subr.mxu0 0.0
        %2900 = vmatpush1.msra.mxu0 0.0
        %2901 = vmatprep.subr.mxu0 0.0
        %2902 = vmatpush1.msra.mxu0 0.0
        %2903 = vmatprep.subr.mxu0 0.0
        %2904 = vmatpush1.msra.mxu0 0.0
        %2905 = vmatprep.subr.mxu0 0.0
        %2906 = vmatpush1.msra.mxu0 0.0
        %2907 = vmatprep.subr.mxu0 0.0
        %2908 = vmatpush1.msra.mxu0 0.0
        %2909 = vmatprep.subr.mxu0 0.0
        %2910 = vmatpush1.msra.mxu0 0.0
        %2911 = vmatprep.subr.mxu0 0.0
        %2912 = vmatpush1.msra.mxu0 0.0
        %2913 = vmatprep.subr.mxu0 0.0
        %2914 = vmatpush1.msra.mxu0 0.0
        %2915 = vmatprep.subr.mxu0 0.0
        %2916 = vmatpush1.msra.mxu0 0.0
        %2917 = vmatprep.subr.mxu0 0.0
        %2918 = vmatpush1.msra.mxu0 0.0
        %2919 = vmatprep.mubr.f32.mxu0 0.0
        %v2920 = vand.u32 %v2147, 4294901760
        %2921 = vmatmul.mubr.f32.gmra.mrb[0].mxu0 %v2920
        %v2922 = vpop.f32.mrb[0].mxu0
        %v2923 = vadd.f32 %v2748, %v2922
        %v2924 = vpop.f32.mrb[0].mxu0
        %2925 = vmatprep.mubr.f32.mxu0 0.0
        %v2926 = vand.u32 %v2148, 4294901760
        %2927 = vmatmul.mubr.f32.gmra.mrb[0].mxu0 %v2926
        %v2928 = vpop.f32.mrb[0].mxu0
        %v2929 = vadd.f32 %v2756, %v2928
        %v2930 = vpop.f32.mrb[0].mxu0
        %2931 = vmatprep.mubr.f32.mxu0 0.0
        %v2932 = vand.u32 %v2149, 4294901760
        %2933 = vmatmul.mubr.f32.gmra.mrb[0].mxu0 %v2932
        %v2934 = vpop.f32.mrb[0].mxu0
        %v2935 = vadd.f32 %v2764, %v2934
        %v2936 = vpop.f32.mrb[0].mxu0
        %2937 = vmatprep.mubr.f32.mxu0 0.0
        %v2938 = vand.u32 %v2150, 4294901760
        %2939 = vmatmul.mubr.f32.gmra.mrb[0].mxu0 %v2938
        %v2940 = vpop.f32.mrb[0].mxu0
        %v2941 = vadd.f32 %v2772, %v2940
        %v2942 = vpop.f32.mrb[0].mxu0
        %2943 = vmatprep.mubr.f32.mxu0 0.0
        %v2944 = vand.u32 %v2151, 4294901760
        %2945 = vmatmul.mubr.f32.gmra.mrb[0].mxu0 %v2944
        %v2946 = vpop.f32.mrb[0].mxu0
        %v2947 = vadd.f32 %v2780, %v2946
        %v2948 = vpop.f32.mrb[0].mxu0
        %2949 = vmatprep.mubr.f32.mxu0 0.0
        %v2950 = vand.u32 %v2152, 4294901760
        %2951 = vmatmul.mubr.f32.gmra.mrb[0].mxu0 %v2950
        %v2952 = vpop.f32.mrb[0].mxu0
        %v2953 = vadd.f32 %v2788, %v2952
        %v2954 = vpop.f32.mrb[0].mxu0
        %2955 = vmatprep.mubr.f32.mxu0 0.0
        %v2956 = vand.u32 %v2153, 4294901760
        %2957 = vmatmul.mubr.f32.gmra.mrb[0].mxu0 %v2956
        %v2958 = vpop.f32.mrb[0].mxu0
        %v2959 = vadd.f32 %v2796, %v2958
        %v2960 = vpop.f32.mrb[0].mxu0
        %2961 = vmatprep.mubr.f32.mxu0 0.0
        %v2962 = vand.u32 %v2154, 4294901760
        %2963 = vmatmul.mubr.f32.gmra.mrb[0].mxu0 %v2962
        %v2964 = vpop.f32.mrb[0].mxu0
        %v2965 = vadd.f32 %v2804, %v2964
        %v2966 = vpop.f32.mrb[0].mxu0
        %2967 = vdwg.mxu0
        %2968 = vmatprep.subr.mxu0 0.0
        %v2969 = vand.u32 %v231, 4294901760
        %2970 = vmatpush1.msra.mxu0 %v2969
        %2971 = vmatprep.subr.mxu0 0.0
        %v2972 = vand.u32 %v232, 4294901760
        %2973 = vmatpush1.msra.mxu0 %v2972
        %2974 = vmatprep.subr.mxu0 0.0
        %v2975 = vand.u32 %v233, 4294901760
        %2976 = vmatpush1.msra.mxu0 %v2975
        %2977 = vmatprep.subr.mxu0 0.0
        %v2978 = vand.u32 %v234, 4294901760
        %2979 = vmatpush1.msra.mxu0 %v2978
        %2980 = vmatprep.subr.mxu0 0.0
        %v2981 = vand.u32 %v235, 4294901760
        %2982 = vmatpush1.msra.mxu0 %v2981
        %2983 = vmatprep.subr.mxu0 0.0
        %v2984 = vand.u32 %v236, 4294901760
        %2985 = vmatpush1.msra.mxu0 %v2984
        %2986 = vmatprep.subr.mxu0 0.0
        %v2987 = vand.u32 %v237, 4294901760
        %2988 = vmatpush1.msra.mxu0 %v2987
        %2989 = vmatprep.subr.mxu0 0.0
        %v2990 = vand.u32 %v238, 4294901760
        %2991 = vmatpush1.msra.mxu0 %v2990
        %2992 = vmatprep.subr.mxu0 0.0
        %v2993 = vand.u32 %v239, 4294901760
        %2994 = vmatpush1.msra.mxu0 %v2993
        %2995 = vmatprep.subr.mxu0 0.0
        %v2996 = vand.u32 %v240, 4294901760
        %2997 = vmatpush1.msra.mxu0 %v2996
        %2998 = vmatprep.subr.mxu0 0.0
        %v2999 = vand.u32 %v241, 4294901760
        %3000 = vmatpush1.msra.mxu0 %v2999
        %3001 = vmatprep.subr.mxu0 0.0
        %v3002 = vand.u32 %v242, 4294901760
        %3003 = vmatpush1.msra.mxu0 %v3002
        %3004 = vmatprep.subr.mxu0 0.0
        %v3005 = vand.u32 %v243, 4294901760
        %3006 = vmatpush1.msra.mxu0 %v3005
        %3007 = vmatprep.subr.mxu0 0.0
        %v3008 = vand.u32 %v244, 4294901760
        %3009 = vmatpush1.msra.mxu0 %v3008
        %3010 = vmatprep.subr.mxu0 0.0
        %v3011 = vand.u32 %v245, 4294901760
        %3012 = vmatpush1.msra.mxu0 %v3011
        %3013 = vmatprep.subr.mxu0 0.0
        %v3014 = vand.u32 %v246, 4294901760
        %3015 = vmatpush1.msra.mxu0 %v3014
        %3016 = vmatprep.subr.mxu0 0.0
        %3017 = vmatpush1.msra.mxu0 0.0
        %3018 = vmatprep.subr.mxu0 0.0
        %3019 = vmatpush1.msra.mxu0 0.0
        %3020 = vmatprep.subr.mxu0 0.0
        %3021 = vmatpush1.msra.mxu0 0.0
        %3022 = vmatprep.subr.mxu0 0.0
        %3023 = vmatpush1.msra.mxu0 0.0
        %3024 = vmatprep.subr.mxu0 0.0
        %3025 = vmatpush1.msra.mxu0 0.0
        %3026 = vmatprep.subr.mxu0 0.0
        %3027 = vmatpush1.msra.mxu0 0.0
        %3028 = vmatprep.subr.mxu0 0.0
        %3029 = vmatpush1.msra.mxu0 0.0
        %3030 = vmatprep.subr.mxu0 0.0
        %3031 = vmatpush1.msra.mxu0 0.0
        %3032 = vmatprep.subr.mxu0 0.0
        %3033 = vmatpush1.msra.mxu0 0.0
        %3034 = vmatprep.subr.mxu0 0.0
        %3035 = vmatpush1.msra.mxu0 0.0
        %3036 = vmatprep.subr.mxu0 0.0
        %3037 = vmatpush1.msra.mxu0 0.0
        %3038 = vmatprep.subr.mxu0 0.0
        %3039 = vmatpush1.msra.mxu0 0.0
        %3040 = vmatprep.subr.mxu0 0.0
        %3041 = vmatpush1.msra.mxu0 0.0
        %3042 = vmatprep.subr.mxu0 0.0
        %3043 = vmatpush1.msra.mxu0 0.0
        %3044 = vmatprep.subr.mxu0 0.0
        %3045 = vmatpush1.msra.mxu0 0.0
        %3046 = vmatprep.subr.mxu0 0.0
        %3047 = vmatpush1.msra.mxu0 0.0
        %3048 = vmatprep.mubr.f32.mxu0 0.0
        %v3049 = vand.u32 %v2147, 4294901760
        %3050 = vmatmul.mubr.f32.gmra.mrb[0].mxu0 %v3049
        %v3051 = vpop.f32.mrb[0].mxu0
        %v3052 = vadd.f32 %v2923, %v3051
        %v3053 = vpop.f32.mrb[0].mxu0
        %3054 = vmatprep.mubr.f32.mxu0 0.0
        %v3055 = vand.u32 %v2148, 4294901760
        %3056 = vmatmul.mubr.f32.gmra.mrb[0].mxu0 %v3055
        %v3057 = vpop.f32.mrb[0].mxu0
        %v3058 = vadd.f32 %v2929, %v3057
        %v3059 = vpop.f32.mrb[0].mxu0
        %3060 = vmatprep.mubr.f32.mxu0 0.0
        %v3061 = vand.u32 %v2149, 4294901760
        %3062 = vmatmul.mubr.f32.gmra.mrb[0].mxu0 %v3061
        %v3063 = vpop.f32.mrb[0].mxu0
        %v3064 = vadd.f32 %v2935, %v3063
        %v3065 = vpop.f32.mrb[0].mxu0
        %3066 = vmatprep.mubr.f32.mxu0 0.0
        %v3067 = vand.u32 %v2150, 4294901760
        %3068 = vmatmul.mubr.f32.gmra.mrb[0].mxu0 %v3067
        %v3069 = vpop.f32.mrb[0].mxu0
        %v3070 = vadd.f32 %v2941, %v3069
        %v3071 = vpop.f32.mrb[0].mxu0
        %3072 = vmatprep.mubr.f32.mxu0 0.0
        %v3073 = vand.u32 %v2151, 4294901760
        %3074 = vmatmul.mubr.f32.gmra.mrb[0].mxu0 %v3073
        %v3075 = vpop.f32.mrb[0].mxu0
        %v3076 = vadd.f32 %v2947, %v3075
        %v3077 = vpop.f32.mrb[0].mxu0
        %3078 = vmatprep.mubr.f32.mxu0 0.0
        %v3079 = vand.u32 %v2152, 4294901760
        %3080 = vmatmul.mubr.f32.gmra.mrb[0].mxu0 %v3079
        %v3081 = vpop.f32.mrb[0].mxu0
        %v3082 = vadd.f32 %v2953, %v3081
        %v3083 = vpop.f32.mrb[0].mxu0
        %3084 = vmatprep.mubr.f32.mxu0 0.0
        %v3085 = vand.u32 %v2153, 4294901760
        %3086 = vmatmul.mubr.f32.gmra.mrb[0].mxu0 %v3085
        %v3087 = vpop.f32.mrb[0].mxu0
        %v3088 = vadd.f32 %v2959, %v3087
        %v3089 = vpop.f32.mrb[0].mxu0
        %3090 = vmatprep.mubr.f32.mxu0 0.0
        %v3091 = vand.u32 %v2154, 4294901760
        %3092 = vmatmul.mubr.f32.gmra.mrb[0].mxu0 %v3091
        %v3093 = vpop.f32.mrb[0].mxu0
        %v3094 = vadd.f32 %v2965, %v3093
        %v3095 = vpop.f32.mrb[0].mxu0
        %3096 = vdwg.mxu0
        %v3097 = vmax.f32 %v2102, 1e-16
        %v3098 = vmax.f32 %v2108, 1e-16
        %v3099 = vmax.f32 %v2114, 1e-16
        %v3100 = vmax.f32 %v2120, 1e-16
        %v3101 = vmax.f32 %v2126, 1e-16
        %v3102 = vmax.f32 %v2132, 1e-16
        %v3103 = vmax.f32 %v2138, 1e-16
        %v3104 = vmax.f32 %v2144, 1e-16
        %v3105 = vrsqrt.pop %v3097
        %v3106 = vrsqrt.pop %v3098
        %v3107 = vrsqrt.pop %v3099
        %v3108 = vrsqrt.pop %v3100
        %v3109 = vrsqrt.pop %v3101
        %v3110 = vrsqrt.pop %v3102
        %v3111 = vrsqrt.pop %v3103
        %v3112 = vrsqrt.pop %v3104
        %v3113 = vmax.f32 %v3052, 1e-16
        %v3114 = vmax.f32 %v3058, 1e-16
        %v3115 = vmax.f32 %v3064, 1e-16
        %v3116 = vmax.f32 %v3070, 1e-16
        %v3117 = vmax.f32 %v3076, 1e-16
        %v3118 = vmax.f32 %v3082, 1e-16
        %v3119 = vmax.f32 %v3088, 1e-16
        %v3120 = vmax.f32 %v3094, 1e-16
        %v3121 = vrsqrt.pop %v3113
        %v3122 = vrsqrt.pop %v3114
        %v3123 = vrsqrt.pop %v3115
        %v3124 = vrsqrt.pop %v3116
        %v3125 = vrsqrt.pop %v3117
        %v3126 = vrsqrt.pop %v3118
        %v3127 = vrsqrt.pop %v3119
        %v3128 = vrsqrt.pop %v3120
        %v3129 = vmul.f32 %v1152, %v3105
        %v3130 = vmul.f32 %v1158, %v3106
        %v3131 = vmul.f32 %v1164, %v3107
        %v3132 = vmul.f32 %v1170, %v3108
        %v3133 = vmul.f32 %v1176, %v3109
        %v3134 = vmul.f32 %v1182, %v3110
        %v3135 = vmul.f32 %v1188, %v3111
        %v3136 = vmul.f32 %v1194, %v3112
        %v3137 = vmul.f32 %v3129, %v3121
        %v3138 = vmul.f32 %v3130, %v3122
        %v3139 = vmul.f32 %v3131, %v3123
        %v3140 = vmul.f32 %v3132, %v3124
        %v3141 = vmul.f32 %v3133, %v3125
        %v3142 = vmul.f32 %v3134, %v3126
        %v3143 = vmul.f32 %v3135, %v3127
        %v3144 = vmul.f32 %v3136, %v3128
        %v3145 = vsub.f32 1.0, %v3137
        %v3146 = vsub.f32 1.0, %v3138
        %v3147 = vsub.f32 1.0, %v3139
        %v3148 = vsub.f32 1.0, %v3140
        %v3149 = vsub.f32 1.0, %v3141
        %v3150 = vsub.f32 1.0, %v3142
        %v3151 = vsub.f32 1.0, %v3143
        %v3152 = vsub.f32 1.0, %v3144
        %vm3153 = vcmask 31744
        %3154 = vst.msk [vmem:[%s213] sm:$0xff] %vm3153, %v3145
        %3155 = vst.msk [vmem:[%s213 + $0x8] sm:$0xff] %vm3153, %v3146
        %3156 = vst.msk [vmem:[%s213 + $0x10] sm:$0xff] %vm3153, %v3147
        %3157 = vst.msk [vmem:[%s213 + $0x18] sm:$0xff] %vm3153, %v3148
        %3158 = vst.msk [vmem:[%s213 + $0x20] sm:$0xff] %vm3153, %v3149
        %3159 = vst.msk [vmem:[%s213 + $0x28] sm:$0xff] %vm3153, %v3150
        %3160 = vst.msk [vmem:[%s213 + $0x30] sm:$0xff] %vm3153, %v3151
        %3161 = vst.msk [vmem:[%s213 + $0x38] sm:$0xff] %vm3153, %v3152
        %s3162 = smul.u32 8, %s17
        %p3163 = scmp.lt.s32.totalorder %s3162, 15
        %s3164 = scalar_select %p3163, %s3162, 15
        %s3165 = smul.addr %s3164, 8
        %s3166 = scalar_lea.vmem %s3, %s3165
        // Predicated region
        $region37: #{tpu_custom_call.1} parent=31 // pred_check
          %p3167 = pneg %p108
        $region38: #{tpu_custom_call.1} parent=31 // pred_check_branch
          %3169 = sbr.rel (%p3167) target = $region40
        $region39: #{tpu_custom_call.1} parent=31 // pred_region
          %s3170 = smul.u32 8, %s17
        $region40: #{tpu_custom_call.1} parent=31 // pred_fallthru
          _
      $region32: #{tpu_custom_call.1} parent=5 // pred_fallthru
        _
      %p3171 = scmp.le.s32.totalorder 2, %s12
      // Predicated region
      $region41: #{tpu_custom_call.1} parent=5 // pred_check
        %p3172 = pneg %p3171
      $region42: #{tpu_custom_call.1} parent=5 // pred_check_branch
        %3174 = sbr.rel (%p3172) target = $region44
      $region43: #{tpu_custom_call.1} parent=5 // pred_region
        %s3175 = ssub.s32 %s12, 2
        // Predicated region
        $region45: #{tpu_custom_call.1} parent=43 // pred_check
          %p3176 = pneg %p114
        $region46: #{tpu_custom_call.1} parent=43 // pred_check_branch
          %3178 = sbr.rel (%p3176) target = $region48
        $region47: #{tpu_custom_call.1} parent=43 // pred_region
          %s3179 = smul.u32 8, %s18
          %p3180 = scmp.lt.s32.totalorder %s3179, 15
          %s3181 = scalar_select %p3180, %s3179, 15
          %s3182 = smul.addr %s3181, 8
          %s3183 = scalar_lea.vmem %s3, %s3182
        $region48: #{tpu_custom_call.1} parent=43 // pred_fallthru
          _
      $region44: #{tpu_custom_call.1} parent=5 // pred_fallthru
        _
    $region6: #{tpu_custom_call.1} parent=1 // loop_footer
      %s16 = sadd.s32 1, %s12
    $region7: #{tpu_custom_call.1} parent=1 // loop_footer_branch
      %11 = sbr.rel target = $region3
    $region8: #{tpu_custom_call.1} parent=1 // loop_exit
      _
    %3184 = vsyncpa [#allocation3], 1
    %s3185 = scalar_lea.sflag [#allocation3], 1
    %3186 = vsyncpa %s3185, 1

</llo_original>
